<compile_context>
chip_gen: v7x
topology: tpu7x:2x2x1
jax: 0.10.0
libtpu: 0.0.40
codegen_flags: <defaults>
</compile_context>

<pallas_src>
import math
import functools

import jax
import jax.numpy as jnp
from jax.experimental import pallas as pl
from jax.experimental.pallas import tpu as pltpu


def _round_up(n, m):
    return ((n + m - 1) // m) * m


def _pad2d(a, rows, cols):
    r, c = a.shape
    if r == rows and c == cols:
        return a
    return jnp.pad(a, ((0, rows - r), (0, cols - c)))


def _pick_tile(n, preferred, max_waste=0.08):
    """Largest tile <= preferred (halving from a power-of-2 multiple of 128)
    that keeps round_up(n, tile) within `max_waste` of the minimal 128-padded
    size (padded adj rows/cols are real zero bytes streamed from HBM)."""
    base = _round_up(n, 128)
    if preferred >= base:
        return base  # whole (padded) dim in a single tile
    t = preferred
    while t > 128:
        if _round_up(n, t) <= base * (1.0 + max_waste):
            return t
        t //= 2
    return 128


# ---------- stage 1: support = x @ weight (large row tiles) ----------
def _support_kernel(x_ref, w_ref, o_ref):
    # x_ref: (ts, F_in) bf16, w_ref: (F_in, F_out_p) bf16, o_ref: (ts, F_out_p) bf16
    o_ref[...] = jnp.dot(
        x_ref[...], w_ref[...], preferred_element_type=jnp.float32
    ).astype(o_ref.dtype)


# ---------- stage 2 kernels: out = adj @ support + bias ----------
def _aggregate_f32_kernel(adj_ref, s_ref, b_ref, o_ref, *, tk, resident):
    # f32 output: accumulate directly into the (K-resident) output block.
    k = pl.program_id(1)

    @pl.when(k == 0)
    def _():
        o_ref[...] = jnp.broadcast_to(b_ref[...], o_ref.shape)

    if resident:
        start = pl.multiple_of(k * tk, tk)
        s = s_ref[pl.ds(start, tk), :]      # slice resident support in VMEM
    else:
        s = s_ref[...]
    o_ref[...] += jnp.dot(adj_ref[...], s, preferred_element_type=jnp.float32)


def _aggregate_acc_kernel(adj_ref, s_ref, b_ref, o_ref, acc_ref, *, tk, resident):
    # Non-f32 output: f32 VMEM accumulator with init/finalize.
    k = pl.program_id(1)

    @pl.when(k == 0)
    def _():
        acc_ref[...] = jnp.zeros_like(acc_ref)

    if resident:
        start = pl.multiple_of(k * tk, tk)
        s = s_ref[pl.ds(start, tk), :]
    else:
        s = s_ref[...]
    acc_ref[...] += jnp.dot(adj_ref[...], s, preferred_element_type=jnp.float32)

    @pl.when(k == pl.num_programs(1) - 1)
    def _():
        o_ref[...] = (acc_ref[...] + b_ref[...]).astype(o_ref.dtype)


@functools.partial(jax.jit, static_argnames=("tm", "tk"))
def graph_convolution(x, adj, weight, bias=None, *, tm=512, tk=2048):
    """Pallas GCN layer forward. x:(N,F_in), adj:(N,N), weight:(F_in,F_out)."""
    N, f_in = x.shape
    f_out = weight.shape[1]
    assert adj.shape == (N, N)
    out_dtype = x.dtype
    cdt = jnp.bfloat16  # compute dtype for streaming operands; f32 accumulation

    # ---- tile plan (pad-waste aware; bigger defaults per perf review) ----
    tm = _pick_tile(N, tm)
    tk = _pick_tile(N, tk)
    n_rows = _round_up(N, tm)   # padded rows of adj / output
    n_cols = _round_up(N, tk)   # padded cols of adj == padded rows of support
    # v7x megacore: keep >= 2 row tiles so the "parallel" axis shards across
    # both TensorCores (only when the halved tile stays 128-aligned).
    if n_rows // tm == 1 and tm >= 256 and tm % 256 == 0:
        tm //= 2
        n_rows = _round_up(N, tm)
    f_out_p = _round_up(f_out, 128)  # lane-dense output

    x_p = _pad2d(x, n_cols, f_in).astype(cdt)
    w_p = _pad2d(weight, f_in, f_out_p).astype(cdt)
    adj_p = _pad2d(adj, n_rows, n_cols).astype(cdt)
    if bias is None:
        b_p = jnp.zeros((1, f_out_p), jnp.float32)
    else:
        b_p = _pad2d(bias.reshape(1, f_out).astype(jnp.float32), 1, f_out_p)

    # ---- stage 1: support = x @ weight (large ts, single step for small N) ----
    ts = min(4096, n_cols)
    while n_cols % ts:
        ts //= 2
    support = pl.pallas_call(
        _support_kernel,
        out_shape=jax.ShapeDtypeStruct((n_cols, f_out_p), cdt),
        grid_spec=pltpu.PrefetchScalarGridSpec(
            num_scalar_prefetch=0,
            grid=(n_cols // ts,),
            in_specs=[
                pl.BlockSpec((ts, f_in), lambda i: (i, 0)),
                pl.BlockSpec((f_in, f_out_p), lambda i: (0, 0)),
            ],
            out_specs=pl.BlockSpec((ts, f_out_p), lambda i: (i, 0)),
        ),
        compiler_params=pltpu.CompilerParams(
            dimension_semantics=("parallel",)
        ),
    )(x_p, w_p)

    # ---- stage 2: out = adj @ support + bias ----
    support_bytes = n_cols * f_out_p * 2  # bf16
    # Keep support resident in VMEM when it fits a conservative budget
    # (assume worst-case double buffering; 24 MiB keeps v7x's 64 MiB safe).
    resident = (2 * support_bytes) <= (24 << 20)

    if resident:
        s_spec = pl.BlockSpec((n_cols, f_out_p), lambda i, k: (0, 0))
        sup_buf = 2 * support_bytes
    else:
        s_spec = pl.BlockSpec((tk, f_out_p), lambda i, k: (k, 0))
        sup_buf = 2 * tk * f_out_p * 2

    out_is_f32 = jnp.dtype(out_dtype) == jnp.dtype(jnp.float32)
    out_itemsize = jnp.dtype(out_dtype).itemsize
    vmem_bytes = (
        2 * tm * tk * 2                       # adj double buffer (bf16)
        + sup_buf                             # support
        + 2 * tm * f_out_p * out_itemsize     # output double buffer
        + 2 * f_out_p * 4                     # bias
        + (0 if out_is_f32 else tm * f_out_p * 4)  # f32 scratch accumulator
    )
    vmem_limit = int(min(max(vmem_bytes + (8 << 20), 32 << 20), 56 << 20))

    grid = (n_rows // tm, n_cols // tk)
    in_specs = [
        pl.BlockSpec((tm, tk), lambda i, k: (i, k)),
        s_spec,
        pl.BlockSpec((1, f_out_p), lambda i, k: (0, 0)),
    ]
    out_spec = pl.BlockSpec((tm, f_out_p), lambda i, k: (i, 0))
    out_shape = jax.ShapeDtypeStruct((n_rows, f_out_p), out_dtype)
    cparams = pltpu.CompilerParams(
        dimension_semantics=("parallel", "arbitrary"),
        vmem_limit_bytes=vmem_limit,
    )

    if out_is_f32:
        out_p = pl.pallas_call(
            functools.partial(_aggregate_f32_kernel, tk=tk, resident=resident),
            out_shape=out_shape,
            grid_spec=pltpu.PrefetchScalarGridSpec(
                num_scalar_prefetch=0,
                grid=grid,
                in_specs=in_specs,
                out_specs=out_spec,
            ),
            compiler_params=cparams,
        )(adj_p, support, b_p)
    else:
        out_p = pl.pallas_call(
            functools.partial(_aggregate_acc_kernel, tk=tk, resident=resident),
            out_shape=out_shape,
            grid_spec=pltpu.PrefetchScalarGridSpec(
                num_scalar_prefetch=0,
                grid=grid,
                in_specs=in_specs,
                out_specs=out_spec,
                scratch_shapes=[pltpu.VMEM((tm, f_out_p), jnp.float32)],
            ),
            compiler_params=cparams,
        )(adj_p, support, b_p)

    return out_p[:N, :f_out]


def init_gcn_params(key, in_features, out_features, bias=True):
    """Mirror GraphConvolution.reset_parameters: uniform(-stdv, stdv)."""
    stdv = 1.0 / math.sqrt(out_features)
    kw, kb = jax.random.split(key)
    weight = jax.random.uniform(
        kw, (in_features, out_features), jnp.float32, minval=-stdv, maxval=stdv
    )
    b = (
        jax.random.uniform(kb, (out_features,), jnp.float32, minval=-stdv, maxval=stdv)
        if bias
        else None
    )
    return weight, b


if __name__ == "__main__":
    # N deliberately not a multiple of the tiles and F_OUT not a multiple of
    # 128 to exercise the padding / tile-picking paths.
    N, F_IN, F_OUT = 1000, 64, 96

    key = jax.random.PRNGKey(0)
    k_x, k_adj, k_param = jax.random.split(key, 3)

    x = jax.random.normal(k_x, (N, F_IN), jnp.float32)

    # Simple symmetric, row-normalized dense adjacency (GCN-style).
    a = (jax.random.uniform(k_adj, (N, N)) < 0.1).astype(jnp.float32)
    a = jnp.maximum(a, a.T) + jnp.eye(N, dtype=jnp.float32)
    adj = a / jnp.sum(a, axis=1, keepdims=True)

    weight, bias = init_gcn_params(k_param, F_IN, F_OUT, bias=True)

    out = graph_convolution(x, adj, weight, bias)
    out = jax.block_until_ready(out)

    # Pure-JAX f32 reference of the exact forward semantics (kernel streams
    # operands in bf16 with f32 accumulation -> loose tolerance).
    ref = adj @ (x @ weight) + bias
    assert out.shape == (N, F_OUT)
    assert jnp.allclose(out, ref, atol=2e-2, rtol=2e-2)

    # Also exercise the bias=None path.
    out_nb = jax.block_until_ready(graph_convolution(x, adj, weight, None))
    ref_nb = adj @ (x @ weight)
    assert jnp.allclose(out_nb, ref_nb, atol=2e-2, rtol=2e-2)

    print("KERNEL_OK")
</pallas_src>

<mosaic_0001>
module attributes {stable_mosaic.version = 11 : i64} {
  func.func @_support_kernel(%arg0: i32, %arg1: memref<1024x64xbf16, #tpu.memory_space<vmem>>, %arg2: memref<64x128xbf16, #tpu.memory_space<vmem>>, %arg3: memref<1024x128xbf16, #tpu.memory_space<vmem>>) attributes {dimension_semantics = [#tpu.dimension_semantics<parallel>], iteration_bounds = array<i64: 1>, scalar_prefetch = 0 : i64, scratch_operands = 0 : i64, tpu.core_type = #tpu.core_type<tc>, window_params = [{transform_indices = @transform_0, window_bounds = array<i64: 1024, 64>}, {pipeline_mode = #tpu.pipeline_mode<synchronous>, transform_indices = @transform_1, window_bounds = array<i64: 64, 128>}, {transform_indices = @transform_2, window_bounds = array<i64: 1024, 128>}]} {
    %c0 = arith.constant 0 : index
    %c0_0 = arith.constant 0 : index
    %0 = vector.load %arg1[%c0, %c0_0] : memref<1024x64xbf16, #tpu.memory_space<vmem>>, vector<1024x64xbf16>
    %c0_1 = arith.constant 0 : index
    %c0_2 = arith.constant 0 : index
    %1 = vector.load %arg2[%c0_1, %c0_2] : memref<64x128xbf16, #tpu.memory_space<vmem>>, vector<64x128xbf16>
    %cst = arith.constant dense<0.000000e+00> : vector<1024x128xf32>
    %2 = tpu.matmul %0, %1, %cst {dimension_numbers = #tpu.dot_dimension_numbers<[1], [0], [0], [1], [0, 0, 1, 1], [], []>} : vector<1024x64xbf16>, vector<64x128xbf16>, vector<1024x128xf32> -> vector<1024x128xf32>
    %3 = arith.truncf %2 : vector<1024x128xf32> to vector<1024x128xbf16>
    %c0_3 = arith.constant 0 : index
    %c0_4 = arith.constant 0 : index
    %4 = vector.load %arg3[%c0_3, %c0_4] : memref<1024x128xbf16, #tpu.memory_space<vmem>>, vector<1024x128xbf16>
    tpu.vector_store %arg3[%c0_3, %c0_4], %3 {strides = array<i32>} : memref<1024x128xbf16, #tpu.memory_space<vmem>>, vector<1024x128xbf16>,
    return
  }
  func.func @transform_0(%arg0: i32) -> (i32, i32) {
    %c0_i32 = arith.constant 0 : i32
    %c0_i32_0 = arith.constant 0 : i32
    return %arg0, %c0_i32 : i32, i32
  }
  func.func @transform_1(%arg0: i32) -> (i32, i32) {
    %c0_i32 = arith.constant 0 : i32
    %c0_i32_0 = arith.constant 0 : i32
    %c0_i32_1 = arith.constant 0 : i32
    return %c0_i32, %c0_i32_0 : i32, i32
  }
  func.func @transform_2(%arg0: i32) -> (i32, i32) {
    %c0_i32 = arith.constant 0 : i32
    %c0_i32_0 = arith.constant 0 : i32
    return %arg0, %c0_i32 : i32, i32
  }
}

module attributes {stable_mosaic.version = 11 : i64} {
  func.func @_aggregate_f32_kernel(%arg0: i32, %arg1: i32, %arg2: memref<512x1024xbf16, #tpu.memory_space<vmem>>, %arg3: memref<1024x128xbf16, #tpu.memory_space<vmem>>, %arg4: memref<1x128xf32, #tpu.memory_space<vmem>>, %arg5: memref<512x128xf32, #tpu.memory_space<vmem>>) attributes {dimension_semantics = [#tpu.dimension_semantics<parallel>, #tpu.dimension_semantics<arbitrary>], iteration_bounds = array<i64: 2, 1>, scalar_prefetch = 0 : i64, scratch_operands = 0 : i64, tpu.core_type = #tpu.core_type<tc>, window_params = [{transform_indices = @transform_0, window_bounds = array<i64: 512, 1024>}, {pipeline_mode = #tpu.pipeline_mode<synchronous>, transform_indices = @transform_1, window_bounds = array<i64: 1024, 128>}, {pipeline_mode = #tpu.pipeline_mode<synchronous>, transform_indices = @transform_2, window_bounds = array<i64: 1, 128>}, {transform_indices = @transform_3, window_bounds = array<i64: 512, 128>}]} {
    %c0_i32 = arith.constant 0 : i32
    %0 = arith.cmpi eq, %arg1, %c0_i32 : i32
    %1 = arith.extui %0 : i1 to i32
    %c0_i32_0 = arith.constant 0 : i32
    %2 = arith.cmpi ne, %1, %c0_i32_0 : i32
    scf.if %2 {
      %c0_7 = arith.constant 0 : index
      %c0_8 = arith.constant 0 : index
      %12 = vector.load %arg4[%c0_7, %c0_8] : memref<1x128xf32, #tpu.memory_space<vmem>>, vector<1x128xf32>
      %13 = vector.shape_cast %12 : vector<1x128xf32> to vector<1x128xf32>
      %14 = vector.broadcast %13 : vector<1x128xf32> to vector<512x128xf32>
      %c0_9 = arith.constant 0 : index
      %c0_10 = arith.constant 0 : index
      %15 = vector.load %arg5[%c0_9, %c0_10] : memref<512x128xf32, #tpu.memory_space<vmem>>, vector<512x128xf32>
      tpu.vector_store %arg5[%c0_9, %c0_10], %14 {strides = array<i32>} : memref<512x128xf32, #tpu.memory_space<vmem>>, vector<512x128xf32>,
    } else {
    }
    %c1024_i32 = arith.constant 1024 : i32
    %3 = arith.muli %arg1, %c1024_i32 : i32
    %4 = tpu.assume_multiple %3, 1024 : i32
    %5 = arith.index_cast %4 : i32 to index
    %c0 = arith.constant 0 : index
    %6 = vector.load %arg3[%5, %c0] : memref<1024x128xbf16, #tpu.memory_space<vmem>>, vector<1024x128xbf16>
    %c0_1 = arith.constant 0 : index
    %c0_2 = arith.constant 0 : index
    %7 = vector.load %arg5[%c0_1, %c0_2] : memref<512x128xf32, #tpu.memory_space<vmem>>, vector<512x128xf32>
    %c0_3 = arith.constant 0 : index
    %c0_4 = arith.constant 0 : index
    %8 = vector.load %arg2[%c0_3, %c0_4] : memref<512x1024xbf16, #tpu.memory_space<vmem>>, vector<512x1024xbf16>
    %cst = arith.constant dense<0.000000e+00> : vector<512x128xf32>
    %9 = tpu.matmul %8, %6, %cst {dimension_numbers = #tpu.dot_dimension_numbers<[1], [0], [0], [1], [0, 0, 1, 1], [], []>} : vector<512x1024xbf16>, vector<1024x128xbf16>, vector<512x128xf32> -> vector<512x128xf32>
    %10 = arith.addf %7, %9 : vector<512x128xf32>
    %c0_5 = arith.constant 0 : index
    %c0_6 = arith.constant 0 : index
    %11 = vector.load %arg5[%c0_5, %c0_6] : memref<512x128xf32, #tpu.memory_space<vmem>>, vector<512x128xf32>
    tpu.vector_store %arg5[%c0_5, %c0_6], %10 {strides = array<i32>} : memref<512x128xf32, #tpu.memory_space<vmem>>, vector<512x128xf32>,
    return
  }
  func.func @transform_0(%arg0: i32, %arg1: i32) -> (i32, i32) {
    %c0_i32 = arith.constant 0 : i32
    return %arg0, %arg1 : i32, i32
  }
  func.func @transform_1(%arg0: i32, %arg1: i32) -> (i32, i32) {
    %c0_i32 = arith.constant 0 : i32
    %c0_i32_0 = arith.constant 0 : i32
    %c0_i32_1 = arith.constant 0 : i32
    return %c0_i32, %c0_i32_0 : i32, i32
  }
  func.func @transform_2(%arg0: i32, %arg1: i32) -> (i32, i32) {
    %c0_i32 = arith.constant 0 : i32
    %c0_i32_0 = arith.constant 0 : i32
    %c0_i32_1 = arith.constant 0 : i32
    return %c0_i32, %c0_i32_0 : i32, i32
  }
  func.func @transform_3(%arg0: i32, %arg1: i32) -> (i32, i32) {
    %c0_i32 = arith.constant 0 : i32
    %c0_i32_0 = arith.constant 0 : i32
    return %arg0, %c0_i32 : i32, i32
  }
}

</mosaic_0001>

<llo_original>
// kernel: graph_convolution.2
$region0: #{graph_convolution.2}
  #allocation0 [shape = 'u32[]', space=smem, size = 0x4, offset = 0x4, fixed_abs, tag = 'smem constant byte address 0x4 - core index']
  #allocation1 [shape = 'u32[144,128]{1,0:T(1,128)}', space=vmem, size = 0x12000, scoped, tag = 'internal scratch']
  %s0 = inlined_call_operand.vmem [shape: bf16[1024,64], index: 0, kind: input, shape index: {}]
  %s1 = inlined_call_operand.vmem [shape: bf16[64,128], index: 1, kind: input, shape index: {}]
  %s2 = inlined_call_operand.vmem [shape: bf16[1024,128], index: 2, kind: output, shape index: {}]
  %s3 = sld [smem:[#allocation0]]
  $region18: #{graph_convolution.2} parent=0
    _
  %s5 = ssub.s32 1, %s3
  %s6 = scalar_select 0, %s5, %s3
  // Predicated region
  $region2: #{graph_convolution.2} parent=0 // pred_check
    _
  $region3: #{graph_convolution.2} parent=0 // pred_check_branch
    %8 = sbr.rel (0) target = $region5
  $region4: #{graph_convolution.2} parent=0 // pred_region
    _
  $region5: #{graph_convolution.2} parent=0 // pred_fallthru
    _
  // Predicated region
  $region6: #{graph_convolution.2} parent=0 // pred_check
    _
  $region7: #{graph_convolution.2} parent=0 // pred_check_branch
    %10 = sbr.rel (0) target = $region9
  $region8: #{graph_convolution.2} parent=0 // pred_region
    _
  $region9: #{graph_convolution.2} parent=0 // pred_fallthru
    _
  %v12 = vld [vmem:[%s0] sm:$0xf]
  %v13 = vld [vmem:[%s0 + $0x4] sm:$0xf]
  %v14 = vld [vmem:[%s0 + $0x8] sm:$0xf]
  %v15 = vld [vmem:[%s0 + $0xc] sm:$0xf]
  %v16 = vld [vmem:[%s0 + $0x10] sm:$0xf]
  %v17 = vld [vmem:[%s0 + $0x14] sm:$0xf]
  %v18 = vld [vmem:[%s0 + $0x18] sm:$0xf]
  %v19 = vld [vmem:[%s0 + $0x1c] sm:$0xf]
  %v20 = vld [vmem:[%s0 + $0x20] sm:$0xf]
  %v21 = vld [vmem:[%s0 + $0x24] sm:$0xf]
  %v22 = vld [vmem:[%s0 + $0x28] sm:$0xf]
  %v23 = vld [vmem:[%s0 + $0x2c] sm:$0xf]
  %v24 = vld [vmem:[%s0 + $0x30] sm:$0xf]
  %v25 = vld [vmem:[%s0 + $0x34] sm:$0xf]
  %v26 = vld [vmem:[%s0 + $0x38] sm:$0xf]
  %v27 = vld [vmem:[%s0 + $0x3c] sm:$0xf]
  %v28 = vld [vmem:[%s0 + $0x40] sm:$0xf]
  %v29 = vld [vmem:[%s0 + $0x44] sm:$0xf]
  %v30 = vld [vmem:[%s0 + $0x48] sm:$0xf]
  %v31 = vld [vmem:[%s0 + $0x4c] sm:$0xf]
  %v32 = vld [vmem:[%s0 + $0x50] sm:$0xf]
  %v33 = vld [vmem:[%s0 + $0x54] sm:$0xf]
  %v34 = vld [vmem:[%s0 + $0x58] sm:$0xf]
  %v35 = vld [vmem:[%s0 + $0x5c] sm:$0xf]
  %v36 = vld [vmem:[%s0 + $0x60] sm:$0xf]
  %v37 = vld [vmem:[%s0 + $0x64] sm:$0xf]
  %v38 = vld [vmem:[%s0 + $0x68] sm:$0xf]
  %v39 = vld [vmem:[%s0 + $0x6c] sm:$0xf]
  %v40 = vld [vmem:[%s0 + $0x70] sm:$0xf]
  %v41 = vld [vmem:[%s0 + $0x74] sm:$0xf]
  %v42 = vld [vmem:[%s0 + $0x78] sm:$0xf]
  %v43 = vld [vmem:[%s0 + $0x7c] sm:$0xf]
  %v44 = vld [vmem:[%s0 + $0x80] sm:$0xf]
  %v45 = vld [vmem:[%s0 + $0x84] sm:$0xf]
  %v46 = vld [vmem:[%s0 + $0x88] sm:$0xf]
  %v47 = vld [vmem:[%s0 + $0x8c] sm:$0xf]
  %v48 = vld [vmem:[%s0 + $0x90] sm:$0xf]
  %v49 = vld [vmem:[%s0 + $0x94] sm:$0xf]
  %v50 = vld [vmem:[%s0 + $0x98] sm:$0xf]
  %v51 = vld [vmem:[%s0 + $0x9c] sm:$0xf]
  %v52 = vld [vmem:[%s0 + $0xa0] sm:$0xf]
  %v53 = vld [vmem:[%s0 + $0xa4] sm:$0xf]
  %v54 = vld [vmem:[%s0 + $0xa8] sm:$0xf]
  %v55 = vld [vmem:[%s0 + $0xac] sm:$0xf]
  %v56 = vld [vmem:[%s0 + $0xb0] sm:$0xf]
  %v57 = vld [vmem:[%s0 + $0xb4] sm:$0xf]
  %v58 = vld [vmem:[%s0 + $0xb8] sm:$0xf]
  %v59 = vld [vmem:[%s0 + $0xbc] sm:$0xf]
  %v60 = vld [vmem:[%s0 + $0xc0] sm:$0xf]
  %v61 = vld [vmem:[%s0 + $0xc4] sm:$0xf]
  %v62 = vld [vmem:[%s0 + $0xc8] sm:$0xf]
  %v63 = vld [vmem:[%s0 + $0xcc] sm:$0xf]
  %v64 = vld [vmem:[%s0 + $0xd0] sm:$0xf]
  %v65 = vld [vmem:[%s0 + $0xd4] sm:$0xf]
  %v66 = vld [vmem:[%s0 + $0xd8] sm:$0xf]
  %v67 = vld [vmem:[%s0 + $0xdc] sm:$0xf]
  %v68 = vld [vmem:[%s0 + $0xe0] sm:$0xf]
  %v69 = vld [vmem:[%s0 + $0xe4] sm:$0xf]
  %v70 = vld [vmem:[%s0 + $0xe8] sm:$0xf]
  %v71 = vld [vmem:[%s0 + $0xec] sm:$0xf]
  %v72 = vld [vmem:[%s0 + $0xf0] sm:$0xf]
  %v73 = vld [vmem:[%s0 + $0xf4] sm:$0xf]
  %v74 = vld [vmem:[%s0 + $0xf8] sm:$0xf]
  %v75 = vld [vmem:[%s0 + $0xfc] sm:$0xf]
  %v76 = vld [vmem:[%s0 + $0x100] sm:$0xf]
  %v77 = vld [vmem:[%s0 + $0x104] sm:$0xf]
  %v78 = vld [vmem:[%s0 + $0x108] sm:$0xf]
  %v79 = vld [vmem:[%s0 + $0x10c] sm:$0xf]
  %v80 = vld [vmem:[%s0 + $0x110] sm:$0xf]
  %v81 = vld [vmem:[%s0 + $0x114] sm:$0xf]
  %v82 = vld [vmem:[%s0 + $0x118] sm:$0xf]
  %v83 = vld [vmem:[%s0 + $0x11c] sm:$0xf]
  %v84 = vld [vmem:[%s0 + $0x120] sm:$0xf]
  %v85 = vld [vmem:[%s0 + $0x124] sm:$0xf]
  %v86 = vld [vmem:[%s0 + $0x128] sm:$0xf]
  %v87 = vld [vmem:[%s0 + $0x12c] sm:$0xf]
  %v88 = vld [vmem:[%s0 + $0x130] sm:$0xf]
  %v89 = vld [vmem:[%s0 + $0x134] sm:$0xf]
  %v90 = vld [vmem:[%s0 + $0x138] sm:$0xf]
  %v91 = vld [vmem:[%s0 + $0x13c] sm:$0xf]
  %v92 = vld [vmem:[%s0 + $0x140] sm:$0xf]
  %v93 = vld [vmem:[%s0 + $0x144] sm:$0xf]
  %v94 = vld [vmem:[%s0 + $0x148] sm:$0xf]
  %v95 = vld [vmem:[%s0 + $0x14c] sm:$0xf]
  %v96 = vld [vmem:[%s0 + $0x150] sm:$0xf]
  %v97 = vld [vmem:[%s0 + $0x154] sm:$0xf]
  %v98 = vld [vmem:[%s0 + $0x158] sm:$0xf]
  %v99 = vld [vmem:[%s0 + $0x15c] sm:$0xf]
  %v100 = vld [vmem:[%s0 + $0x160] sm:$0xf]
  %v101 = vld [vmem:[%s0 + $0x164] sm:$0xf]
  %v102 = vld [vmem:[%s0 + $0x168] sm:$0xf]
  %v103 = vld [vmem:[%s0 + $0x16c] sm:$0xf]
  %v104 = vld [vmem:[%s0 + $0x170] sm:$0xf]
  %v105 = vld [vmem:[%s0 + $0x174] sm:$0xf]
  %v106 = vld [vmem:[%s0 + $0x178] sm:$0xf]
  %v107 = vld [vmem:[%s0 + $0x17c] sm:$0xf]
  %v108 = vld [vmem:[%s0 + $0x180] sm:$0xf]
  %v109 = vld [vmem:[%s0 + $0x184] sm:$0xf]
  %v110 = vld [vmem:[%s0 + $0x188] sm:$0xf]
  %v111 = vld [vmem:[%s0 + $0x18c] sm:$0xf]
  %v112 = vld [vmem:[%s0 + $0x190] sm:$0xf]
  %v113 = vld [vmem:[%s0 + $0x194] sm:$0xf]
  %v114 = vld [vmem:[%s0 + $0x198] sm:$0xf]
  %v115 = vld [vmem:[%s0 + $0x19c] sm:$0xf]
  %v116 = vld [vmem:[%s0 + $0x1a0] sm:$0xf]
  %v117 = vld [vmem:[%s0 + $0x1a4] sm:$0xf]
  %v118 = vld [vmem:[%s0 + $0x1a8] sm:$0xf]
  %v119 = vld [vmem:[%s0 + $0x1ac] sm:$0xf]
  %v120 = vld [vmem:[%s0 + $0x1b0] sm:$0xf]
  %v121 = vld [vmem:[%s0 + $0x1b4] sm:$0xf]
  %v122 = vld [vmem:[%s0 + $0x1b8] sm:$0xf]
  %v123 = vld [vmem:[%s0 + $0x1bc] sm:$0xf]
  %v124 = vld [vmem:[%s0 + $0x1c0] sm:$0xf]
  %v125 = vld [vmem:[%s0 + $0x1c4] sm:$0xf]
  %v126 = vld [vmem:[%s0 + $0x1c8] sm:$0xf]
  %v127 = vld [vmem:[%s0 + $0x1cc] sm:$0xf]
  %v128 = vld [vmem:[%s0 + $0x1d0] sm:$0xf]
  %v129 = vld [vmem:[%s0 + $0x1d4] sm:$0xf]
  %v130 = vld [vmem:[%s0 + $0x1d8] sm:$0xf]
  %v131 = vld [vmem:[%s0 + $0x1dc] sm:$0xf]
  %v132 = vld [vmem:[%s0 + $0x1e0] sm:$0xf]
  %v133 = vld [vmem:[%s0 + $0x1e4] sm:$0xf]
  %v134 = vld [vmem:[%s0 + $0x1e8] sm:$0xf]
  %v135 = vld [vmem:[%s0 + $0x1ec] sm:$0xf]
  %v136 = vld [vmem:[%s0 + $0x1f0] sm:$0xf]
  %v137 = vld [vmem:[%s0 + $0x1f4] sm:$0xf]
  %v138 = vld [vmem:[%s0 + $0x1f8] sm:$0xf]
  %v139 = vld [vmem:[%s0 + $0x1fc] sm:$0xf]
  %v140 = vld [vmem:[%s1] sm:$0xf]
  %v141 = vld [vmem:[%s1 + $0x4] sm:$0xf]
  %v142 = vld [vmem:[%s1 + $0x8] sm:$0xf]
  %v143 = vld [vmem:[%s1 + $0xc] sm:$0xf]
  %v144 = vld [vmem:[%s1 + $0x10] sm:$0xf]
  %v145 = vld [vmem:[%s1 + $0x14] sm:$0xf]
  %v146 = vld [vmem:[%s1 + $0x18] sm:$0xf]
  %v147 = vld [vmem:[%s1 + $0x1c] sm:$0xf]
  %v276 = vunpack.c.l.b16 %v12
  %v277 = vunpack.c.l.b16 %v13
  %v278 = vunpack.c.l.b16 %v14
  %v279 = vunpack.c.l.b16 %v15
  %v280 = vunpack.c.l.b16 %v16
  %v281 = vunpack.c.l.b16 %v17
  %v282 = vunpack.c.l.b16 %v18
  %v283 = vunpack.c.l.b16 %v19
  %v284 = vunpack.c.l.b16 %v20
  %v285 = vunpack.c.l.b16 %v21
  %v286 = vunpack.c.l.b16 %v22
  %v287 = vunpack.c.l.b16 %v23
  %v288 = vunpack.c.l.b16 %v24
  %v289 = vunpack.c.l.b16 %v25
  %v290 = vunpack.c.l.b16 %v26
  %v291 = vunpack.c.l.b16 %v27
  %v292 = vunpack.c.l.b16 %v28
  %v293 = vunpack.c.l.b16 %v29
  %v294 = vunpack.c.l.b16 %v30
  %v295 = vunpack.c.l.b16 %v31
  %v296 = vunpack.c.l.b16 %v32
  %v297 = vunpack.c.l.b16 %v33
  %v298 = vunpack.c.l.b16 %v34
  %v299 = vunpack.c.l.b16 %v35
  %v300 = vunpack.c.l.b16 %v36
  %v301 = vunpack.c.l.b16 %v37
  %v302 = vunpack.c.l.b16 %v38
  %v303 = vunpack.c.l.b16 %v39
  %v304 = vunpack.c.l.b16 %v40
  %v305 = vunpack.c.l.b16 %v41
  %v306 = vunpack.c.l.b16 %v42
  %v307 = vunpack.c.l.b16 %v43
  %v308 = vunpack.c.l.b16 %v44
  %v309 = vunpack.c.l.b16 %v45
  %v310 = vunpack.c.l.b16 %v46
  %v311 = vunpack.c.l.b16 %v47
  %v312 = vunpack.c.l.b16 %v48
  %v313 = vunpack.c.l.b16 %v49
  %v314 = vunpack.c.l.b16 %v50
  %v315 = vunpack.c.l.b16 %v51
  %v316 = vunpack.c.l.b16 %v52
  %v317 = vunpack.c.l.b16 %v53
  %v318 = vunpack.c.l.b16 %v54
  %v319 = vunpack.c.l.b16 %v55
  %v320 = vunpack.c.l.b16 %v56
  %v321 = vunpack.c.l.b16 %v57
  %v322 = vunpack.c.l.b16 %v58
  %v323 = vunpack.c.l.b16 %v59
  %v324 = vunpack.c.l.b16 %v60
  %v325 = vunpack.c.l.b16 %v61
  %v326 = vunpack.c.l.b16 %v62
  %v327 = vunpack.c.l.b16 %v63
  %v328 = vunpack.c.l.b16 %v64
  %v329 = vunpack.c.l.b16 %v65
  %v330 = vunpack.c.l.b16 %v66
  %v331 = vunpack.c.l.b16 %v67
  %v332 = vunpack.c.l.b16 %v68
  %v333 = vunpack.c.l.b16 %v69
  %v334 = vunpack.c.l.b16 %v70
  %v335 = vunpack.c.l.b16 %v71
  %v336 = vunpack.c.l.b16 %v72
  %v337 = vunpack.c.l.b16 %v73
  %v338 = vunpack.c.l.b16 %v74
  %v339 = vunpack.c.l.b16 %v75
  %v340 = vunpack.c.l.b16 %v76
  %v341 = vunpack.c.l.b16 %v77
  %v342 = vunpack.c.l.b16 %v78
  %v343 = vunpack.c.l.b16 %v79
  %v344 = vunpack.c.l.b16 %v80
  %v345 = vunpack.c.l.b16 %v81
  %v346 = vunpack.c.l.b16 %v82
  %v347 = vunpack.c.l.b16 %v83
  %v348 = vunpack.c.l.b16 %v84
  %v349 = vunpack.c.l.b16 %v85
  %v350 = vunpack.c.l.b16 %v86
  %v351 = vunpack.c.l.b16 %v87
  %v352 = vunpack.c.l.b16 %v88
  %v353 = vunpack.c.l.b16 %v89
  %v354 = vunpack.c.l.b16 %v90
  %v355 = vunpack.c.l.b16 %v91
  %v356 = vunpack.c.l.b16 %v92
  %v357 = vunpack.c.l.b16 %v93
  %v358 = vunpack.c.l.b16 %v94
  %v359 = vunpack.c.l.b16 %v95
  %v360 = vunpack.c.l.b16 %v96
  %v361 = vunpack.c.l.b16 %v97
  %v362 = vunpack.c.l.b16 %v98
  %v363 = vunpack.c.l.b16 %v99
  %v364 = vunpack.c.l.b16 %v100
  %v365 = vunpack.c.l.b16 %v101
  %v366 = vunpack.c.l.b16 %v102
  %v367 = vunpack.c.l.b16 %v103
  %v368 = vunpack.c.l.b16 %v104
  %v369 = vunpack.c.l.b16 %v105
  %v370 = vunpack.c.l.b16 %v106
  %v371 = vunpack.c.l.b16 %v107
  %v372 = vunpack.c.l.b16 %v108
  %v373 = vunpack.c.l.b16 %v109
  %v374 = vunpack.c.l.b16 %v110
  %v375 = vunpack.c.l.b16 %v111
  %v376 = vunpack.c.l.b16 %v112
  %v377 = vunpack.c.l.b16 %v113
  %v378 = vunpack.c.l.b16 %v114
  %v379 = vunpack.c.l.b16 %v115
  %v380 = vunpack.c.l.b16 %v116
  %v381 = vunpack.c.l.b16 %v117
  %v382 = vunpack.c.l.b16 %v118
  %v383 = vunpack.c.l.b16 %v119
  %v384 = vunpack.c.l.b16 %v120
  %v385 = vunpack.c.l.b16 %v121
  %v386 = vunpack.c.l.b16 %v122
  %v387 = vunpack.c.l.b16 %v123
  %v388 = vunpack.c.l.b16 %v124
  %v389 = vunpack.c.l.b16 %v125
  %v390 = vunpack.c.l.b16 %v126
  %v391 = vunpack.c.l.b16 %v127
  %v392 = vunpack.c.l.b16 %v128
  %v393 = vunpack.c.l.b16 %v129
  %v394 = vunpack.c.l.b16 %v130
  %v395 = vunpack.c.l.b16 %v131
  %v396 = vunpack.c.l.b16 %v132
  %v397 = vunpack.c.l.b16 %v133
  %v398 = vunpack.c.l.b16 %v134
  %v399 = vunpack.c.l.b16 %v135
  %v400 = vunpack.c.l.b16 %v136
  %v401 = vunpack.c.l.b16 %v137
  %v402 = vunpack.c.l.b16 %v138
  %v403 = vunpack.c.l.b16 %v139
  %v404 = vpack.c.b16 %v277, %v276
  %v405 = vpack.c.b16 %v279, %v278
  %v406 = vpack.c.b16 %v281, %v280
  %v407 = vpack.c.b16 %v283, %v282
  %v408 = vpack.c.b16 %v285, %v284
  %v409 = vpack.c.b16 %v287, %v286
  %v410 = vpack.c.b16 %v289, %v288
  %v411 = vpack.c.b16 %v291, %v290
  %v412 = vpack.c.b16 %v293, %v292
  %v413 = vpack.c.b16 %v295, %v294
  %v414 = vpack.c.b16 %v297, %v296
  %v415 = vpack.c.b16 %v299, %v298
  %v416 = vpack.c.b16 %v301, %v300
  %v417 = vpack.c.b16 %v303, %v302
  %v418 = vpack.c.b16 %v305, %v304
  %v419 = vpack.c.b16 %v307, %v306
  %v420 = vpack.c.b16 %v309, %v308
  %v421 = vpack.c.b16 %v311, %v310
  %v422 = vpack.c.b16 %v313, %v312
  %v423 = vpack.c.b16 %v315, %v314
  %v424 = vpack.c.b16 %v317, %v316
  %v425 = vpack.c.b16 %v319, %v318
  %v426 = vpack.c.b16 %v321, %v320
  %v427 = vpack.c.b16 %v323, %v322
  %v428 = vpack.c.b16 %v325, %v324
  %v429 = vpack.c.b16 %v327, %v326
  %v430 = vpack.c.b16 %v329, %v328
  %v431 = vpack.c.b16 %v331, %v330
  %v432 = vpack.c.b16 %v333, %v332
  %v433 = vpack.c.b16 %v335, %v334
  %v434 = vpack.c.b16 %v337, %v336
  %v435 = vpack.c.b16 %v339, %v338
  %v436 = vpack.c.b16 %v341, %v340
  %v437 = vpack.c.b16 %v343, %v342
  %v438 = vpack.c.b16 %v345, %v344
  %v439 = vpack.c.b16 %v347, %v346
  %v440 = vpack.c.b16 %v349, %v348
  %v441 = vpack.c.b16 %v351, %v350
  %v442 = vpack.c.b16 %v353, %v352
  %v443 = vpack.c.b16 %v355, %v354
  %v444 = vpack.c.b16 %v357, %v356
  %v445 = vpack.c.b16 %v359, %v358
  %v446 = vpack.c.b16 %v361, %v360
  %v447 = vpack.c.b16 %v363, %v362
  %v448 = vpack.c.b16 %v365, %v364
  %v449 = vpack.c.b16 %v367, %v366
  %v450 = vpack.c.b16 %v369, %v368
  %v451 = vpack.c.b16 %v371, %v370
  %v452 = vpack.c.b16 %v373, %v372
  %v453 = vpack.c.b16 %v375, %v374
  %v454 = vpack.c.b16 %v377, %v376
  %v455 = vpack.c.b16 %v379, %v378
  %v456 = vpack.c.b16 %v381, %v380
  %v457 = vpack.c.b16 %v383, %v382
  %v458 = vpack.c.b16 %v385, %v384
  %v459 = vpack.c.b16 %v387, %v386
  %v460 = vpack.c.b16 %v389, %v388
  %v461 = vpack.c.b16 %v391, %v390
  %v462 = vpack.c.b16 %v393, %v392
  %v463 = vpack.c.b16 %v395, %v394
  %v464 = vpack.c.b16 %v397, %v396
  %v465 = vpack.c.b16 %v399, %v398
  %v466 = vpack.c.b16 %v401, %v400
  %v467 = vpack.c.b16 %v403, %v402
  %v476 = vunpack.c.l.b16 %v140
  %v477 = vunpack.c.l.b16 %v141
  %v478 = vunpack.c.l.b16 %v142
  %v479 = vunpack.c.l.b16 %v143
  %v480 = vunpack.c.l.b16 %v144
  %v481 = vunpack.c.l.b16 %v145
  %v482 = vunpack.c.l.b16 %v146
  %v483 = vunpack.c.l.b16 %v147
  %v484 = vpack.c.b16 %v477, %v476
  %v485 = vpack.c.b16 %v479, %v478
  %v486 = vpack.c.b16 %v481, %v480
  %v487 = vpack.c.b16 %v483, %v482
  %vm492 = vcmask 523264
  %v494 = vsel %vm492, %v404, 0
  %v497 = vsel %vm492, %v405, 0
  %v500 = vsel %vm492, %v406, 0
  %v503 = vsel %vm492, %v407, 0
  %v506 = vsel %vm492, %v408, 0
  %v509 = vsel %vm492, %v409, 0
  %v512 = vsel %vm492, %v410, 0
  %v515 = vsel %vm492, %v411, 0
  %v518 = vsel %vm492, %v412, 0
  %v521 = vsel %vm492, %v413, 0
  %v524 = vsel %vm492, %v414, 0
  %v527 = vsel %vm492, %v415, 0
  %v530 = vsel %vm492, %v416, 0
  %v533 = vsel %vm492, %v417, 0
  %v536 = vsel %vm492, %v418, 0
  %v539 = vsel %vm492, %v419, 0
  %v542 = vsel %vm492, %v420, 0
  %v545 = vsel %vm492, %v421, 0
  %v548 = vsel %vm492, %v422, 0
  %v551 = vsel %vm492, %v423, 0
  %v554 = vsel %vm492, %v424, 0
  %v557 = vsel %vm492, %v425, 0
  %v560 = vsel %vm492, %v426, 0
  %v563 = vsel %vm492, %v427, 0
  %v566 = vsel %vm492, %v428, 0
  %v569 = vsel %vm492, %v429, 0
  %v572 = vsel %vm492, %v430, 0
  %v575 = vsel %vm492, %v431, 0
  %v578 = vsel %vm492, %v432, 0
  %v581 = vsel %vm492, %v433, 0
  %v584 = vsel %vm492, %v434, 0
  %v587 = vsel %vm492, %v435, 0
  %v590 = vsel %vm492, %v436, 0
  %v593 = vsel %vm492, %v437, 0
  %v596 = vsel %vm492, %v438, 0
  %v599 = vsel %vm492, %v439, 0
  %v602 = vsel %vm492, %v440, 0
  %v605 = vsel %vm492, %v441, 0
  %v608 = vsel %vm492, %v442, 0
  %v611 = vsel %vm492, %v443, 0
  %v614 = vsel %vm492, %v444, 0
  %v617 = vsel %vm492, %v445, 0
  %v620 = vsel %vm492, %v446, 0
  %v623 = vsel %vm492, %v447, 0
  %v626 = vsel %vm492, %v448, 0
  %v629 = vsel %vm492, %v449, 0
  %v632 = vsel %vm492, %v450, 0
  %v635 = vsel %vm492, %v451, 0
  %v638 = vsel %vm492, %v452, 0
  %v641 = vsel %vm492, %v453, 0
  %v644 = vsel %vm492, %v454, 0
  %v647 = vsel %vm492, %v455, 0
  %v650 = vsel %vm492, %v456, 0
  %v653 = vsel %vm492, %v457, 0
  %v656 = vsel %vm492, %v458, 0
  %v659 = vsel %vm492, %v459, 0
  %v662 = vsel %vm492, %v460, 0
  %v665 = vsel %vm492, %v461, 0
  %v668 = vsel %vm492, %v462, 0
  %v671 = vsel %vm492, %v463, 0
  %v674 = vsel %vm492, %v464, 0
  %v677 = vsel %vm492, %v465, 0
  %v680 = vsel %vm492, %v466, 0
  %v683 = vsel %vm492, %v467, 0
  %685 = vmatprep.subr.bf16.mxu0 0
  %686 = vmatpush1.bf16.msra.mxu0 %v484
  %687 = vmatprep.subr.bf16.mxu0 0
  %688 = vmatpush1.bf16.msra.mxu0 %v485
  %689 = vmatprep.subr.bf16.mxu0 0
  %690 = vmatpush1.bf16.msra.mxu0 %v486
  %691 = vmatprep.subr.bf16.mxu0 0
  %692 = vmatpush1.bf16.msra.mxu0 %v487
  %693 = vmatprep.subr.bf16.mxu0 0
  %694 = vmatpush1.bf16.msra.mxu0 0
  %695 = vmatprep.subr.bf16.mxu0 0
  %696 = vmatpush1.bf16.msra.mxu0 0
  %697 = vmatprep.subr.bf16.mxu0 0
  %698 = vmatpush1.bf16.msra.mxu0 0
  %699 = vmatprep.subr.bf16.mxu0 0
  %700 = vmatpush1.bf16.msra.mxu0 0
  %701 = vmatprep.subr.bf16.mxu0 0
  %702 = vmatpush1.bf16.msra.mxu0 0
  %703 = vmatprep.subr.bf16.mxu0 0
  %704 = vmatpush1.bf16.msra.mxu0 0
  %705 = vmatprep.subr.bf16.mxu0 0
  %706 = vmatpush1.bf16.msra.mxu0 0
  %707 = vmatprep.subr.bf16.mxu0 0
  %708 = vmatpush1.bf16.msra.mxu0 0
  %709 = vmatprep.subr.bf16.mxu0 0
  %710 = vmatpush1.bf16.msra.mxu0 0
  %711 = vmatprep.subr.bf16.mxu0 0
  %712 = vmatpush1.bf16.msra.mxu0 0
  %713 = vmatprep.subr.bf16.mxu0 0
  %714 = vmatpush1.bf16.msra.mxu0 0
  %715 = vmatprep.subr.bf16.mxu0 0
  %716 = vmatpush1.bf16.msra.mxu0 0
  %717 = vmatprep.mubr.bf16.mxu0 0
  %718 = vmatmul.mubr.bf16.gmra.mrb[0].mxu0 %v494
  %v719 = vpop.f32.mrb[0].mxu0
  %v720 = vadd.f32 0.0, %v719
  %v721 = vpop.f32.mrb[0].mxu0
  %v722 = vpop.f32.mrb[0].mxu0
  %v723 = vadd.f32 0.0, %v722
  %v724 = vpop.f32.mrb[0].mxu0
  %725 = vmatprep.mubr.bf16.mxu0 0
  %726 = vmatmul.mubr.bf16.gmra.mrb[0].mxu0 %v497
  %v727 = vpop.f32.mrb[0].mxu0
  %v728 = vadd.f32 0.0, %v727
  %v729 = vpop.f32.mrb[0].mxu0
  %v730 = vpop.f32.mrb[0].mxu0
  %v731 = vadd.f32 0.0, %v730
  %v732 = vpop.f32.mrb[0].mxu0
  %733 = vmatprep.mubr.bf16.mxu0 0
  %734 = vmatmul.mubr.bf16.gmra.mrb[0].mxu0 %v500
  %v735 = vpop.f32.mrb[0].mxu0
  %v736 = vadd.f32 0.0, %v735
  %v737 = vpop.f32.mrb[0].mxu0
  %v738 = vpop.f32.mrb[0].mxu0
  %v739 = vadd.f32 0.0, %v738
  %v740 = vpop.f32.mrb[0].mxu0
  %741 = vmatprep.mubr.bf16.mxu0 0
  %742 = vmatmul.mubr.bf16.gmra.mrb[0].mxu0 %v503
  %v743 = vpop.f32.mrb[0].mxu0
  %v744 = vadd.f32 0.0, %v743
  %v745 = vpop.f32.mrb[0].mxu0
  %v746 = vpop.f32.mrb[0].mxu0
  %v747 = vadd.f32 0.0, %v746
  %v748 = vpop.f32.mrb[0].mxu0
  %749 = vmatprep.mubr.bf16.mxu0 0
  %750 = vmatmul.mubr.bf16.gmra.mrb[0].mxu0 %v506
  %v751 = vpop.f32.mrb[0].mxu0
  %v752 = vadd.f32 0.0, %v751
  %v753 = vpop.f32.mrb[0].mxu0
  %v754 = vpop.f32.mrb[0].mxu0
  %v755 = vadd.f32 0.0, %v754
  %v756 = vpop.f32.mrb[0].mxu0
  %757 = vmatprep.mubr.bf16.mxu0 0
  %758 = vmatmul.mubr.bf16.gmra.mrb[0].mxu0 %v509
  %v759 = vpop.f32.mrb[0].mxu0
  %v760 = vadd.f32 0.0, %v759
  %v761 = vpop.f32.mrb[0].mxu0
  %v762 = vpop.f32.mrb[0].mxu0
  %v763 = vadd.f32 0.0, %v762
  %v764 = vpop.f32.mrb[0].mxu0
  %765 = vmatprep.mubr.bf16.mxu0 0
  %766 = vmatmul.mubr.bf16.gmra.mrb[0].mxu0 %v512
  %v767 = vpop.f32.mrb[0].mxu0
  %v768 = vadd.f32 0.0, %v767
  %v769 = vpop.f32.mrb[0].mxu0
  %v770 = vpop.f32.mrb[0].mxu0
  %v771 = vadd.f32 0.0, %v770
  %v772 = vpop.f32.mrb[0].mxu0
  %773 = vmatprep.mubr.bf16.mxu0 0
  %774 = vmatmul.mubr.bf16.gmra.mrb[0].mxu0 %v515
  %v775 = vpop.f32.mrb[0].mxu0
  %v776 = vadd.f32 0.0, %v775
  %v777 = vpop.f32.mrb[0].mxu0
  %v778 = vpop.f32.mrb[0].mxu0
  %v779 = vadd.f32 0.0, %v778
  %v780 = vpop.f32.mrb[0].mxu0
  %781 = vmatprep.mubr.bf16.mxu0 0
  %782 = vmatmul.mubr.bf16.gmra.mrb[0].mxu0 %v518
  %v783 = vpop.f32.mrb[0].mxu0
  %v784 = vadd.f32 0.0, %v783
  %v785 = vpop.f32.mrb[0].mxu0
  %v786 = vpop.f32.mrb[0].mxu0
  %v787 = vadd.f32 0.0, %v786
  %v788 = vpop.f32.mrb[0].mxu0
  %789 = vmatprep.mubr.bf16.mxu0 0
  %790 = vmatmul.mubr.bf16.gmra.mrb[0].mxu0 %v521
  %v791 = vpop.f32.mrb[0].mxu0
  %v792 = vadd.f32 0.0, %v791
  %v793 = vpop.f32.mrb[0].mxu0
  %v794 = vpop.f32.mrb[0].mxu0
  %v795 = vadd.f32 0.0, %v794
  %v796 = vpop.f32.mrb[0].mxu0
  %797 = vmatprep.mubr.bf16.mxu0 0
  %798 = vmatmul.mubr.bf16.gmra.mrb[0].mxu0 %v524
  %v799 = vpop.f32.mrb[0].mxu0
  %v800 = vadd.f32 0.0, %v799
  %v801 = vpop.f32.mrb[0].mxu0
  %v802 = vpop.f32.mrb[0].mxu0
  %v803 = vadd.f32 0.0, %v802
  %v804 = vpop.f32.mrb[0].mxu0
  %805 = vmatprep.mubr.bf16.mxu0 0
  %806 = vmatmul.mubr.bf16.gmra.mrb[0].mxu0 %v527
  %v807 = vpop.f32.mrb[0].mxu0
  %v808 = vadd.f32 0.0, %v807
  %v809 = vpop.f32.mrb[0].mxu0
  %v810 = vpop.f32.mrb[0].mxu0
  %v811 = vadd.f32 0.0, %v810
  %v812 = vpop.f32.mrb[0].mxu0
  %813 = vmatprep.mubr.bf16.mxu0 0
  %814 = vmatmul.mubr.bf16.gmra.mrb[0].mxu0 %v530
  %v815 = vpop.f32.mrb[0].mxu0
  %v816 = vadd.f32 0.0, %v815
  %v817 = vpop.f32.mrb[0].mxu0
  %v818 = vpop.f32.mrb[0].mxu0
  %v819 = vadd.f32 0.0, %v818
  %v820 = vpop.f32.mrb[0].mxu0
  %821 = vmatprep.mubr.bf16.mxu0 0
  %822 = vmatmul.mubr.bf16.gmra.mrb[0].mxu0 %v533
  %v823 = vpop.f32.mrb[0].mxu0
  %v824 = vadd.f32 0.0, %v823
  %v825 = vpop.f32.mrb[0].mxu0
  %v826 = vpop.f32.mrb[0].mxu0
  %v827 = vadd.f32 0.0, %v826
  %v828 = vpop.f32.mrb[0].mxu0
  %829 = vmatprep.mubr.bf16.mxu0 0
  %830 = vmatmul.mubr.bf16.gmra.mrb[0].mxu0 %v536
  %v831 = vpop.f32.mrb[0].mxu0
  %v832 = vadd.f32 0.0, %v831
  %v833 = vpop.f32.mrb[0].mxu0
  %v834 = vpop.f32.mrb[0].mxu0
  %v835 = vadd.f32 0.0, %v834
  %v836 = vpop.f32.mrb[0].mxu0
  %837 = vmatprep.mubr.bf16.mxu0 0
  %838 = vmatmul.mubr.bf16.gmra.mrb[0].mxu0 %v539
  %v839 = vpop.f32.mrb[0].mxu0
  %v840 = vadd.f32 0.0, %v839
  %v841 = vpop.f32.mrb[0].mxu0
  %v842 = vpop.f32.mrb[0].mxu0
  %v843 = vadd.f32 0.0, %v842
  %v844 = vpop.f32.mrb[0].mxu0
  %845 = vmatprep.mubr.bf16.mxu0 0
  %846 = vmatmul.mubr.bf16.gmra.mrb[0].mxu0 %v542
  %v847 = vpop.f32.mrb[0].mxu0
  %v848 = vadd.f32 0.0, %v847
  %v849 = vpop.f32.mrb[0].mxu0
  %v850 = vpop.f32.mrb[0].mxu0
  %v851 = vadd.f32 0.0, %v850
  %v852 = vpop.f32.mrb[0].mxu0
  %853 = vmatprep.mubr.bf16.mxu0 0
  %854 = vmatmul.mubr.bf16.gmra.mrb[0].mxu0 %v545
  %v855 = vpop.f32.mrb[0].mxu0
  %v856 = vadd.f32 0.0, %v855
  %v857 = vpop.f32.mrb[0].mxu0
  %v858 = vpop.f32.mrb[0].mxu0
  %v859 = vadd.f32 0.0, %v858
  %v860 = vpop.f32.mrb[0].mxu0
  %861 = vmatprep.mubr.bf16.mxu0 0
  %862 = vmatmul.mubr.bf16.gmra.mrb[0].mxu0 %v548
  %v863 = vpop.f32.mrb[0].mxu0
  %v864 = vadd.f32 0.0, %v863
  %v865 = vpop.f32.mrb[0].mxu0
  %v866 = vpop.f32.mrb[0].mxu0
  %v867 = vadd.f32 0.0, %v866
  %v868 = vpop.f32.mrb[0].mxu0
  %869 = vmatprep.mubr.bf16.mxu0 0
  %870 = vmatmul.mubr.bf16.gmra.mrb[0].mxu0 %v551
  %v871 = vpop.f32.mrb[0].mxu0
  %v872 = vadd.f32 0.0, %v871
  %v873 = vpop.f32.mrb[0].mxu0
  %v874 = vpop.f32.mrb[0].mxu0
  %v875 = vadd.f32 0.0, %v874
  %v876 = vpop.f32.mrb[0].mxu0
  %877 = vmatprep.mubr.bf16.mxu0 0
  %878 = vmatmul.mubr.bf16.gmra.mrb[0].mxu0 %v554
  %v879 = vpop.f32.mrb[0].mxu0
  %v880 = vadd.f32 0.0, %v879
  %v881 = vpop.f32.mrb[0].mxu0
  %v882 = vpop.f32.mrb[0].mxu0
  %v883 = vadd.f32 0.0, %v882
  %v884 = vpop.f32.mrb[0].mxu0
  %885 = vmatprep.mubr.bf16.mxu0 0
  %886 = vmatmul.mubr.bf16.gmra.mrb[0].mxu0 %v557
  %v887 = vpop.f32.mrb[0].mxu0
  %v888 = vadd.f32 0.0, %v887
  %v889 = vpop.f32.mrb[0].mxu0
  %v890 = vpop.f32.mrb[0].mxu0
  %v891 = vadd.f32 0.0, %v890
  %v892 = vpop.f32.mrb[0].mxu0
  %893 = vmatprep.mubr.bf16.mxu0 0
  %894 = vmatmul.mubr.bf16.gmra.mrb[0].mxu0 %v560
  %v895 = vpop.f32.mrb[0].mxu0
  %v896 = vadd.f32 0.0, %v895
  %v897 = vpop.f32.mrb[0].mxu0
  %v898 = vpop.f32.mrb[0].mxu0
  %v899 = vadd.f32 0.0, %v898
  %v900 = vpop.f32.mrb[0].mxu0
  %901 = vmatprep.mubr.bf16.mxu0 0
  %902 = vmatmul.mubr.bf16.gmra.mrb[0].mxu0 %v563
  %v903 = vpop.f32.mrb[0].mxu0
  %v904 = vadd.f32 0.0, %v903
  %v905 = vpop.f32.mrb[0].mxu0
  %v906 = vpop.f32.mrb[0].mxu0
  %v907 = vadd.f32 0.0, %v906
  %v908 = vpop.f32.mrb[0].mxu0
  %909 = vmatprep.mubr.bf16.mxu0 0
  %910 = vmatmul.mubr.bf16.gmra.mrb[0].mxu0 %v566
  %v911 = vpop.f32.mrb[0].mxu0
  %v912 = vadd.f32 0.0, %v911
  %v913 = vpop.f32.mrb[0].mxu0
  %v914 = vpop.f32.mrb[0].mxu0
  %v915 = vadd.f32 0.0, %v914
  %v916 = vpop.f32.mrb[0].mxu0
  %917 = vmatprep.mubr.bf16.mxu0 0
  %918 = vmatmul.mubr.bf16.gmra.mrb[0].mxu0 %v569
  %v919 = vpop.f32.mrb[0].mxu0
  %v920 = vadd.f32 0.0, %v919
  %v921 = vpop.f32.mrb[0].mxu0
  %v922 = vpop.f32.mrb[0].mxu0
  %v923 = vadd.f32 0.0, %v922
  %v924 = vpop.f32.mrb[0].mxu0
  %925 = vmatprep.mubr.bf16.mxu0 0
  %926 = vmatmul.mubr.bf16.gmra.mrb[0].mxu0 %v572
  %v927 = vpop.f32.mrb[0].mxu0
  %v928 = vadd.f32 0.0, %v927
  %v929 = vpop.f32.mrb[0].mxu0
  %v930 = vpop.f32.mrb[0].mxu0
  %v931 = vadd.f32 0.0, %v930
  %v932 = vpop.f32.mrb[0].mxu0
  %933 = vmatprep.mubr.bf16.mxu0 0
  %934 = vmatmul.mubr.bf16.gmra.mrb[0].mxu0 %v575
  %v935 = vpop.f32.mrb[0].mxu0
  %v936 = vadd.f32 0.0, %v935
  %v937 = vpop.f32.mrb[0].mxu0
  %v938 = vpop.f32.mrb[0].mxu0
  %v939 = vadd.f32 0.0, %v938
  %v940 = vpop.f32.mrb[0].mxu0
  %941 = vmatprep.mubr.bf16.mxu0 0
  %942 = vmatmul.mubr.bf16.gmra.mrb[0].mxu0 %v578
  %v943 = vpop.f32.mrb[0].mxu0
  %v944 = vadd.f32 0.0, %v943
  %v945 = vpop.f32.mrb[0].mxu0
  %v946 = vpop.f32.mrb[0].mxu0
  %v947 = vadd.f32 0.0, %v946
  %v948 = vpop.f32.mrb[0].mxu0
  %949 = vmatprep.mubr.bf16.mxu0 0
  %950 = vmatmul.mubr.bf16.gmra.mrb[0].mxu0 %v581
  %v951 = vpop.f32.mrb[0].mxu0
  %v952 = vadd.f32 0.0, %v951
  %v953 = vpop.f32.mrb[0].mxu0
  %v954 = vpop.f32.mrb[0].mxu0
  %v955 = vadd.f32 0.0, %v954
  %v956 = vpop.f32.mrb[0].mxu0
  %957 = vmatprep.mubr.bf16.mxu0 0
  %958 = vmatmul.mubr.bf16.gmra.mrb[0].mxu0 %v584
  %v959 = vpop.f32.mrb[0].mxu0
  %v960 = vadd.f32 0.0, %v959
  %v961 = vpop.f32.mrb[0].mxu0
  %v962 = vpop.f32.mrb[0].mxu0
  %v963 = vadd.f32 0.0, %v962
  %v964 = vpop.f32.mrb[0].mxu0
  %965 = vmatprep.mubr.bf16.mxu0 0
  %966 = vmatmul.mubr.bf16.gmra.mrb[0].mxu0 %v587
  %v967 = vpop.f32.mrb[0].mxu0
  %v968 = vadd.f32 0.0, %v967
  %v969 = vpop.f32.mrb[0].mxu0
  %v970 = vpop.f32.mrb[0].mxu0
  %v971 = vadd.f32 0.0, %v970
  %v972 = vpop.f32.mrb[0].mxu0
  %973 = vmatprep.mubr.bf16.mxu0 0
  %974 = vmatmul.mubr.bf16.gmra.mrb[0].mxu0 %v590
  %v975 = vpop.f32.mrb[0].mxu0
  %v976 = vadd.f32 0.0, %v975
  %v977 = vpop.f32.mrb[0].mxu0
  %v978 = vpop.f32.mrb[0].mxu0
  %v979 = vadd.f32 0.0, %v978
  %v980 = vpop.f32.mrb[0].mxu0
  %981 = vmatprep.mubr.bf16.mxu0 0
  %982 = vmatmul.mubr.bf16.gmra.mrb[0].mxu0 %v593
  %v983 = vpop.f32.mrb[0].mxu0
  %v984 = vadd.f32 0.0, %v983
  %v985 = vpop.f32.mrb[0].mxu0
  %v986 = vpop.f32.mrb[0].mxu0
  %v987 = vadd.f32 0.0, %v986
  %v988 = vpop.f32.mrb[0].mxu0
  %989 = vmatprep.mubr.bf16.mxu0 0
  %990 = vmatmul.mubr.bf16.gmra.mrb[0].mxu0 %v596
  %v991 = vpop.f32.mrb[0].mxu0
  %v992 = vadd.f32 0.0, %v991
  %v993 = vpop.f32.mrb[0].mxu0
  %v994 = vpop.f32.mrb[0].mxu0
  %v995 = vadd.f32 0.0, %v994
  %v996 = vpop.f32.mrb[0].mxu0
  %997 = vmatprep.mubr.bf16.mxu0 0
  %998 = vmatmul.mubr.bf16.gmra.mrb[0].mxu0 %v599
  %v999 = vpop.f32.mrb[0].mxu0
  %v1000 = vadd.f32 0.0, %v999
  %v1001 = vpop.f32.mrb[0].mxu0
  %v1002 = vpop.f32.mrb[0].mxu0
  %v1003 = vadd.f32 0.0, %v1002
  %v1004 = vpop.f32.mrb[0].mxu0
  %1005 = vmatprep.mubr.bf16.mxu0 0
  %1006 = vmatmul.mubr.bf16.gmra.mrb[0].mxu0 %v602
  %v1007 = vpop.f32.mrb[0].mxu0
  %v1008 = vadd.f32 0.0, %v1007
  %v1009 = vpop.f32.mrb[0].mxu0
  %v1010 = vpop.f32.mrb[0].mxu0
  %v1011 = vadd.f32 0.0, %v1010
  %v1012 = vpop.f32.mrb[0].mxu0
  %1013 = vmatprep.mubr.bf16.mxu0 0
  %1014 = vmatmul.mubr.bf16.gmra.mrb[0].mxu0 %v605
  %v1015 = vpop.f32.mrb[0].mxu0
  %v1016 = vadd.f32 0.0, %v1015
  %v1017 = vpop.f32.mrb[0].mxu0
  %v1018 = vpop.f32.mrb[0].mxu0
  %v1019 = vadd.f32 0.0, %v1018
  %v1020 = vpop.f32.mrb[0].mxu0
  %1021 = vmatprep.mubr.bf16.mxu0 0
  %1022 = vmatmul.mubr.bf16.gmra.mrb[0].mxu0 %v608
  %v1023 = vpop.f32.mrb[0].mxu0
  %v1024 = vadd.f32 0.0, %v1023
  %v1025 = vpop.f32.mrb[0].mxu0
  %v1026 = vpop.f32.mrb[0].mxu0
  %v1027 = vadd.f32 0.0, %v1026
  %v1028 = vpop.f32.mrb[0].mxu0
  %1029 = vmatprep.mubr.bf16.mxu0 0
  %1030 = vmatmul.mubr.bf16.gmra.mrb[0].mxu0 %v611
  %v1031 = vpop.f32.mrb[0].mxu0
  %v1032 = vadd.f32 0.0, %v1031
  %v1033 = vpop.f32.mrb[0].mxu0
  %v1034 = vpop.f32.mrb[0].mxu0
  %v1035 = vadd.f32 0.0, %v1034
  %v1036 = vpop.f32.mrb[0].mxu0
  %1037 = vmatprep.mubr.bf16.mxu0 0
  %1038 = vmatmul.mubr.bf16.gmra.mrb[0].mxu0 %v614
  %v1039 = vpop.f32.mrb[0].mxu0
  %v1040 = vadd.f32 0.0, %v1039
  %v1041 = vpop.f32.mrb[0].mxu0
  %v1042 = vpop.f32.mrb[0].mxu0
  %v1043 = vadd.f32 0.0, %v1042
  %v1044 = vpop.f32.mrb[0].mxu0
  %1045 = vmatprep.mubr.bf16.mxu0 0
  %1046 = vmatmul.mubr.bf16.gmra.mrb[0].mxu0 %v617
  %v1047 = vpop.f32.mrb[0].mxu0
  %v1048 = vadd.f32 0.0, %v1047
  %v1049 = vpop.f32.mrb[0].mxu0
  %v1050 = vpop.f32.mrb[0].mxu0
  %v1051 = vadd.f32 0.0, %v1050
  %v1052 = vpop.f32.mrb[0].mxu0
  %1053 = vmatprep.mubr.bf16.mxu0 0
  %1054 = vmatmul.mubr.bf16.gmra.mrb[0].mxu0 %v620
  %v1055 = vpop.f32.mrb[0].mxu0
  %v1056 = vadd.f32 0.0, %v1055
  %v1057 = vpop.f32.mrb[0].mxu0
  %v1058 = vpop.f32.mrb[0].mxu0
  %v1059 = vadd.f32 0.0, %v1058
  %v1060 = vpop.f32.mrb[0].mxu0
  %1061 = vmatprep.mubr.bf16.mxu0 0
  %1062 = vmatmul.mubr.bf16.gmra.mrb[0].mxu0 %v623
  %v1063 = vpop.f32.mrb[0].mxu0
  %v1064 = vadd.f32 0.0, %v1063
  %v1065 = vpop.f32.mrb[0].mxu0
  %v1066 = vpop.f32.mrb[0].mxu0
  %v1067 = vadd.f32 0.0, %v1066
  %v1068 = vpop.f32.mrb[0].mxu0
  %1069 = vmatprep.mubr.bf16.mxu0 0
  %1070 = vmatmul.mubr.bf16.gmra.mrb[0].mxu0 %v626
  %v1071 = vpop.f32.mrb[0].mxu0
  %v1072 = vadd.f32 0.0, %v1071
  %v1073 = vpop.f32.mrb[0].mxu0
  %v1074 = vpop.f32.mrb[0].mxu0
  %v1075 = vadd.f32 0.0, %v1074
  %v1076 = vpop.f32.mrb[0].mxu0
  %1077 = vmatprep.mubr.bf16.mxu0 0
  %1078 = vmatmul.mubr.bf16.gmra.mrb[0].mxu0 %v629
  %v1079 = vpop.f32.mrb[0].mxu0
  %v1080 = vadd.f32 0.0, %v1079
  %v1081 = vpop.f32.mrb[0].mxu0
  %v1082 = vpop.f32.mrb[0].mxu0
  %v1083 = vadd.f32 0.0, %v1082
  %v1084 = vpop.f32.mrb[0].mxu0
  %1085 = vmatprep.mubr.bf16.mxu0 0
  %1086 = vmatmul.mubr.bf16.gmra.mrb[0].mxu0 %v632
  %v1087 = vpop.f32.mrb[0].mxu0
  %v1088 = vadd.f32 0.0, %v1087
  %v1089 = vpop.f32.mrb[0].mxu0
  %v1090 = vpop.f32.mrb[0].mxu0
  %v1091 = vadd.f32 0.0, %v1090
  %v1092 = vpop.f32.mrb[0].mxu0
  %1093 = vmatprep.mubr.bf16.mxu0 0
  %1094 = vmatmul.mubr.bf16.gmra.mrb[0].mxu0 %v635
  %v1095 = vpop.f32.mrb[0].mxu0
  %v1096 = vadd.f32 0.0, %v1095
  %v1097 = vpop.f32.mrb[0].mxu0
  %v1098 = vpop.f32.mrb[0].mxu0
  %v1099 = vadd.f32 0.0, %v1098
  %v1100 = vpop.f32.mrb[0].mxu0
  %1101 = vmatprep.mubr.bf16.mxu0 0
  %1102 = vmatmul.mubr.bf16.gmra.mrb[0].mxu0 %v638
  %v1103 = vpop.f32.mrb[0].mxu0
  %v1104 = vadd.f32 0.0, %v1103
  %v1105 = vpop.f32.mrb[0].mxu0
  %v1106 = vpop.f32.mrb[0].mxu0
  %v1107 = vadd.f32 0.0, %v1106
  %v1108 = vpop.f32.mrb[0].mxu0
  %1109 = vmatprep.mubr.bf16.mxu0 0
  %1110 = vmatmul.mubr.bf16.gmra.mrb[0].mxu0 %v641
  %v1111 = vpop.f32.mrb[0].mxu0
  %v1112 = vadd.f32 0.0, %v1111
  %v1113 = vpop.f32.mrb[0].mxu0
  %v1114 = vpop.f32.mrb[0].mxu0
  %v1115 = vadd.f32 0.0, %v1114
  %v1116 = vpop.f32.mrb[0].mxu0
  %1117 = vmatprep.mubr.bf16.mxu0 0
  %1118 = vmatmul.mubr.bf16.gmra.mrb[0].mxu0 %v644
  %v1119 = vpop.f32.mrb[0].mxu0
  %v1120 = vadd.f32 0.0, %v1119
  %v1121 = vpop.f32.mrb[0].mxu0
  %v1122 = vpop.f32.mrb[0].mxu0
  %v1123 = vadd.f32 0.0, %v1122
  %v1124 = vpop.f32.mrb[0].mxu0
  %1125 = vmatprep.mubr.bf16.mxu0 0
  %1126 = vmatmul.mubr.bf16.gmra.mrb[0].mxu0 %v647
  %v1127 = vpop.f32.mrb[0].mxu0
  %v1128 = vadd.f32 0.0, %v1127
  %v1129 = vpop.f32.mrb[0].mxu0
  %v1130 = vpop.f32.mrb[0].mxu0
  %v1131 = vadd.f32 0.0, %v1130
  %v1132 = vpop.f32.mrb[0].mxu0
  %1133 = vmatprep.mubr.bf16.mxu0 0
  %1134 = vmatmul.mubr.bf16.gmra.mrb[0].mxu0 %v650
  %v1135 = vpop.f32.mrb[0].mxu0
  %v1136 = vadd.f32 0.0, %v1135
  %v1137 = vpop.f32.mrb[0].mxu0
  %v1138 = vpop.f32.mrb[0].mxu0
  %v1139 = vadd.f32 0.0, %v1138
  %v1140 = vpop.f32.mrb[0].mxu0
  %1141 = vmatprep.mubr.bf16.mxu0 0
  %1142 = vmatmul.mubr.bf16.gmra.mrb[0].mxu0 %v653
  %v1143 = vpop.f32.mrb[0].mxu0
  %v1144 = vadd.f32 0.0, %v1143
  %v1145 = vpop.f32.mrb[0].mxu0
  %v1146 = vpop.f32.mrb[0].mxu0
  %v1147 = vadd.f32 0.0, %v1146
  %v1148 = vpop.f32.mrb[0].mxu0
  %1149 = vmatprep.mubr.bf16.mxu0 0
  %1150 = vmatmul.mubr.bf16.gmra.mrb[0].mxu0 %v656
  %v1151 = vpop.f32.mrb[0].mxu0
  %v1152 = vadd.f32 0.0, %v1151
  %v1153 = vpop.f32.mrb[0].mxu0
  %v1154 = vpop.f32.mrb[0].mxu0
  %v1155 = vadd.f32 0.0, %v1154
  %v1156 = vpop.f32.mrb[0].mxu0
  %1157 = vmatprep.mubr.bf16.mxu0 0
  %1158 = vmatmul.mubr.bf16.gmra.mrb[0].mxu0 %v659
  %v1159 = vpop.f32.mrb[0].mxu0
  %v1160 = vadd.f32 0.0, %v1159
  %v1161 = vpop.f32.mrb[0].mxu0
  %v1162 = vpop.f32.mrb[0].mxu0
  %v1163 = vadd.f32 0.0, %v1162
  %v1164 = vpop.f32.mrb[0].mxu0
  %1165 = vmatprep.mubr.bf16.mxu0 0
  %1166 = vmatmul.mubr.bf16.gmra.mrb[0].mxu0 %v662
  %v1167 = vpop.f32.mrb[0].mxu0
  %v1168 = vadd.f32 0.0, %v1167
  %v1169 = vpop.f32.mrb[0].mxu0
  %v1170 = vpop.f32.mrb[0].mxu0
  %v1171 = vadd.f32 0.0, %v1170
  %v1172 = vpop.f32.mrb[0].mxu0
  %1173 = vmatprep.mubr.bf16.mxu0 0
  %1174 = vmatmul.mubr.bf16.gmra.mrb[0].mxu0 %v665
  %v1175 = vpop.f32.mrb[0].mxu0
  %v1176 = vadd.f32 0.0, %v1175
  %v1177 = vpop.f32.mrb[0].mxu0
  %v1178 = vpop.f32.mrb[0].mxu0
  %v1179 = vadd.f32 0.0, %v1178
  %v1180 = vpop.f32.mrb[0].mxu0
  %1181 = vmatprep.mubr.bf16.mxu0 0
  %1182 = vmatmul.mubr.bf16.gmra.mrb[0].mxu0 %v668
  %v1183 = vpop.f32.mrb[0].mxu0
  %v1184 = vadd.f32 0.0, %v1183
  %v1185 = vpop.f32.mrb[0].mxu0
  %v1186 = vpop.f32.mrb[0].mxu0
  %v1187 = vadd.f32 0.0, %v1186
  %v1188 = vpop.f32.mrb[0].mxu0
  %1189 = vmatprep.mubr.bf16.mxu0 0
  %1190 = vmatmul.mubr.bf16.gmra.mrb[0].mxu0 %v671
  %v1191 = vpop.f32.mrb[0].mxu0
  %v1192 = vadd.f32 0.0, %v1191
  %v1193 = vpop.f32.mrb[0].mxu0
  %v1194 = vpop.f32.mrb[0].mxu0
  %v1195 = vadd.f32 0.0, %v1194
  %v1196 = vpop.f32.mrb[0].mxu0
  %1197 = vmatprep.mubr.bf16.mxu0 0
  %1198 = vmatmul.mubr.bf16.gmra.mrb[0].mxu0 %v674
  %v1199 = vpop.f32.mrb[0].mxu0
  %v1200 = vadd.f32 0.0, %v1199
  %v1201 = vpop.f32.mrb[0].mxu0
  %v1202 = vpop.f32.mrb[0].mxu0
  %v1203 = vadd.f32 0.0, %v1202
  %v1204 = vpop.f32.mrb[0].mxu0
  %1205 = vmatprep.mubr.bf16.mxu0 0
  %1206 = vmatmul.mubr.bf16.gmra.mrb[0].mxu0 %v677
  %v1207 = vpop.f32.mrb[0].mxu0
  %v1208 = vadd.f32 0.0, %v1207
  %v1209 = vpop.f32.mrb[0].mxu0
  %v1210 = vpop.f32.mrb[0].mxu0
  %v1211 = vadd.f32 0.0, %v1210
  %v1212 = vpop.f32.mrb[0].mxu0
  %1213 = vmatprep.mubr.bf16.mxu0 0
  %1214 = vmatmul.mubr.bf16.gmra.mrb[0].mxu0 %v680
  %v1215 = vpop.f32.mrb[0].mxu0
  %v1216 = vadd.f32 0.0, %v1215
  %v1217 = vpop.f32.mrb[0].mxu0
  %v1218 = vpop.f32.mrb[0].mxu0
  %v1219 = vadd.f32 0.0, %v1218
  %v1220 = vpop.f32.mrb[0].mxu0
  %1221 = vmatprep.mubr.bf16.mxu0 0
  %1222 = vmatmul.mubr.bf16.gmra.mrb[0].mxu0 %v683
  %v1223 = vpop.f32.mrb[0].mxu0
  %v1224 = vadd.f32 0.0, %v1223
  %v1225 = vpop.f32.mrb[0].mxu0
  %v1226 = vpop.f32.mrb[0].mxu0
  %v1227 = vadd.f32 0.0, %v1226
  %v1228 = vpop.f32.mrb[0].mxu0
  %1229 = vdwg.mxu0
  %v1230 = vpack.c.bf16 %v723, %v720
  %v1231 = vpack.c.bf16 %v731, %v728
  %v1232 = vpack.c.bf16 %v739, %v736
  %v1233 = vpack.c.bf16 %v747, %v744
  %v1234 = vpack.c.bf16 %v755, %v752
  %v1235 = vpack.c.bf16 %v763, %v760
  %v1236 = vpack.c.bf16 %v771, %v768
  %v1237 = vpack.c.bf16 %v779, %v776
  %v1238 = vpack.c.bf16 %v787, %v784
  %v1239 = vpack.c.bf16 %v795, %v792
  %v1240 = vpack.c.bf16 %v803, %v800
  %v1241 = vpack.c.bf16 %v811, %v808
  %v1242 = vpack.c.bf16 %v819, %v816
  %v1243 = vpack.c.bf16 %v827, %v824
  %v1244 = vpack.c.bf16 %v835, %v832
  %v1245 = vpack.c.bf16 %v843, %v840
  %v1246 = vpack.c.bf16 %v851, %v848
  %v1247 = vpack.c.bf16 %v859, %v856
  %v1248 = vpack.c.bf16 %v867, %v864
  %v1249 = vpack.c.bf16 %v875, %v872
  %v1250 = vpack.c.bf16 %v883, %v880
  %v1251 = vpack.c.bf16 %v891, %v888
  %v1252 = vpack.c.bf16 %v899, %v896
  %v1253 = vpack.c.bf16 %v907, %v904
  %v1254 = vpack.c.bf16 %v915, %v912
  %v1255 = vpack.c.bf16 %v923, %v920
  %v1256 = vpack.c.bf16 %v931, %v928
  %v1257 = vpack.c.bf16 %v939, %v936
  %v1258 = vpack.c.bf16 %v947, %v944
  %v1259 = vpack.c.bf16 %v955, %v952
  %v1260 = vpack.c.bf16 %v963, %v960
  %v1261 = vpack.c.bf16 %v971, %v968
  %v1262 = vpack.c.bf16 %v979, %v976
  %v1263 = vpack.c.bf16 %v987, %v984
  %v1264 = vpack.c.bf16 %v995, %v992
  %v1265 = vpack.c.bf16 %v1003, %v1000
  %v1266 = vpack.c.bf16 %v1011, %v1008
  %v1267 = vpack.c.bf16 %v1019, %v1016
  %v1268 = vpack.c.bf16 %v1027, %v1024
  %v1269 = vpack.c.bf16 %v1035, %v1032
  %v1270 = vpack.c.bf16 %v1043, %v1040
  %v1271 = vpack.c.bf16 %v1051, %v1048
  %v1272 = vpack.c.bf16 %v1059, %v1056
  %v1273 = vpack.c.bf16 %v1067, %v1064
  %v1274 = vpack.c.bf16 %v1075, %v1072
  %v1275 = vpack.c.bf16 %v1083, %v1080
  %v1276 = vpack.c.bf16 %v1091, %v1088
  %v1277 = vpack.c.bf16 %v1099, %v1096
  %v1278 = vpack.c.bf16 %v1107, %v1104
  %v1279 = vpack.c.bf16 %v1115, %v1112
  %v1280 = vpack.c.bf16 %v1123, %v1120
  %v1281 = vpack.c.bf16 %v1131, %v1128
  %v1282 = vpack.c.bf16 %v1139, %v1136
  %v1283 = vpack.c.bf16 %v1147, %v1144
  %v1284 = vpack.c.bf16 %v1155, %v1152
  %v1285 = vpack.c.bf16 %v1163, %v1160
  %v1286 = vpack.c.bf16 %v1171, %v1168
  %v1287 = vpack.c.bf16 %v1179, %v1176
  %v1288 = vpack.c.bf16 %v1187, %v1184
  %v1289 = vpack.c.bf16 %v1195, %v1192
  %v1290 = vpack.c.bf16 %v1203, %v1200
  %v1291 = vpack.c.bf16 %v1211, %v1208
  %v1292 = vpack.c.bf16 %v1219, %v1216
  %v1293 = vpack.c.bf16 %v1227, %v1224
  %v1358 = vunpack.c.l.b16 %v1230
  %v1359 = vunpack.c.h.b16 %v1230
  %v1360 = vunpack.c.l.b16 %v1231
  %v1361 = vunpack.c.h.b16 %v1231
  %v1362 = vunpack.c.l.b16 %v1232
  %v1363 = vunpack.c.h.b16 %v1232
  %v1364 = vunpack.c.l.b16 %v1233
  %v1365 = vunpack.c.h.b16 %v1233
  %v1366 = vunpack.c.l.b16 %v1234
  %v1367 = vunpack.c.h.b16 %v1234
  %v1368 = vunpack.c.l.b16 %v1235
  %v1369 = vunpack.c.h.b16 %v1235
  %v1370 = vunpack.c.l.b16 %v1236
  %v1371 = vunpack.c.h.b16 %v1236
  %v1372 = vunpack.c.l.b16 %v1237
  %v1373 = vunpack.c.h.b16 %v1237
  %v1374 = vunpack.c.l.b16 %v1238
  %v1375 = vunpack.c.h.b16 %v1238
  %v1376 = vunpack.c.l.b16 %v1239
  %v1377 = vunpack.c.h.b16 %v1239
  %v1378 = vunpack.c.l.b16 %v1240
  %v1379 = vunpack.c.h.b16 %v1240
  %v1380 = vunpack.c.l.b16 %v1241
  %v1381 = vunpack.c.h.b16 %v1241
  %v1382 = vunpack.c.l.b16 %v1242
  %v1383 = vunpack.c.h.b16 %v1242
  %v1384 = vunpack.c.l.b16 %v1243
  %v1385 = vunpack.c.h.b16 %v1243
  %v1386 = vunpack.c.l.b16 %v1244
  %v1387 = vunpack.c.h.b16 %v1244
  %v1388 = vunpack.c.l.b16 %v1245
  %v1389 = vunpack.c.h.b16 %v1245
  %v1390 = vunpack.c.l.b16 %v1246
  %v1391 = vunpack.c.h.b16 %v1246
  %v1392 = vunpack.c.l.b16 %v1247
  %v1393 = vunpack.c.h.b16 %v1247
  %v1394 = vunpack.c.l.b16 %v1248
  %v1395 = vunpack.c.h.b16 %v1248
  %v1396 = vunpack.c.l.b16 %v1249
  %v1397 = vunpack.c.h.b16 %v1249
  %v1398 = vunpack.c.l.b16 %v1250
  %v1399 = vunpack.c.h.b16 %v1250
  %v1400 = vunpack.c.l.b16 %v1251
  %v1401 = vunpack.c.h.b16 %v1251
  %v1402 = vunpack.c.l.b16 %v1252
  %v1403 = vunpack.c.h.b16 %v1252
  %v1404 = vunpack.c.l.b16 %v1253
  %v1405 = vunpack.c.h.b16 %v1253
  %v1406 = vunpack.c.l.b16 %v1254
  %v1407 = vunpack.c.h.b16 %v1254
  %v1408 = vunpack.c.l.b16 %v1255
  %v1409 = vunpack.c.h.b16 %v1255
  %v1410 = vunpack.c.l.b16 %v1256
  %v1411 = vunpack.c.h.b16 %v1256
  %v1412 = vunpack.c.l.b16 %v1257
  %v1413 = vunpack.c.h.b16 %v1257
  %v1414 = vunpack.c.l.b16 %v1258
  %v1415 = vunpack.c.h.b16 %v1258
  %v1416 = vunpack.c.l.b16 %v1259
  %v1417 = vunpack.c.h.b16 %v1259
  %v1418 = vunpack.c.l.b16 %v1260
  %v1419 = vunpack.c.h.b16 %v1260
  %v1420 = vunpack.c.l.b16 %v1261
  %v1421 = vunpack.c.h.b16 %v1261
  %v1422 = vunpack.c.l.b16 %v1262
  %v1423 = vunpack.c.h.b16 %v1262
  %v1424 = vunpack.c.l.b16 %v1263
  %v1425 = vunpack.c.h.b16 %v1263
  %v1426 = vunpack.c.l.b16 %v1264
  %v1427 = vunpack.c.h.b16 %v1264
  %v1428 = vunpack.c.l.b16 %v1265
  %v1429 = vunpack.c.h.b16 %v1265
  %v1430 = vunpack.c.l.b16 %v1266
  %v1431 = vunpack.c.h.b16 %v1266
  %v1432 = vunpack.c.l.b16 %v1267
  %v1433 = vunpack.c.h.b16 %v1267
  %v1434 = vunpack.c.l.b16 %v1268
  %v1435 = vunpack.c.h.b16 %v1268
  %v1436 = vunpack.c.l.b16 %v1269
  %v1437 = vunpack.c.h.b16 %v1269
  %v1438 = vunpack.c.l.b16 %v1270
  %v1439 = vunpack.c.h.b16 %v1270
  %v1440 = vunpack.c.l.b16 %v1271
  %v1441 = vunpack.c.h.b16 %v1271
  %v1442 = vunpack.c.l.b16 %v1272
  %v1443 = vunpack.c.h.b16 %v1272
  %v1444 = vunpack.c.l.b16 %v1273
  %v1445 = vunpack.c.h.b16 %v1273
  %v1446 = vunpack.c.l.b16 %v1274
  %v1447 = vunpack.c.h.b16 %v1274
  %v1448 = vunpack.c.l.b16 %v1275
  %v1449 = vunpack.c.h.b16 %v1275
  %v1450 = vunpack.c.l.b16 %v1276
  %v1451 = vunpack.c.h.b16 %v1276
  %v1452 = vunpack.c.l.b16 %v1277
  %v1453 = vunpack.c.h.b16 %v1277
  %v1454 = vunpack.c.l.b16 %v1278
  %v1455 = vunpack.c.h.b16 %v1278
  %v1456 = vunpack.c.l.b16 %v1279
  %v1457 = vunpack.c.h.b16 %v1279
  %v1458 = vunpack.c.l.b16 %v1280
  %v1459 = vunpack.c.h.b16 %v1280
  %v1460 = vunpack.c.l.b16 %v1281
  %v1461 = vunpack.c.h.b16 %v1281
  %v1462 = vunpack.c.l.b16 %v1282
  %v1463 = vunpack.c.h.b16 %v1282
  %v1464 = vunpack.c.l.b16 %v1283
  %v1465 = vunpack.c.h.b16 %v1283
  %v1466 = vunpack.c.l.b16 %v1284
  %v1467 = vunpack.c.h.b16 %v1284
  %v1468 = vunpack.c.l.b16 %v1285
  %v1469 = vunpack.c.h.b16 %v1285
  %v1470 = vunpack.c.l.b16 %v1286
  %v1471 = vunpack.c.h.b16 %v1286
  %v1472 = vunpack.c.l.b16 %v1287
  %v1473 = vunpack.c.h.b16 %v1287
  %v1474 = vunpack.c.l.b16 %v1288
  %v1475 = vunpack.c.h.b16 %v1288
  %v1476 = vunpack.c.l.b16 %v1289
  %v1477 = vunpack.c.h.b16 %v1289
  %v1478 = vunpack.c.l.b16 %v1290
  %v1479 = vunpack.c.h.b16 %v1290
  %v1480 = vunpack.c.l.b16 %v1291
  %v1481 = vunpack.c.h.b16 %v1291
  %v1482 = vunpack.c.l.b16 %v1292
  %v1483 = vunpack.c.h.b16 %v1292
  %v1484 = vunpack.c.l.b16 %v1293
  %v1485 = vunpack.c.h.b16 %v1293
  %v1486 = vpack.c.b16 %v1358, %v1358
  %v1487 = vpack.c.b16 %v1359, %v1359
  %v1488 = vpack.c.b16 %v1360, %v1360
  %v1489 = vpack.c.b16 %v1361, %v1361
  %v1490 = vpack.c.b16 %v1362, %v1362
  %v1491 = vpack.c.b16 %v1363, %v1363
  %v1492 = vpack.c.b16 %v1364, %v1364
  %v1493 = vpack.c.b16 %v1365, %v1365
  %v1494 = vpack.c.b16 %v1366, %v1366
  %v1495 = vpack.c.b16 %v1367, %v1367
  %v1496 = vpack.c.b16 %v1368, %v1368
  %v1497 = vpack.c.b16 %v1369, %v1369
  %v1498 = vpack.c.b16 %v1370, %v1370
  %v1499 = vpack.c.b16 %v1371, %v1371
  %v1500 = vpack.c.b16 %v1372, %v1372
  %v1501 = vpack.c.b16 %v1373, %v1373
  %v1502 = vpack.c.b16 %v1374, %v1374
  %v1503 = vpack.c.b16 %v1375, %v1375
  %v1504 = vpack.c.b16 %v1376, %v1376
  %v1505 = vpack.c.b16 %v1377, %v1377
  %v1506 = vpack.c.b16 %v1378, %v1378
  %v1507 = vpack.c.b16 %v1379, %v1379
  %v1508 = vpack.c.b16 %v1380, %v1380
  %v1509 = vpack.c.b16 %v1381, %v1381
  %v1510 = vpack.c.b16 %v1382, %v1382
  %v1511 = vpack.c.b16 %v1383, %v1383
  %v1512 = vpack.c.b16 %v1384, %v1384
  %v1513 = vpack.c.b16 %v1385, %v1385
  %v1514 = vpack.c.b16 %v1386, %v1386
  %v1515 = vpack.c.b16 %v1387, %v1387
  %v1516 = vpack.c.b16 %v1388, %v1388
  %v1517 = vpack.c.b16 %v1389, %v1389
  %v1518 = vpack.c.b16 %v1390, %v1390
  %v1519 = vpack.c.b16 %v1391, %v1391
  %v1520 = vpack.c.b16 %v1392, %v1392
  %v1521 = vpack.c.b16 %v1393, %v1393
  %v1522 = vpack.c.b16 %v1394, %v1394
  %v1523 = vpack.c.b16 %v1395, %v1395
  %v1524 = vpack.c.b16 %v1396, %v1396
  %v1525 = vpack.c.b16 %v1397, %v1397
  %v1526 = vpack.c.b16 %v1398, %v1398
  %v1527 = vpack.c.b16 %v1399, %v1399
  %v1528 = vpack.c.b16 %v1400, %v1400
  %v1529 = vpack.c.b16 %v1401, %v1401
  %v1530 = vpack.c.b16 %v1402, %v1402
  %v1531 = vpack.c.b16 %v1403, %v1403
  %v1532 = vpack.c.b16 %v1404, %v1404
  %v1533 = vpack.c.b16 %v1405, %v1405
  %v1534 = vpack.c.b16 %v1406, %v1406
  %v1535 = vpack.c.b16 %v1407, %v1407
  %v1536 = vpack.c.b16 %v1408, %v1408
  %v1537 = vpack.c.b16 %v1409, %v1409
  %v1538 = vpack.c.b16 %v1410, %v1410
  %v1539 = vpack.c.b16 %v1411, %v1411
  %v1540 = vpack.c.b16 %v1412, %v1412
  %v1541 = vpack.c.b16 %v1413, %v1413
  %v1542 = vpack.c.b16 %v1414, %v1414
  %v1543 = vpack.c.b16 %v1415, %v1415
  %v1544 = vpack.c.b16 %v1416, %v1416
  %v1545 = vpack.c.b16 %v1417, %v1417
  %v1546 = vpack.c.b16 %v1418, %v1418
  %v1547 = vpack.c.b16 %v1419, %v1419
  %v1548 = vpack.c.b16 %v1420, %v1420
  %v1549 = vpack.c.b16 %v1421, %v1421
  %v1550 = vpack.c.b16 %v1422, %v1422
  %v1551 = vpack.c.b16 %v1423, %v1423
  %v1552 = vpack.c.b16 %v1424, %v1424
  %v1553 = vpack.c.b16 %v1425, %v1425
  %v1554 = vpack.c.b16 %v1426, %v1426
  %v1555 = vpack.c.b16 %v1427, %v1427
  %v1556 = vpack.c.b16 %v1428, %v1428
  %v1557 = vpack.c.b16 %v1429, %v1429
  %v1558 = vpack.c.b16 %v1430, %v1430
  %v1559 = vpack.c.b16 %v1431, %v1431
  %v1560 = vpack.c.b16 %v1432, %v1432
  %v1561 = vpack.c.b16 %v1433, %v1433
  %v1562 = vpack.c.b16 %v1434, %v1434
  %v1563 = vpack.c.b16 %v1435, %v1435
  %v1564 = vpack.c.b16 %v1436, %v1436
  %v1565 = vpack.c.b16 %v1437, %v1437
  %v1566 = vpack.c.b16 %v1438, %v1438
  %v1567 = vpack.c.b16 %v1439, %v1439
  %v1568 = vpack.c.b16 %v1440, %v1440
  %v1569 = vpack.c.b16 %v1441, %v1441
  %v1570 = vpack.c.b16 %v1442, %v1442
  %v1571 = vpack.c.b16 %v1443, %v1443
  %v1572 = vpack.c.b16 %v1444, %v1444
  %v1573 = vpack.c.b16 %v1445, %v1445
  %v1574 = vpack.c.b16 %v1446, %v1446
  %v1575 = vpack.c.b16 %v1447, %v1447
  %v1576 = vpack.c.b16 %v1448, %v1448
  %v1577 = vpack.c.b16 %v1449, %v1449
  %v1578 = vpack.c.b16 %v1450, %v1450
  %v1579 = vpack.c.b16 %v1451, %v1451
  %v1580 = vpack.c.b16 %v1452, %v1452
  %v1581 = vpack.c.b16 %v1453, %v1453
  %v1582 = vpack.c.b16 %v1454, %v1454
  %v1583 = vpack.c.b16 %v1455, %v1455
  %v1584 = vpack.c.b16 %v1456, %v1456
  %v1585 = vpack.c.b16 %v1457, %v1457
  %v1586 = vpack.c.b16 %v1458, %v1458
  %v1587 = vpack.c.b16 %v1459, %v1459
  %v1588 = vpack.c.b16 %v1460, %v1460
  %v1589 = vpack.c.b16 %v1461, %v1461
  %v1590 = vpack.c.b16 %v1462, %v1462
  %v1591 = vpack.c.b16 %v1463, %v1463
  %v1592 = vpack.c.b16 %v1464, %v1464
  %v1593 = vpack.c.b16 %v1465, %v1465
  %v1594 = vpack.c.b16 %v1466, %v1466
  %v1595 = vpack.c.b16 %v1467, %v1467
  %v1596 = vpack.c.b16 %v1468, %v1468
  %v1597 = vpack.c.b16 %v1469, %v1469
  %v1598 = vpack.c.b16 %v1470, %v1470
  %v1599 = vpack.c.b16 %v1471, %v1471
  %v1600 = vpack.c.b16 %v1472, %v1472
  %v1601 = vpack.c.b16 %v1473, %v1473
  %v1602 = vpack.c.b16 %v1474, %v1474
  %v1603 = vpack.c.b16 %v1475, %v1475
  %v1604 = vpack.c.b16 %v1476, %v1476
  %v1605 = vpack.c.b16 %v1477, %v1477
  %v1606 = vpack.c.b16 %v1478, %v1478
  %v1607 = vpack.c.b16 %v1479, %v1479
  %v1608 = vpack.c.b16 %v1480, %v1480
  %v1609 = vpack.c.b16 %v1481, %v1481
  %v1610 = vpack.c.b16 %v1482, %v1482
  %v1611 = vpack.c.b16 %v1483, %v1483
  %v1612 = vpack.c.b16 %v1484, %v1484
  %v1613 = vpack.c.b16 %v1485, %v1485
  %1742 = vst [vmem:[%s2] sm:$0xf] %v1486
  %1743 = vst [vmem:[%s2 + $0x4] sm:$0xf] %v1487
  %1744 = vst [vmem:[%s2 + $0x8] sm:$0xf] %v1488
  %1745 = vst [vmem:[%s2 + $0xc] sm:$0xf] %v1489
  %1746 = vst [vmem:[%s2 + $0x10] sm:$0xf] %v1490
  %1747 = vst [vmem:[%s2 + $0x14] sm:$0xf] %v1491
  %1748 = vst [vmem:[%s2 + $0x18] sm:$0xf] %v1492
  %1749 = vst [vmem:[%s2 + $0x1c] sm:$0xf] %v1493
  %1750 = vst [vmem:[%s2 + $0x20] sm:$0xf] %v1494
  %1751 = vst [vmem:[%s2 + $0x24] sm:$0xf] %v1495
  %1752 = vst [vmem:[%s2 + $0x28] sm:$0xf] %v1496
  %1753 = vst [vmem:[%s2 + $0x2c] sm:$0xf] %v1497
  %1754 = vst [vmem:[%s2 + $0x30] sm:$0xf] %v1498
  %1755 = vst [vmem:[%s2 + $0x34] sm:$0xf] %v1499
  %1756 = vst [vmem:[%s2 + $0x38] sm:$0xf] %v1500
  %1757 = vst [vmem:[%s2 + $0x3c] sm:$0xf] %v1501
  %1758 = vst [vmem:[%s2 + $0x40] sm:$0xf] %v1502
  %1759 = vst [vmem:[%s2 + $0x44] sm:$0xf] %v1503
  %1760 = vst [vmem:[%s2 + $0x48] sm:$0xf] %v1504
  %1761 = vst [vmem:[%s2 + $0x4c] sm:$0xf] %v1505
  %1762 = vst [vmem:[%s2 + $0x50] sm:$0xf] %v1506
  %1763 = vst [vmem:[%s2 + $0x54] sm:$0xf] %v1507
  %1764 = vst [vmem:[%s2 + $0x58] sm:$0xf] %v1508
  %1765 = vst [vmem:[%s2 + $0x5c] sm:$0xf] %v1509
  %1766 = vst [vmem:[%s2 + $0x60] sm:$0xf] %v1510
  %1767 = vst [vmem:[%s2 + $0x64] sm:$0xf] %v1511
  %1768 = vst [vmem:[%s2 + $0x68] sm:$0xf] %v1512
  %1769 = vst [vmem:[%s2 + $0x6c] sm:$0xf] %v1513
  %1770 = vst [vmem:[%s2 + $0x70] sm:$0xf] %v1514
  %1771 = vst [vmem:[%s2 + $0x74] sm:$0xf] %v1515
  %1772 = vst [vmem:[%s2 + $0x78] sm:$0xf] %v1516
  %1773 = vst [vmem:[%s2 + $0x7c] sm:$0xf] %v1517
  %1774 = vst [vmem:[%s2 + $0x80] sm:$0xf] %v1518
  %1775 = vst [vmem:[%s2 + $0x84] sm:$0xf] %v1519
  %1776 = vst [vmem:[%s2 + $0x88] sm:$0xf] %v1520
  %1777 = vst [vmem:[%s2 + $0x8c] sm:$0xf] %v1521
  %1778 = vst [vmem:[%s2 + $0x90] sm:$0xf] %v1522
  %1779 = vst [vmem:[%s2 + $0x94] sm:$0xf] %v1523
  %1780 = vst [vmem:[%s2 + $0x98] sm:$0xf] %v1524
  %1781 = vst [vmem:[%s2 + $0x9c] sm:$0xf] %v1525
  %1782 = vst [vmem:[%s2 + $0xa0] sm:$0xf] %v1526
  %1783 = vst [vmem:[%s2 + $0xa4] sm:$0xf] %v1527
  %1784 = vst [vmem:[%s2 + $0xa8] sm:$0xf] %v1528
  %1785 = vst [vmem:[%s2 + $0xac] sm:$0xf] %v1529
  %1786 = vst [vmem:[%s2 + $0xb0] sm:$0xf] %v1530
  %1787 = vst [vmem:[%s2 + $0xb4] sm:$0xf] %v1531
  %1788 = vst [vmem:[%s2 + $0xb8] sm:$0xf] %v1532
  %1789 = vst [vmem:[%s2 + $0xbc] sm:$0xf] %v1533
  %1790 = vst [vmem:[%s2 + $0xc0] sm:$0xf] %v1534
  %1791 = vst [vmem:[%s2 + $0xc4] sm:$0xf] %v1535
  %1792 = vst [vmem:[%s2 + $0xc8] sm:$0xf] %v1536
  %1793 = vst [vmem:[%s2 + $0xcc] sm:$0xf] %v1537
  %1794 = vst [vmem:[%s2 + $0xd0] sm:$0xf] %v1538
  %1795 = vst [vmem:[%s2 + $0xd4] sm:$0xf] %v1539
  %1796 = vst [vmem:[%s2 + $0xd8] sm:$0xf] %v1540
  %1797 = vst [vmem:[%s2 + $0xdc] sm:$0xf] %v1541
  %1798 = vst [vmem:[%s2 + $0xe0] sm:$0xf] %v1542
  %1799 = vst [vmem:[%s2 + $0xe4] sm:$0xf] %v1543
  %1800 = vst [vmem:[%s2 + $0xe8] sm:$0xf] %v1544
  %1801 = vst [vmem:[%s2 + $0xec] sm:$0xf] %v1545
  %1802 = vst [vmem:[%s2 + $0xf0] sm:$0xf] %v1546
  %1803 = vst [vmem:[%s2 + $0xf4] sm:$0xf] %v1547
  %1804 = vst [vmem:[%s2 + $0xf8] sm:$0xf] %v1548
  %1805 = vst [vmem:[%s2 + $0xfc] sm:$0xf] %v1549
  %1806 = vst [vmem:[%s2 + $0x100] sm:$0xf] %v1550
  %1807 = vst [vmem:[%s2 + $0x104] sm:$0xf] %v1551
  %1808 = vst [vmem:[%s2 + $0x108] sm:$0xf] %v1552
  %1809 = vst [vmem:[%s2 + $0x10c] sm:$0xf] %v1553
  %1810 = vst [vmem:[%s2 + $0x110] sm:$0xf] %v1554
  %1811 = vst [vmem:[%s2 + $0x114] sm:$0xf] %v1555
  %1812 = vst [vmem:[%s2 + $0x118] sm:$0xf] %v1556
  %1813 = vst [vmem:[%s2 + $0x11c] sm:$0xf] %v1557
  %1814 = vst [vmem:[%s2 + $0x120] sm:$0xf] %v1558
  %1815 = vst [vmem:[%s2 + $0x124] sm:$0xf] %v1559
  %1816 = vst [vmem:[%s2 + $0x128] sm:$0xf] %v1560
  %1817 = vst [vmem:[%s2 + $0x12c] sm:$0xf] %v1561
  %1818 = vst [vmem:[%s2 + $0x130] sm:$0xf] %v1562
  %1819 = vst [vmem:[%s2 + $0x134] sm:$0xf] %v1563
  %1820 = vst [vmem:[%s2 + $0x138] sm:$0xf] %v1564
  %1821 = vst [vmem:[%s2 + $0x13c] sm:$0xf] %v1565
  %1822 = vst [vmem:[%s2 + $0x140] sm:$0xf] %v1566
  %1823 = vst [vmem:[%s2 + $0x144] sm:$0xf] %v1567
  %1824 = vst [vmem:[%s2 + $0x148] sm:$0xf] %v1568
  %1825 = vst [vmem:[%s2 + $0x14c] sm:$0xf] %v1569
  %1826 = vst [vmem:[%s2 + $0x150] sm:$0xf] %v1570
  %1827 = vst [vmem:[%s2 + $0x154] sm:$0xf] %v1571
  %1828 = vst [vmem:[%s2 + $0x158] sm:$0xf] %v1572
  %1829 = vst [vmem:[%s2 + $0x15c] sm:$0xf] %v1573
  %1830 = vst [vmem:[%s2 + $0x160] sm:$0xf] %v1574
  %1831 = vst [vmem:[%s2 + $0x164] sm:$0xf] %v1575
  %1832 = vst [vmem:[%s2 + $0x168] sm:$0xf] %v1576
  %1833 = vst [vmem:[%s2 + $0x16c] sm:$0xf] %v1577
  %1834 = vst [vmem:[%s2 + $0x170] sm:$0xf] %v1578
  %1835 = vst [vmem:[%s2 + $0x174] sm:$0xf] %v1579
  %1836 = vst [vmem:[%s2 + $0x178] sm:$0xf] %v1580
  %1837 = vst [vmem:[%s2 + $0x17c] sm:$0xf] %v1581
  %1838 = vst [vmem:[%s2 + $0x180] sm:$0xf] %v1582
  %1839 = vst [vmem:[%s2 + $0x184] sm:$0xf] %v1583
  %1840 = vst [vmem:[%s2 + $0x188] sm:$0xf] %v1584
  %1841 = vst [vmem:[%s2 + $0x18c] sm:$0xf] %v1585
  %1842 = vst [vmem:[%s2 + $0x190] sm:$0xf] %v1586
  %1843 = vst [vmem:[%s2 + $0x194] sm:$0xf] %v1587
  %1844 = vst [vmem:[%s2 + $0x198] sm:$0xf] %v1588
  %1845 = vst [vmem:[%s2 + $0x19c] sm:$0xf] %v1589
  %1846 = vst [vmem:[%s2 + $0x1a0] sm:$0xf] %v1590
  %1847 = vst [vmem:[%s2 + $0x1a4] sm:$0xf] %v1591
  %1848 = vst [vmem:[%s2 + $0x1a8] sm:$0xf] %v1592
  %1849 = vst [vmem:[%s2 + $0x1ac] sm:$0xf] %v1593
  %1850 = vst [vmem:[%s2 + $0x1b0] sm:$0xf] %v1594
  %1851 = vst [vmem:[%s2 + $0x1b4] sm:$0xf] %v1595
  %1852 = vst [vmem:[%s2 + $0x1b8] sm:$0xf] %v1596
  %1853 = vst [vmem:[%s2 + $0x1bc] sm:$0xf] %v1597
  %1854 = vst [vmem:[%s2 + $0x1c0] sm:$0xf] %v1598
  %1855 = vst [vmem:[%s2 + $0x1c4] sm:$0xf] %v1599
  %1856 = vst [vmem:[%s2 + $0x1c8] sm:$0xf] %v1600
  %1857 = vst [vmem:[%s2 + $0x1cc] sm:$0xf] %v1601
  %1858 = vst [vmem:[%s2 + $0x1d0] sm:$0xf] %v1602
  %1859 = vst [vmem:[%s2 + $0x1d4] sm:$0xf] %v1603
  %1860 = vst [vmem:[%s2 + $0x1d8] sm:$0xf] %v1604
  %1861 = vst [vmem:[%s2 + $0x1dc] sm:$0xf] %v1605
  %1862 = vst [vmem:[%s2 + $0x1e0] sm:$0xf] %v1606
  %1863 = vst [vmem:[%s2 + $0x1e4] sm:$0xf] %v1607
  %1864 = vst [vmem:[%s2 + $0x1e8] sm:$0xf] %v1608
  %1865 = vst [vmem:[%s2 + $0x1ec] sm:$0xf] %v1609
  %1866 = vst [vmem:[%s2 + $0x1f0] sm:$0xf] %v1610
  %1867 = vst [vmem:[%s2 + $0x1f4] sm:$0xf] %v1611
  %1868 = vst [vmem:[%s2 + $0x1f8] sm:$0xf] %v1612
  %1869 = vst [vmem:[%s2 + $0x1fc] sm:$0xf] %v1613
  // Predicated region
  $region10: #{graph_convolution.2} parent=0 // pred_check
    _
  $region11: #{graph_convolution.2} parent=0 // pred_check_branch
    %1871 = sbr.rel (0) target = $region13
  $region12: #{graph_convolution.2} parent=0 // pred_region
    _
  $region13: #{graph_convolution.2} parent=0 // pred_fallthru
    _
  // Predicated region
  $region14: #{graph_convolution.2} parent=0 // pred_check
    _
  $region15: #{graph_convolution.2} parent=0 // pred_check_branch
    %1873 = sbr.rel (0) target = $region17
  $region16: #{graph_convolution.2} parent=0 // pred_region
    _
  $region17: #{graph_convolution.2} parent=0 // pred_fallthru
    _

// kernel: graph_convolution.3
$region0: #{graph_convolution.3}
  #allocation0 [shape = 'u32[]', space=smem, size = 0x4, offset = 0x4, fixed_abs, tag = 'smem constant byte address 0x4 - core index']
  #allocation1 [shape = 'u32[144,128]{1,0:T(1,128)}', space=vmem, size = 0x12000, scoped, tag = 'internal scratch']
  %s0 = inlined_call_operand.vmem [shape: bf16[1024,1024], index: 0, kind: input, shape index: {}]
  %s1 = inlined_call_operand.vmem [shape: bf16[1024,128], index: 1, kind: input, shape index: {}]
  %s2 = inlined_call_operand.vmem [shape: f32[1,128], index: 2, kind: input, shape index: {}]
  %s3 = inlined_call_operand.vmem [shape: f32[1024,128], index: 3, kind: output, shape index: {}]
  %s4 = sld [smem:[#allocation0]]
  $region49: #{graph_convolution.3} parent=0
    _
  %s6 = ssub.s32 1, %s4
  %s7 = scalar_select 0, %s6, %s4
  loop: start=0, step=1, limit=4
  $region2: #{graph_convolution.3} parent=0 // loop_pre_header
    _
  $region3: #{graph_convolution.3} parent=0 // loop_header
    %s9 = sphi 0, %s13
    %p10 = scmp.ge.s32.totalorder %s9, 4
    %s16 = sphi 0, %s28
    %s17 = sphi 0, %s24
    %s18 = sphi 0, %s16
    %s19 = sphi 0, %s17
    %s20 = sphi 0, %s18
    %s21 = sphi 0, %s19
    %s33 = sphi 0, %s35
    %s36 = sphi 0, %s33
    %s37 = sphi 0, %s36
    %s53 = sphi 0, %s37
    %s57 = sphi 0, %s57
    %s59 = sphi 0, %s57
    %s60 = sphi 0, %s59
    %s74 = sphi 0, %s60
    %s78 = sphi 0, %s78
    %s80 = sphi 0, %s78
    %s81 = sphi 0, %s80
    %s95 = sphi 0, %s81
    %s101 = sphi 0, %s103
    %s104 = sphi 0, %s101
    %s105 = sphi 0, %s104
    %s121 = sphi 0, %s105
  $region4: #{graph_convolution.3} parent=0 // loop_header_branch
    %12 = sbr.rel (%p10) target = $region8
  $region5: #{graph_convolution.3} parent=0 // loop_body
    %s14 = ssub.s32 %s9, 1
    %s15 = ssub.s32 %s9, 2
    %s22 = sadd.s32 1, %s17
    %p23 = scmp.ge.s32.totalorder %s22, 1
    %s24 = scalar_select %p23, 0, %s22
    %s25 = sadd.s32 1, %s16
    %s26 = scalar_select %p23, %s25, %s16
    %p27 = scmp.ge.s32.totalorder %s26, 2
    %s28 = scalar_select %p27, 0, %s26
    %s29 = ssub.s32 %s16, %s28
    %s30 = ssub.s32 %s17, %s24
    %s31 = sor.u32 %s29, %s30
    %p32 = scmp.eq.s32.totalorder %s31, 0
    %s34 = sadd.s32 %s33, 1
    %s35 = scalar_select %p32, %s33, %s34
    %p38 = pneg %p32
    %p39 = scmp.eq.s32.totalorder %s9, 1
    %p40 = por %p38, %p39
    %p41 = scmp.ne.s32.totalorder %s33, %s36
    %p42 = scmp.eq.s32.totalorder %s9, 0
    %p43 = por %p41, %p42
    %p44 = scmp.ne.s32.totalorder %s33, %s36
    %p45 = scmp.eq.s32.totalorder %s14, 1
    %p46 = por %p44, %p45
    %p47 = scmp.ne.s32.totalorder %s36, %s37
    %p48 = scmp.eq.s32.totalorder %s14, 0
    %p49 = por %p47, %p48
    %p50 = scmp.ne.s32.totalorder %s36, %s37
    %p51 = scmp.eq.s32.totalorder %s15, 1
    %p52 = por %p50, %p51
    %p54 = scmp.ne.s32.totalorder %s37, %s53
    %p55 = scmp.eq.s32.totalorder %s15, 0
    %p56 = por %p54, %p55
    %s58 = sadd.s32 %s57, 1
    %p61 = scmp.eq.s32.totalorder %s9, 1
    %p62 = scmp.ne.s32.totalorder %s57, %s59
    %p63 = scmp.eq.s32.totalorder %s9, 0
    %p64 = por %p62, %p63
    %p65 = scmp.ne.s32.totalorder %s57, %s59
    %p66 = scmp.eq.s32.totalorder %s14, 1
    %p67 = por %p65, %p66
    %p68 = scmp.ne.s32.totalorder %s59, %s60
    %p69 = scmp.eq.s32.totalorder %s14, 0
    %p70 = por %p68, %p69
    %p71 = scmp.ne.s32.totalorder %s59, %s60
    %p72 = scmp.eq.s32.totalorder %s15, 1
    %p73 = por %p71, %p72
    %p75 = scmp.ne.s32.totalorder %s60, %s74
    %p76 = scmp.eq.s32.totalorder %s15, 0
    %p77 = por %p75, %p76
    %s79 = sadd.s32 %s78, 1
    %p82 = scmp.eq.s32.totalorder %s9, 1
    %p83 = scmp.ne.s32.totalorder %s78, %s80
    %p84 = scmp.eq.s32.totalorder %s9, 0
    %p85 = por %p83, %p84
    %p86 = scmp.ne.s32.totalorder %s78, %s80
    %p87 = scmp.eq.s32.totalorder %s14, 1
    %p88 = por %p86, %p87
    %p89 = scmp.ne.s32.totalorder %s80, %s81
    %p90 = scmp.eq.s32.totalorder %s14, 0
    %p91 = por %p89, %p90
    %p92 = scmp.ne.s32.totalorder %s80, %s81
    %p93 = scmp.eq.s32.totalorder %s15, 1
    %p94 = por %p92, %p93
    %p96 = scmp.ne.s32.totalorder %s81, %s95
    %p97 = scmp.eq.s32.totalorder %s15, 0
    %p98 = por %p96, %p97
    %s99 = ssub.s32 %s16, %s28
    %p100 = scmp.eq.s32.totalorder %s99, 0
    %s102 = sadd.s32 %s101, 1
    %s103 = scalar_select %p100, %s101, %s102
    %p106 = pneg %p100
    %p107 = scmp.eq.s32.totalorder %s9, 1
    %p108 = por %p106, %p107
    %p109 = scmp.ne.s32.totalorder %s101, %s104
    %p110 = scmp.eq.s32.totalorder %s9, 0
    %p111 = por %p109, %p110
    %p112 = scmp.ne.s32.totalorder %s101, %s104
    %p113 = scmp.eq.s32.totalorder %s14, 1
    %p114 = por %p112, %p113
    %p115 = scmp.ne.s32.totalorder %s104, %s105
    %p116 = scmp.eq.s32.totalorder %s14, 0
    %p117 = por %p115, %p116
    %p118 = scmp.ne.s32.totalorder %s104, %s105
    %p119 = scmp.eq.s32.totalorder %s15, 1
    %p120 = por %p118, %p119
    %p122 = scmp.ne.s32.totalorder %s105, %s121
    %p123 = scmp.eq.s32.totalorder %s15, 0
    %p124 = por %p122, %p123
    %p125 = scmp.le.s32.totalorder 1, %s9
    %p126 = scmp.lt.s32.totalorder %s9, 3
    %p127 = pnand %p125, %p126
    %p128 = pneg %p127
    // Predicated region
    $region9: #{graph_convolution.3} parent=5 // pred_check
      _
    $region10: #{graph_convolution.3} parent=5 // pred_check_branch
      %130 = sbr.rel (%p127) target = $region12
    $region11: #{graph_convolution.3} parent=5 // pred_region
      %s131 = ssub.s32 %s9, 1
      // Predicated region
      $region13: #{graph_convolution.3} parent=11 // pred_check
        %p132 = pneg %p70
      $region14: #{graph_convolution.3} parent=11 // pred_check_branch
        %134 = sbr.rel (%p132) target = $region16
      $region15: #{graph_convolution.3} parent=11 // pred_region
        _
      $region16: #{graph_convolution.3} parent=11 // pred_fallthru
        _
      // Predicated region
      $region17: #{graph_convolution.3} parent=11 // pred_check
        %p135 = pneg %p91
      $region18: #{graph_convolution.3} parent=11 // pred_check_branch
        %137 = sbr.rel (%p135) target = $region20
      $region19: #{graph_convolution.3} parent=11 // pred_region
        _
      $region20: #{graph_convolution.3} parent=11 // pred_fallthru
        _
    $region12: #{graph_convolution.3} parent=5 // pred_fallthru
      _
    %p138 = scmp.lt.s32.totalorder %s9, 2
    // Predicated region
    $region21: #{graph_convolution.3} parent=5 // pred_check
      %p139 = pneg %p138
    $region22: #{graph_convolution.3} parent=5 // pred_check_branch
      %141 = sbr.rel (%p139) target = $region24
    $region23: #{graph_convolution.3} parent=5 // pred_region
      // Predicated region
      $region25: #{graph_convolution.3} parent=23 // pred_check
        %p142 = pneg %p43
      $region26: #{graph_convolution.3} parent=23 // pred_check_branch
        %144 = sbr.rel (%p142) target = $region28
      $region27: #{graph_convolution.3} parent=23 // pred_region
        %s145 = smul.u32 64, %s16
        %s146 = smul.u32 8, %s17
        %p147 = scmp.lt.s32.totalorder %s145, 127
        %s148 = scalar_select %p147, %s145, 127
        %p149 = scmp.lt.s32.totalorder %s146, 7
        %s150 = scalar_select %p149, %s146, 7
        %s151 = smul.addr %s148, 8
        %s152 = sadd.s32 %s150, %s151
        %s153 = smul.addr %s152, 4
        %s154 = scalar_lea.vmem %s0, %s153
        %s155 = smul.u32 64, %s16
        %s156 = smul.u32 8, %s17
      $region28: #{graph_convolution.3} parent=23 // pred_fallthru
        _
    $region24: #{graph_convolution.3} parent=5 // pred_fallthru
      _
    %p157 = scmp.le.s32.totalorder 1, %s9
    %p158 = scmp.lt.s32.totalorder %s9, 3
    %p159 = pnand %p157, %p158
    %p160 = pneg %p159
    // Predicated region
    $region29: #{graph_convolution.3} parent=5 // pred_check
      _
    $region30: #{graph_convolution.3} parent=5 // pred_check_branch
      %162 = sbr.rel (%p159) target = $region32
    $region31: #{graph_convolution.3} parent=5 // pred_region
      %s163 = ssub.s32 %s9, 1
      %s164 = smul.u32 64, %s18
      %s165 = smul.u32 8, %s19
      %p166 = scmp.lt.s32.totalorder %s164, 127
      %s167 = scalar_select %p166, %s164, 127
      %p168 = scmp.lt.s32.totalorder %s165, 7
      %s169 = scalar_select %p168, %s165, 7
      %s170 = smul.addr %s167, 8
      %s171 = sadd.s32 %s169, %s170
      %s172 = smul.addr %s171, 4
      %s173 = scalar_lea.vmem %s0, %s172
      %p174 = pneg %p49
      %p175 = pneg %p46
      %p176 = pneg %p70
      %p177 = pneg %p67
      %p178 = pneg %p91
      %p179 = pneg %p88
      %p180 = pneg %p117
      %p181 = pneg %p114
      %s182 = smul.u32 64, %s18
      %p183 = scmp.lt.s32.totalorder %s182, 127
      %s184 = scalar_select %p183, %s182, 127
      %s185 = smul.addr %s184, 8
      %s186 = scalar_lea.vmem %s3, %s185
      %s187 = smul.u32 64, %s18
      %s188 = smul.u32 8, %s19
      %p189 = scmp.lt.s32.totalorder %s187, 127
      %s190 = scalar_select %p189, %s187, 127
      %p191 = scmp.lt.s32.totalorder %s188, 7
      %s192 = scalar_select %p191, %s188, 7
      %s193 = smul.addr %s190, 8
      %s194 = sadd.s32 %s192, %s193
      %s195 = smul.addr %s194, 4
      %s196 = scalar_lea.vmem %s0, %s195
      %s197 = smul.u32 64, %s18
      %s198 = smul.u32 8, %s19
      %s199 = smul.u32 64, %s18
      %p200 = scmp.lt.s32.totalorder %s199, 127
      %s201 = scalar_select %p200, %s199, 127
      %s202 = smul.addr %s201, 8
      %s203 = scalar_lea.vmem %s3, %s202
      %s204 = smul.u32 64, %s18
      %p206 = scmp.eq.s32.totalorder %s19, 0
      // Predicated region
      $region33: #{graph_convolution.3} parent=31 // pred_check
        %p207 = pneg %p206
      $region34: #{graph_convolution.3} parent=31 // pred_check_branch
        %209 = sbr.rel (%p207) target = $region36
      $region35: #{graph_convolution.3} parent=31 // pred_region
        %v210 = vld [vmem:[%s2] sm:$0x1]
        %v212 = vlaneseq
        %v213 = vshrl.u32 %v212, 7
        %v214 = vsub.s32 0, %v213
        %v215 = vrot.slane %v210, %v214
        %217 = vst [vmem:[%s203] sm:$0xff] %v215
        %218 = vst [vmem:[%s203 + $0x8] sm:$0xff] %v215
        %219 = vst [vmem:[%s203 + $0x10] sm:$0xff] %v215
        %220 = vst [vmem:[%s203 + $0x18] sm:$0xff] %v215
        %221 = vst [vmem:[%s203 + $0x20] sm:$0xff] %v215
        %222 = vst [vmem:[%s203 + $0x28] sm:$0xff] %v215
        %223 = vst [vmem:[%s203 + $0x30] sm:$0xff] %v215
        %224 = vst [vmem:[%s203 + $0x38] sm:$0xff] %v215
        %225 = vst [vmem:[%s203 + $0x40] sm:$0xff] %v215
        %226 = vst [vmem:[%s203 + $0x48] sm:$0xff] %v215
        %227 = vst [vmem:[%s203 + $0x50] sm:$0xff] %v215
        %228 = vst [vmem:[%s203 + $0x58] sm:$0xff] %v215
        %229 = vst [vmem:[%s203 + $0x60] sm:$0xff] %v215
        %230 = vst [vmem:[%s203 + $0x68] sm:$0xff] %v215
        %231 = vst [vmem:[%s203 + $0x70] sm:$0xff] %v215
        %232 = vst [vmem:[%s203 + $0x78] sm:$0xff] %v215
        %233 = vst [vmem:[%s203 + $0x80] sm:$0xff] %v215
        %234 = vst [vmem:[%s203 + $0x88] sm:$0xff] %v215
        %235 = vst [vmem:[%s203 + $0x90] sm:$0xff] %v215
        %236 = vst [vmem:[%s203 + $0x98] sm:$0xff] %v215
        %237 = vst [vmem:[%s203 + $0xa0] sm:$0xff] %v215
        %238 = vst [vmem:[%s203 + $0xa8] sm:$0xff] %v215
        %239 = vst [vmem:[%s203 + $0xb0] sm:$0xff] %v215
        %240 = vst [vmem:[%s203 + $0xb8] sm:$0xff] %v215
        %241 = vst [vmem:[%s203 + $0xc0] sm:$0xff] %v215
        %242 = vst [vmem:[%s203 + $0xc8] sm:$0xff] %v215
        %243 = vst [vmem:[%s203 + $0xd0] sm:$0xff] %v215
        %244 = vst [vmem:[%s203 + $0xd8] sm:$0xff] %v215
        %245 = vst [vmem:[%s203 + $0xe0] sm:$0xff] %v215
        %246 = vst [vmem:[%s203 + $0xe8] sm:$0xff] %v215
        %247 = vst [vmem:[%s203 + $0xf0] sm:$0xff] %v215
        %248 = vst [vmem:[%s203 + $0xf8] sm:$0xff] %v215
        %249 = vst [vmem:[%s203 + $0x100] sm:$0xff] %v215
        %250 = vst [vmem:[%s203 + $0x108] sm:$0xff] %v215
        %251 = vst [vmem:[%s203 + $0x110] sm:$0xff] %v215
        %252 = vst [vmem:[%s203 + $0x118] sm:$0xff] %v215
        %253 = vst [vmem:[%s203 + $0x120] sm:$0xff] %v215
        %254 = vst [vmem:[%s203 + $0x128] sm:$0xff] %v215
        %255 = vst [vmem:[%s203 + $0x130] sm:$0xff] %v215
        %256 = vst [vmem:[%s203 + $0x138] sm:$0xff] %v215
        %257 = vst [vmem:[%s203 + $0x140] sm:$0xff] %v215
        %258 = vst [vmem:[%s203 + $0x148] sm:$0xff] %v215
        %259 = vst [vmem:[%s203 + $0x150] sm:$0xff] %v215
        %260 = vst [vmem:[%s203 + $0x158] sm:$0xff] %v215
        %261 = vst [vmem:[%s203 + $0x160] sm:$0xff] %v215
        %262 = vst [vmem:[%s203 + $0x168] sm:$0xff] %v215
        %263 = vst [vmem:[%s203 + $0x170] sm:$0xff] %v215
        %264 = vst [vmem:[%s203 + $0x178] sm:$0xff] %v215
        %265 = vst [vmem:[%s203 + $0x180] sm:$0xff] %v215
        %266 = vst [vmem:[%s203 + $0x188] sm:$0xff] %v215
        %267 = vst [vmem:[%s203 + $0x190] sm:$0xff] %v215
        %268 = vst [vmem:[%s203 + $0x198] sm:$0xff] %v215
        %269 = vst [vmem:[%s203 + $0x1a0] sm:$0xff] %v215
        %270 = vst [vmem:[%s203 + $0x1a8] sm:$0xff] %v215
        %271 = vst [vmem:[%s203 + $0x1b0] sm:$0xff] %v215
        %272 = vst [vmem:[%s203 + $0x1b8] sm:$0xff] %v215
        %273 = vst [vmem:[%s203 + $0x1c0] sm:$0xff] %v215
        %274 = vst [vmem:[%s203 + $0x1c8] sm:$0xff] %v215
        %275 = vst [vmem:[%s203 + $0x1d0] sm:$0xff] %v215
        %276 = vst [vmem:[%s203 + $0x1d8] sm:$0xff] %v215
        %277 = vst [vmem:[%s203 + $0x1e0] sm:$0xff] %v215
        %278 = vst [vmem:[%s203 + $0x1e8] sm:$0xff] %v215
        %279 = vst [vmem:[%s203 + $0x1f0] sm:$0xff] %v215
        %280 = vst [vmem:[%s203 + $0x1f8] sm:$0xff] %v215
      $region36: #{graph_convolution.3} parent=31 // pred_fallthru
        _
      %s281 = smul.u32 %s19, 1024
      %s282 = sshra.s32 %s281, 3
      %s283 = sand.u32 %s281, 7
      %s284 = smul.addr %s282, 4
      %s285 = scalar_lea.vmem %s1, %s284
      %v286 = vld [vmem:[%s285] sm:$0xf]
      %v287 = vld [vmem:[%s285 + $0x4] sm:$0xf]
      %v288 = vld [vmem:[%s285 + $0x8] sm:$0xf]
      %v289 = vld [vmem:[%s285 + $0xc] sm:$0xf]
      %v290 = vld [vmem:[%s285 + $0x10] sm:$0xf]
      %v291 = vld [vmem:[%s285 + $0x14] sm:$0xf]
      %v292 = vld [vmem:[%s285 + $0x18] sm:$0xf]
      %v293 = vld [vmem:[%s285 + $0x1c] sm:$0xf]
      %v294 = vld [vmem:[%s285 + $0x20] sm:$0xf]
      %v295 = vld [vmem:[%s285 + $0x24] sm:$0xf]
      %v296 = vld [vmem:[%s285 + $0x28] sm:$0xf]
      %v297 = vld [vmem:[%s285 + $0x2c] sm:$0xf]
      %v298 = vld [vmem:[%s285 + $0x30] sm:$0xf]
      %v299 = vld [vmem:[%s285 + $0x34] sm:$0xf]
      %v300 = vld [vmem:[%s285 + $0x38] sm:$0xf]
      %v301 = vld [vmem:[%s285 + $0x3c] sm:$0xf]
      %v302 = vld [vmem:[%s285 + $0x40] sm:$0xf]
      %v303 = vld [vmem:[%s285 + $0x44] sm:$0xf]
      %v304 = vld [vmem:[%s285 + $0x48] sm:$0xf]
      %v305 = vld [vmem:[%s285 + $0x4c] sm:$0xf]
      %v306 = vld [vmem:[%s285 + $0x50] sm:$0xf]
      %v307 = vld [vmem:[%s285 + $0x54] sm:$0xf]
      %v308 = vld [vmem:[%s285 + $0x58] sm:$0xf]
      %v309 = vld [vmem:[%s285 + $0x5c] sm:$0xf]
      %v310 = vld [vmem:[%s285 + $0x60] sm:$0xf]
      %v311 = vld [vmem:[%s285 + $0x64] sm:$0xf]
      %v312 = vld [vmem:[%s285 + $0x68] sm:$0xf]
      %v313 = vld [vmem:[%s285 + $0x6c] sm:$0xf]
      %v314 = vld [vmem:[%s285 + $0x70] sm:$0xf]
      %v315 = vld [vmem:[%s285 + $0x74] sm:$0xf]
      %v316 = vld [vmem:[%s285 + $0x78] sm:$0xf]
      %v317 = vld [vmem:[%s285 + $0x7c] sm:$0xf]
      %v318 = vld [vmem:[%s285 + $0x80] sm:$0xf]
      %v319 = vld [vmem:[%s285 + $0x84] sm:$0xf]
      %v320 = vld [vmem:[%s285 + $0x88] sm:$0xf]
      %v321 = vld [vmem:[%s285 + $0x8c] sm:$0xf]
      %v322 = vld [vmem:[%s285 + $0x90] sm:$0xf]
      %v323 = vld [vmem:[%s285 + $0x94] sm:$0xf]
      %v324 = vld [vmem:[%s285 + $0x98] sm:$0xf]
      %v325 = vld [vmem:[%s285 + $0x9c] sm:$0xf]
      %v326 = vld [vmem:[%s285 + $0xa0] sm:$0xf]
      %v327 = vld [vmem:[%s285 + $0xa4] sm:$0xf]
      %v328 = vld [vmem:[%s285 + $0xa8] sm:$0xf]
      %v329 = vld [vmem:[%s285 + $0xac] sm:$0xf]
      %v330 = vld [vmem:[%s285 + $0xb0] sm:$0xf]
      %v331 = vld [vmem:[%s285 + $0xb4] sm:$0xf]
      %v332 = vld [vmem:[%s285 + $0xb8] sm:$0xf]
      %v333 = vld [vmem:[%s285 + $0xbc] sm:$0xf]
      %v334 = vld [vmem:[%s285 + $0xc0] sm:$0xf]
      %v335 = vld [vmem:[%s285 + $0xc4] sm:$0xf]
      %v336 = vld [vmem:[%s285 + $0xc8] sm:$0xf]
      %v337 = vld [vmem:[%s285 + $0xcc] sm:$0xf]
      %v338 = vld [vmem:[%s285 + $0xd0] sm:$0xf]
      %v339 = vld [vmem:[%s285 + $0xd4] sm:$0xf]
      %v340 = vld [vmem:[%s285 + $0xd8] sm:$0xf]
      %v341 = vld [vmem:[%s285 + $0xdc] sm:$0xf]
      %v342 = vld [vmem:[%s285 + $0xe0] sm:$0xf]
      %v343 = vld [vmem:[%s285 + $0xe4] sm:$0xf]
      %v344 = vld [vmem:[%s285 + $0xe8] sm:$0xf]
      %v345 = vld [vmem:[%s285 + $0xec] sm:$0xf]
      %v346 = vld [vmem:[%s285 + $0xf0] sm:$0xf]
      %v347 = vld [vmem:[%s285 + $0xf4] sm:$0xf]
      %v348 = vld [vmem:[%s285 + $0xf8] sm:$0xf]
      %v349 = vld [vmem:[%s285 + $0xfc] sm:$0xf]
      %v350 = vld [vmem:[%s285 + $0x100] sm:$0xf]
      %v351 = vld [vmem:[%s285 + $0x104] sm:$0xf]
      %v352 = vld [vmem:[%s285 + $0x108] sm:$0xf]
      %v353 = vld [vmem:[%s285 + $0x10c] sm:$0xf]
      %v354 = vld [vmem:[%s285 + $0x110] sm:$0xf]
      %v355 = vld [vmem:[%s285 + $0x114] sm:$0xf]
      %v356 = vld [vmem:[%s285 + $0x118] sm:$0xf]
      %v357 = vld [vmem:[%s285 + $0x11c] sm:$0xf]
      %v358 = vld [vmem:[%s285 + $0x120] sm:$0xf]
      %v359 = vld [vmem:[%s285 + $0x124] sm:$0xf]
      %v360 = vld [vmem:[%s285 + $0x128] sm:$0xf]
      %v361 = vld [vmem:[%s285 + $0x12c] sm:$0xf]
      %v362 = vld [vmem:[%s285 + $0x130] sm:$0xf]
      %v363 = vld [vmem:[%s285 + $0x134] sm:$0xf]
      %v364 = vld [vmem:[%s285 + $0x138] sm:$0xf]
      %v365 = vld [vmem:[%s285 + $0x13c] sm:$0xf]
      %v366 = vld [vmem:[%s285 + $0x140] sm:$0xf]
      %v367 = vld [vmem:[%s285 + $0x144] sm:$0xf]
      %v368 = vld [vmem:[%s285 + $0x148] sm:$0xf]
      %v369 = vld [vmem:[%s285 + $0x14c] sm:$0xf]
      %v370 = vld [vmem:[%s285 + $0x150] sm:$0xf]
      %v371 = vld [vmem:[%s285 + $0x154] sm:$0xf]
      %v372 = vld [vmem:[%s285 + $0x158] sm:$0xf]
      %v373 = vld [vmem:[%s285 + $0x15c] sm:$0xf]
      %v374 = vld [vmem:[%s285 + $0x160] sm:$0xf]
      %v375 = vld [vmem:[%s285 + $0x164] sm:$0xf]
      %v376 = vld [vmem:[%s285 + $0x168] sm:$0xf]
      %v377 = vld [vmem:[%s285 + $0x16c] sm:$0xf]
      %v378 = vld [vmem:[%s285 + $0x170] sm:$0xf]
      %v379 = vld [vmem:[%s285 + $0x174] sm:$0xf]
      %v380 = vld [vmem:[%s285 + $0x178] sm:$0xf]
      %v381 = vld [vmem:[%s285 + $0x17c] sm:$0xf]
      %v382 = vld [vmem:[%s285 + $0x180] sm:$0xf]
      %v383 = vld [vmem:[%s285 + $0x184] sm:$0xf]
      %v384 = vld [vmem:[%s285 + $0x188] sm:$0xf]
      %v385 = vld [vmem:[%s285 + $0x18c] sm:$0xf]
      %v386 = vld [vmem:[%s285 + $0x190] sm:$0xf]
      %v387 = vld [vmem:[%s285 + $0x194] sm:$0xf]
      %v388 = vld [vmem:[%s285 + $0x198] sm:$0xf]
      %v389 = vld [vmem:[%s285 + $0x19c] sm:$0xf]
      %v390 = vld [vmem:[%s285 + $0x1a0] sm:$0xf]
      %v391 = vld [vmem:[%s285 + $0x1a4] sm:$0xf]
      %v392 = vld [vmem:[%s285 + $0x1a8] sm:$0xf]
      %v393 = vld [vmem:[%s285 + $0x1ac] sm:$0xf]
      %v394 = vld [vmem:[%s285 + $0x1b0] sm:$0xf]
      %v395 = vld [vmem:[%s285 + $0x1b4] sm:$0xf]
      %v396 = vld [vmem:[%s285 + $0x1b8] sm:$0xf]
      %v397 = vld [vmem:[%s285 + $0x1bc] sm:$0xf]
      %v398 = vld [vmem:[%s285 + $0x1c0] sm:$0xf]
      %v399 = vld [vmem:[%s285 + $0x1c4] sm:$0xf]
      %v400 = vld [vmem:[%s285 + $0x1c8] sm:$0xf]
      %v401 = vld [vmem:[%s285 + $0x1cc] sm:$0xf]
      %v402 = vld [vmem:[%s285 + $0x1d0] sm:$0xf]
      %v403 = vld [vmem:[%s285 + $0x1d4] sm:$0xf]
      %v404 = vld [vmem:[%s285 + $0x1d8] sm:$0xf]
      %v405 = vld [vmem:[%s285 + $0x1dc] sm:$0xf]
      %v406 = vld [vmem:[%s285 + $0x1e0] sm:$0xf]
      %v407 = vld [vmem:[%s285 + $0x1e4] sm:$0xf]
      %v408 = vld [vmem:[%s285 + $0x1e8] sm:$0xf]
      %v409 = vld [vmem:[%s285 + $0x1ec] sm:$0xf]
      %v410 = vld [vmem:[%s285 + $0x1f0] sm:$0xf]
      %v411 = vld [vmem:[%s285 + $0x1f4] sm:$0xf]
      %v412 = vld [vmem:[%s285 + $0x1f8] sm:$0xf]
      %v413 = vld [vmem:[%s285 + $0x1fc] sm:$0xf]
      %v414 = vld [vmem:[%s203] sm:$0xff]
      %v415 = vld [vmem:[%s203 + $0x8] sm:$0xff]
      %v416 = vld [vmem:[%s203 + $0x10] sm:$0xff]
      %v417 = vld [vmem:[%s203 + $0x18] sm:$0xff]
      %v418 = vld [vmem:[%s203 + $0x20] sm:$0xff]
      %v419 = vld [vmem:[%s203 + $0x28] sm:$0xff]
      %v420 = vld [vmem:[%s203 + $0x30] sm:$0xff]
      %v421 = vld [vmem:[%s203 + $0x38] sm:$0xff]
      %v422 = vld [vmem:[%s203 + $0x40] sm:$0xff]
      %v423 = vld [vmem:[%s203 + $0x48] sm:$0xff]
      %v424 = vld [vmem:[%s203 + $0x50] sm:$0xff]
      %v425 = vld [vmem:[%s203 + $0x58] sm:$0xff]
      %v426 = vld [vmem:[%s203 + $0x60] sm:$0xff]
      %v427 = vld [vmem:[%s203 + $0x68] sm:$0xff]
      %v428 = vld [vmem:[%s203 + $0x70] sm:$0xff]
      %v429 = vld [vmem:[%s203 + $0x78] sm:$0xff]
      %v430 = vld [vmem:[%s203 + $0x80] sm:$0xff]
      %v431 = vld [vmem:[%s203 + $0x88] sm:$0xff]
      %v432 = vld [vmem:[%s203 + $0x90] sm:$0xff]
      %v433 = vld [vmem:[%s203 + $0x98] sm:$0xff]
      %v434 = vld [vmem:[%s203 + $0xa0] sm:$0xff]
      %v435 = vld [vmem:[%s203 + $0xa8] sm:$0xff]
      %v436 = vld [vmem:[%s203 + $0xb0] sm:$0xff]
      %v437 = vld [vmem:[%s203 + $0xb8] sm:$0xff]
      %v438 = vld [vmem:[%s203 + $0xc0] sm:$0xff]
      %v439 = vld [vmem:[%s203 + $0xc8] sm:$0xff]
      %v440 = vld [vmem:[%s203 + $0xd0] sm:$0xff]
      %v441 = vld [vmem:[%s203 + $0xd8] sm:$0xff]
      %v442 = vld [vmem:[%s203 + $0xe0] sm:$0xff]
      %v443 = vld [vmem:[%s203 + $0xe8] sm:$0xff]
      %v444 = vld [vmem:[%s203 + $0xf0] sm:$0xff]
      %v445 = vld [vmem:[%s203 + $0xf8] sm:$0xff]
      %v446 = vld [vmem:[%s203 + $0x100] sm:$0xff]
      %v447 = vld [vmem:[%s203 + $0x108] sm:$0xff]
      %v448 = vld [vmem:[%s203 + $0x110] sm:$0xff]
      %v449 = vld [vmem:[%s203 + $0x118] sm:$0xff]
      %v450 = vld [vmem:[%s203 + $0x120] sm:$0xff]
      %v451 = vld [vmem:[%s203 + $0x128] sm:$0xff]
      %v452 = vld [vmem:[%s203 + $0x130] sm:$0xff]
      %v453 = vld [vmem:[%s203 + $0x138] sm:$0xff]
      %v454 = vld [vmem:[%s203 + $0x140] sm:$0xff]
      %v455 = vld [vmem:[%s203 + $0x148] sm:$0xff]
      %v456 = vld [vmem:[%s203 + $0x150] sm:$0xff]
      %v457 = vld [vmem:[%s203 + $0x158] sm:$0xff]
      %v458 = vld [vmem:[%s203 + $0x160] sm:$0xff]
      %v459 = vld [vmem:[%s203 + $0x168] sm:$0xff]
      %v460 = vld [vmem:[%s203 + $0x170] sm:$0xff]
      %v461 = vld [vmem:[%s203 + $0x178] sm:$0xff]
      %v462 = vld [vmem:[%s203 + $0x180] sm:$0xff]
      %v463 = vld [vmem:[%s203 + $0x188] sm:$0xff]
      %v464 = vld [vmem:[%s203 + $0x190] sm:$0xff]
      %v465 = vld [vmem:[%s203 + $0x198] sm:$0xff]
      %v466 = vld [vmem:[%s203 + $0x1a0] sm:$0xff]
      %v467 = vld [vmem:[%s203 + $0x1a8] sm:$0xff]
      %v468 = vld [vmem:[%s203 + $0x1b0] sm:$0xff]
      %v469 = vld [vmem:[%s203 + $0x1b8] sm:$0xff]
      %v470 = vld [vmem:[%s203 + $0x1c0] sm:$0xff]
      %v471 = vld [vmem:[%s203 + $0x1c8] sm:$0xff]
      %v472 = vld [vmem:[%s203 + $0x1d0] sm:$0xff]
      %v473 = vld [vmem:[%s203 + $0x1d8] sm:$0xff]
      %v474 = vld [vmem:[%s203 + $0x1e0] sm:$0xff]
      %v475 = vld [vmem:[%s203 + $0x1e8] sm:$0xff]
      %v476 = vld [vmem:[%s203 + $0x1f0] sm:$0xff]
      %v477 = vld [vmem:[%s203 + $0x1f8] sm:$0xff]
      %v478 = vld [vmem:[%s196] sm:$0xff]
      %v479 = vld [vmem:[%s196 + $0x8] sm:$0xff]
      %v480 = vld [vmem:[%s196 + $0x10] sm:$0xff]
      %v481 = vld [vmem:[%s196 + $0x18] sm:$0xff]
      %v482 = vld [vmem:[%s196 + $0x20] sm:$0xff]
      %v483 = vld [vmem:[%s196 + $0x28] sm:$0xff]
      %v484 = vld [vmem:[%s196 + $0x30] sm:$0xff]
      %v485 = vld [vmem:[%s196 + $0x38] sm:$0xff]
      %v486 = vld [vmem:[%s196 + $0x40] sm:$0xff]
      %v487 = vld [vmem:[%s196 + $0x48] sm:$0xff]
      %v488 = vld [vmem:[%s196 + $0x50] sm:$0xff]
      %v489 = vld [vmem:[%s196 + $0x58] sm:$0xff]
      %v490 = vld [vmem:[%s196 + $0x60] sm:$0xff]
      %v491 = vld [vmem:[%s196 + $0x68] sm:$0xff]
      %v492 = vld [vmem:[%s196 + $0x70] sm:$0xff]
      %v493 = vld [vmem:[%s196 + $0x78] sm:$0xff]
      %v494 = vld [vmem:[%s196 + $0x80] sm:$0xff]
      %v495 = vld [vmem:[%s196 + $0x88] sm:$0xff]
      %v496 = vld [vmem:[%s196 + $0x90] sm:$0xff]
      %v497 = vld [vmem:[%s196 + $0x98] sm:$0xff]
      %v498 = vld [vmem:[%s196 + $0xa0] sm:$0xff]
      %v499 = vld [vmem:[%s196 + $0xa8] sm:$0xff]
      %v500 = vld [vmem:[%s196 + $0xb0] sm:$0xff]
      %v501 = vld [vmem:[%s196 + $0xb8] sm:$0xff]
      %v502 = vld [vmem:[%s196 + $0xc0] sm:$0xff]
      %v503 = vld [vmem:[%s196 + $0xc8] sm:$0xff]
      %v504 = vld [vmem:[%s196 + $0xd0] sm:$0xff]
      %v505 = vld [vmem:[%s196 + $0xd8] sm:$0xff]
      %v506 = vld [vmem:[%s196 + $0xe0] sm:$0xff]
      %v507 = vld [vmem:[%s196 + $0xe8] sm:$0xff]
      %v508 = vld [vmem:[%s196 + $0xf0] sm:$0xff]
      %v509 = vld [vmem:[%s196 + $0xf8] sm:$0xff]
      %v510 = vld [vmem:[%s196 + $0x100] sm:$0xff]
      %v511 = vld [vmem:[%s196 + $0x108] sm:$0xff]
      %v512 = vld [vmem:[%s196 + $0x110] sm:$0xff]
      %v513 = vld [vmem:[%s196 + $0x118] sm:$0xff]
      %v514 = vld [vmem:[%s196 + $0x120] sm:$0xff]
      %v515 = vld [vmem:[%s196 + $0x128] sm:$0xff]
      %v516 = vld [vmem:[%s196 + $0x130] sm:$0xff]
      %v517 = vld [vmem:[%s196 + $0x138] sm:$0xff]
      %v518 = vld [vmem:[%s196 + $0x140] sm:$0xff]
      %v519 = vld [vmem:[%s196 + $0x148] sm:$0xff]
      %v520 = vld [vmem:[%s196 + $0x150] sm:$0xff]
      %v521 = vld [vmem:[%s196 + $0x158] sm:$0xff]
      %v522 = vld [vmem:[%s196 + $0x160] sm:$0xff]
      %v523 = vld [vmem:[%s196 + $0x168] sm:$0xff]
      %v524 = vld [vmem:[%s196 + $0x170] sm:$0xff]
      %v525 = vld [vmem:[%s196 + $0x178] sm:$0xff]
      %v526 = vld [vmem:[%s196 + $0x180] sm:$0xff]
      %v527 = vld [vmem:[%s196 + $0x188] sm:$0xff]
      %v528 = vld [vmem:[%s196 + $0x190] sm:$0xff]
      %v529 = vld [vmem:[%s196 + $0x198] sm:$0xff]
      %v530 = vld [vmem:[%s196 + $0x1a0] sm:$0xff]
      %v531 = vld [vmem:[%s196 + $0x1a8] sm:$0xff]
      %v532 = vld [vmem:[%s196 + $0x1b0] sm:$0xff]
      %v533 = vld [vmem:[%s196 + $0x1b8] sm:$0xff]
      %v534 = vld [vmem:[%s196 + $0x1c0] sm:$0xff]
      %v535 = vld [vmem:[%s196 + $0x1c8] sm:$0xff]
      %v536 = vld [vmem:[%s196 + $0x1d0] sm:$0xff]
      %v537 = vld [vmem:[%s196 + $0x1d8] sm:$0xff]
      %v538 = vld [vmem:[%s196 + $0x1e0] sm:$0xff]
      %v539 = vld [vmem:[%s196 + $0x1e8] sm:$0xff]
      %v540 = vld [vmem:[%s196 + $0x1f0] sm:$0xff]
      %v541 = vld [vmem:[%s196 + $0x1f8] sm:$0xff]
      %v542 = vld [vmem:[%s196 + $0x200] sm:$0xff]
      %v543 = vld [vmem:[%s196 + $0x208] sm:$0xff]
      %v544 = vld [vmem:[%s196 + $0x210] sm:$0xff]
      %v545 = vld [vmem:[%s196 + $0x218] sm:$0xff]
      %v546 = vld [vmem:[%s196 + $0x220] sm:$0xff]
      %v547 = vld [vmem:[%s196 + $0x228] sm:$0xff]
      %v548 = vld [vmem:[%s196 + $0x230] sm:$0xff]
      %v549 = vld [vmem:[%s196 + $0x238] sm:$0xff]
      %v550 = vld [vmem:[%s196 + $0x240] sm:$0xff]
      %v551 = vld [vmem:[%s196 + $0x248] sm:$0xff]
      %v552 = vld [vmem:[%s196 + $0x250] sm:$0xff]
      %v553 = vld [vmem:[%s196 + $0x258] sm:$0xff]
      %v554 = vld [vmem:[%s196 + $0x260] sm:$0xff]
      %v555 = vld [vmem:[%s196 + $0x268] sm:$0xff]
      %v556 = vld [vmem:[%s196 + $0x270] sm:$0xff]
      %v557 = vld [vmem:[%s196 + $0x278] sm:$0xff]
      %v558 = vld [vmem:[%s196 + $0x280] sm:$0xff]
      %v559 = vld [vmem:[%s196 + $0x288] sm:$0xff]
      %v560 = vld [vmem:[%s196 + $0x290] sm:$0xff]
      %v561 = vld [vmem:[%s196 + $0x298] sm:$0xff]
      %v562 = vld [vmem:[%s196 + $0x2a0] sm:$0xff]
      %v563 = vld [vmem:[%s196 + $0x2a8] sm:$0xff]
      %v564 = vld [vmem:[%s196 + $0x2b0] sm:$0xff]
      %v565 = vld [vmem:[%s196 + $0x2b8] sm:$0xff]
      %v566 = vld [vmem:[%s196 + $0x2c0] sm:$0xff]
      %v567 = vld [vmem:[%s196 + $0x2c8] sm:$0xff]
      %v568 = vld [vmem:[%s196 + $0x2d0] sm:$0xff]
      %v569 = vld [vmem:[%s196 + $0x2d8] sm:$0xff]
      %v570 = vld [vmem:[%s196 + $0x2e0] sm:$0xff]
      %v571 = vld [vmem:[%s196 + $0x2e8] sm:$0xff]
      %v572 = vld [vmem:[%s196 + $0x2f0] sm:$0xff]
      %v573 = vld [vmem:[%s196 + $0x2f8] sm:$0xff]
      %v574 = vld [vmem:[%s196 + $0x300] sm:$0xff]
      %v575 = vld [vmem:[%s196 + $0x308] sm:$0xff]
      %v576 = vld [vmem:[%s196 + $0x310] sm:$0xff]
      %v577 = vld [vmem:[%s196 + $0x318] sm:$0xff]
      %v578 = vld [vmem:[%s196 + $0x320] sm:$0xff]
      %v579 = vld [vmem:[%s196 + $0x328] sm:$0xff]
      %v580 = vld [vmem:[%s196 + $0x330] sm:$0xff]
      %v581 = vld [vmem:[%s196 + $0x338] sm:$0xff]
      %v582 = vld [vmem:[%s196 + $0x340] sm:$0xff]
      %v583 = vld [vmem:[%s196 + $0x348] sm:$0xff]
      %v584 = vld [vmem:[%s196 + $0x350] sm:$0xff]
      %v585 = vld [vmem:[%s196 + $0x358] sm:$0xff]
      %v586 = vld [vmem:[%s196 + $0x360] sm:$0xff]
      %v587 = vld [vmem:[%s196 + $0x368] sm:$0xff]
      %v588 = vld [vmem:[%s196 + $0x370] sm:$0xff]
      %v589 = vld [vmem:[%s196 + $0x378] sm:$0xff]
      %v590 = vld [vmem:[%s196 + $0x380] sm:$0xff]
      %v591 = vld [vmem:[%s196 + $0x388] sm:$0xff]
      %v592 = vld [vmem:[%s196 + $0x390] sm:$0xff]
      %v593 = vld [vmem:[%s196 + $0x398] sm:$0xff]
      %v594 = vld [vmem:[%s196 + $0x3a0] sm:$0xff]
      %v595 = vld [vmem:[%s196 + $0x3a8] sm:$0xff]
      %v596 = vld [vmem:[%s196 + $0x3b0] sm:$0xff]
      %v597 = vld [vmem:[%s196 + $0x3b8] sm:$0xff]
      %v598 = vld [vmem:[%s196 + $0x3c0] sm:$0xff]
      %v599 = vld [vmem:[%s196 + $0x3c8] sm:$0xff]
      %v600 = vld [vmem:[%s196 + $0x3d0] sm:$0xff]
      %v601 = vld [vmem:[%s196 + $0x3d8] sm:$0xff]
      %v602 = vld [vmem:[%s196 + $0x3e0] sm:$0xff]
      %v603 = vld [vmem:[%s196 + $0x3e8] sm:$0xff]
      %v604 = vld [vmem:[%s196 + $0x3f0] sm:$0xff]
      %v605 = vld [vmem:[%s196 + $0x3f8] sm:$0xff]
      %v606 = vld [vmem:[%s196 + $0x400] sm:$0xff]
      %v607 = vld [vmem:[%s196 + $0x408] sm:$0xff]
      %v608 = vld [vmem:[%s196 + $0x410] sm:$0xff]
      %v609 = vld [vmem:[%s196 + $0x418] sm:$0xff]
      %v610 = vld [vmem:[%s196 + $0x420] sm:$0xff]
      %v611 = vld [vmem:[%s196 + $0x428] sm:$0xff]
      %v612 = vld [vmem:[%s196 + $0x430] sm:$0xff]
      %v613 = vld [vmem:[%s196 + $0x438] sm:$0xff]
      %v614 = vld [vmem:[%s196 + $0x440] sm:$0xff]
      %v615 = vld [vmem:[%s196 + $0x448] sm:$0xff]
      %v616 = vld [vmem:[%s196 + $0x450] sm:$0xff]
      %v617 = vld [vmem:[%s196 + $0x458] sm:$0xff]
      %v618 = vld [vmem:[%s196 + $0x460] sm:$0xff]
      %v619 = vld [vmem:[%s196 + $0x468] sm:$0xff]
      %v620 = vld [vmem:[%s196 + $0x470] sm:$0xff]
      %v621 = vld [vmem:[%s196 + $0x478] sm:$0xff]
      %v622 = vld [vmem:[%s196 + $0x480] sm:$0xff]
      %v623 = vld [vmem:[%s196 + $0x488] sm:$0xff]
      %v624 = vld [vmem:[%s196 + $0x490] sm:$0xff]
      %v625 = vld [vmem:[%s196 + $0x498] sm:$0xff]
      %v626 = vld [vmem:[%s196 + $0x4a0] sm:$0xff]
      %v627 = vld [vmem:[%s196 + $0x4a8] sm:$0xff]
      %v628 = vld [vmem:[%s196 + $0x4b0] sm:$0xff]
      %v629 = vld [vmem:[%s196 + $0x4b8] sm:$0xff]
      %v630 = vld [vmem:[%s196 + $0x4c0] sm:$0xff]
      %v631 = vld [vmem:[%s196 + $0x4c8] sm:$0xff]
      %v632 = vld [vmem:[%s196 + $0x4d0] sm:$0xff]
      %v633 = vld [vmem:[%s196 + $0x4d8] sm:$0xff]
      %v634 = vld [vmem:[%s196 + $0x4e0] sm:$0xff]
      %v635 = vld [vmem:[%s196 + $0x4e8] sm:$0xff]
      %v636 = vld [vmem:[%s196 + $0x4f0] sm:$0xff]
      %v637 = vld [vmem:[%s196 + $0x4f8] sm:$0xff]
      %v638 = vld [vmem:[%s196 + $0x500] sm:$0xff]
      %v639 = vld [vmem:[%s196 + $0x508] sm:$0xff]
      %v640 = vld [vmem:[%s196 + $0x510] sm:$0xff]
      %v641 = vld [vmem:[%s196 + $0x518] sm:$0xff]
      %v642 = vld [vmem:[%s196 + $0x520] sm:$0xff]
      %v643 = vld [vmem:[%s196 + $0x528] sm:$0xff]
      %v644 = vld [vmem:[%s196 + $0x530] sm:$0xff]
      %v645 = vld [vmem:[%s196 + $0x538] sm:$0xff]
      %v646 = vld [vmem:[%s196 + $0x540] sm:$0xff]
      %v647 = vld [vmem:[%s196 + $0x548] sm:$0xff]
      %v648 = vld [vmem:[%s196 + $0x550] sm:$0xff]
      %v649 = vld [vmem:[%s196 + $0x558] sm:$0xff]
      %v650 = vld [vmem:[%s196 + $0x560] sm:$0xff]
      %v651 = vld [vmem:[%s196 + $0x568] sm:$0xff]
      %v652 = vld [vmem:[%s196 + $0x570] sm:$0xff]
      %v653 = vld [vmem:[%s196 + $0x578] sm:$0xff]
      %v654 = vld [vmem:[%s196 + $0x580] sm:$0xff]
      %v655 = vld [vmem:[%s196 + $0x588] sm:$0xff]
      %v656 = vld [vmem:[%s196 + $0x590] sm:$0xff]
      %v657 = vld [vmem:[%s196 + $0x598] sm:$0xff]
      %v658 = vld [vmem:[%s196 + $0x5a0] sm:$0xff]
      %v659 = vld [vmem:[%s196 + $0x5a8] sm:$0xff]
      %v660 = vld [vmem:[%s196 + $0x5b0] sm:$0xff]
      %v661 = vld [vmem:[%s196 + $0x5b8] sm:$0xff]
      %v662 = vld [vmem:[%s196 + $0x5c0] sm:$0xff]
      %v663 = vld [vmem:[%s196 + $0x5c8] sm:$0xff]
      %v664 = vld [vmem:[%s196 + $0x5d0] sm:$0xff]
      %v665 = vld [vmem:[%s196 + $0x5d8] sm:$0xff]
      %v666 = vld [vmem:[%s196 + $0x5e0] sm:$0xff]
      %v667 = vld [vmem:[%s196 + $0x5e8] sm:$0xff]
      %v668 = vld [vmem:[%s196 + $0x5f0] sm:$0xff]
      %v669 = vld [vmem:[%s196 + $0x5f8] sm:$0xff]
      %v670 = vld [vmem:[%s196 + $0x600] sm:$0xff]
      %v671 = vld [vmem:[%s196 + $0x608] sm:$0xff]
      %v672 = vld [vmem:[%s196 + $0x610] sm:$0xff]
      %v673 = vld [vmem:[%s196 + $0x618] sm:$0xff]
      %v674 = vld [vmem:[%s196 + $0x620] sm:$0xff]
      %v675 = vld [vmem:[%s196 + $0x628] sm:$0xff]
      %v676 = vld [vmem:[%s196 + $0x630] sm:$0xff]
      %v677 = vld [vmem:[%s196 + $0x638] sm:$0xff]
      %v678 = vld [vmem:[%s196 + $0x640] sm:$0xff]
      %v679 = vld [vmem:[%s196 + $0x648] sm:$0xff]
      %v680 = vld [vmem:[%s196 + $0x650] sm:$0xff]
      %v681 = vld [vmem:[%s196 + $0x658] sm:$0xff]
      %v682 = vld [vmem:[%s196 + $0x660] sm:$0xff]
      %v683 = vld [vmem:[%s196 + $0x668] sm:$0xff]
      %v684 = vld [vmem:[%s196 + $0x670] sm:$0xff]
      %v685 = vld [vmem:[%s196 + $0x678] sm:$0xff]
      %v686 = vld [vmem:[%s196 + $0x680] sm:$0xff]
      %v687 = vld [vmem:[%s196 + $0x688] sm:$0xff]
      %v688 = vld [vmem:[%s196 + $0x690] sm:$0xff]
      %v689 = vld [vmem:[%s196 + $0x698] sm:$0xff]
      %v690 = vld [vmem:[%s196 + $0x6a0] sm:$0xff]
      %v691 = vld [vmem:[%s196 + $0x6a8] sm:$0xff]
      %v692 = vld [vmem:[%s196 + $0x6b0] sm:$0xff]
      %v693 = vld [vmem:[%s196 + $0x6b8] sm:$0xff]
      %v694 = vld [vmem:[%s196 + $0x6c0] sm:$0xff]
      %v695 = vld [vmem:[%s196 + $0x6c8] sm:$0xff]
      %v696 = vld [vmem:[%s196 + $0x6d0] sm:$0xff]
      %v697 = vld [vmem:[%s196 + $0x6d8] sm:$0xff]
      %v698 = vld [vmem:[%s196 + $0x6e0] sm:$0xff]
      %v699 = vld [vmem:[%s196 + $0x6e8] sm:$0xff]
      %v700 = vld [vmem:[%s196 + $0x6f0] sm:$0xff]
      %v701 = vld [vmem:[%s196 + $0x6f8] sm:$0xff]
      %v702 = vld [vmem:[%s196 + $0x700] sm:$0xff]
      %v703 = vld [vmem:[%s196 + $0x708] sm:$0xff]
      %v704 = vld [vmem:[%s196 + $0x710] sm:$0xff]
      %v705 = vld [vmem:[%s196 + $0x718] sm:$0xff]
      %v706 = vld [vmem:[%s196 + $0x720] sm:$0xff]
      %v707 = vld [vmem:[%s196 + $0x728] sm:$0xff]
      %v708 = vld [vmem:[%s196 + $0x730] sm:$0xff]
      %v709 = vld [vmem:[%s196 + $0x738] sm:$0xff]
      %v710 = vld [vmem:[%s196 + $0x740] sm:$0xff]
      %v711 = vld [vmem:[%s196 + $0x748] sm:$0xff]
      %v712 = vld [vmem:[%s196 + $0x750] sm:$0xff]
      %v713 = vld [vmem:[%s196 + $0x758] sm:$0xff]
      %v714 = vld [vmem:[%s196 + $0x760] sm:$0xff]
      %v715 = vld [vmem:[%s196 + $0x768] sm:$0xff]
      %v716 = vld [vmem:[%s196 + $0x770] sm:$0xff]
      %v717 = vld [vmem:[%s196 + $0x778] sm:$0xff]
      %v718 = vld [vmem:[%s196 + $0x780] sm:$0xff]
      %v719 = vld [vmem:[%s196 + $0x788] sm:$0xff]
      %v720 = vld [vmem:[%s196 + $0x790] sm:$0xff]
      %v721 = vld [vmem:[%s196 + $0x798] sm:$0xff]
      %v722 = vld [vmem:[%s196 + $0x7a0] sm:$0xff]
      %v723 = vld [vmem:[%s196 + $0x7a8] sm:$0xff]
      %v724 = vld [vmem:[%s196 + $0x7b0] sm:$0xff]
      %v725 = vld [vmem:[%s196 + $0x7b8] sm:$0xff]
      %v726 = vld [vmem:[%s196 + $0x7c0] sm:$0xff]
      %v727 = vld [vmem:[%s196 + $0x7c8] sm:$0xff]
      %v728 = vld [vmem:[%s196 + $0x7d0] sm:$0xff]
      %v729 = vld [vmem:[%s196 + $0x7d8] sm:$0xff]
      %v730 = vld [vmem:[%s196 + $0x7e0] sm:$0xff]
      %v731 = vld [vmem:[%s196 + $0x7e8] sm:$0xff]
      %v732 = vld [vmem:[%s196 + $0x7f0] sm:$0xff]
      %v733 = vld [vmem:[%s196 + $0x7f8] sm:$0xff]
      %v990 = vunpack.c.l.b16 %v478
      %v991 = vunpack.c.h.b16 %v478
      %v992 = vunpack.c.l.b16 %v479
      %v993 = vunpack.c.h.b16 %v479
      %v994 = vunpack.c.l.b16 %v480
      %v995 = vunpack.c.h.b16 %v480
      %v996 = vunpack.c.l.b16 %v481
      %v997 = vunpack.c.h.b16 %v481
      %v998 = vunpack.c.l.b16 %v482
      %v999 = vunpack.c.h.b16 %v482
      %v1000 = vunpack.c.l.b16 %v483
      %v1001 = vunpack.c.h.b16 %v483
      %v1002 = vunpack.c.l.b16 %v484
      %v1003 = vunpack.c.h.b16 %v484
      %v1004 = vunpack.c.l.b16 %v485
      %v1005 = vunpack.c.h.b16 %v485
      %v1006 = vunpack.c.l.b16 %v486
      %v1007 = vunpack.c.h.b16 %v486
      %v1008 = vunpack.c.l.b16 %v487
      %v1009 = vunpack.c.h.b16 %v487
      %v1010 = vunpack.c.l.b16 %v488
      %v1011 = vunpack.c.h.b16 %v488
      %v1012 = vunpack.c.l.b16 %v489
      %v1013 = vunpack.c.h.b16 %v489
      %v1014 = vunpack.c.l.b16 %v490
      %v1015 = vunpack.c.h.b16 %v490
      %v1016 = vunpack.c.l.b16 %v491
      %v1017 = vunpack.c.h.b16 %v491
      %v1018 = vunpack.c.l.b16 %v492
      %v1019 = vunpack.c.h.b16 %v492
      %v1020 = vunpack.c.l.b16 %v493
      %v1021 = vunpack.c.h.b16 %v493
      %v1022 = vunpack.c.l.b16 %v494
      %v1023 = vunpack.c.h.b16 %v494
      %v1024 = vunpack.c.l.b16 %v495
      %v1025 = vunpack.c.h.b16 %v495
      %v1026 = vunpack.c.l.b16 %v496
      %v1027 = vunpack.c.h.b16 %v496
      %v1028 = vunpack.c.l.b16 %v497
      %v1029 = vunpack.c.h.b16 %v497
      %v1030 = vunpack.c.l.b16 %v498
      %v1031 = vunpack.c.h.b16 %v498
      %v1032 = vunpack.c.l.b16 %v499
      %v1033 = vunpack.c.h.b16 %v499
      %v1034 = vunpack.c.l.b16 %v500
      %v1035 = vunpack.c.h.b16 %v500
      %v1036 = vunpack.c.l.b16 %v501
      %v1037 = vunpack.c.h.b16 %v501
      %v1038 = vunpack.c.l.b16 %v502
      %v1039 = vunpack.c.h.b16 %v502
      %v1040 = vunpack.c.l.b16 %v503
      %v1041 = vunpack.c.h.b16 %v503
      %v1042 = vunpack.c.l.b16 %v504
      %v1043 = vunpack.c.h.b16 %v504
      %v1044 = vunpack.c.l.b16 %v505
      %v1045 = vunpack.c.h.b16 %v505
      %v1046 = vunpack.c.l.b16 %v506
      %v1047 = vunpack.c.h.b16 %v506
      %v1048 = vunpack.c.l.b16 %v507
      %v1049 = vunpack.c.h.b16 %v507
      %v1050 = vunpack.c.l.b16 %v508
      %v1051 = vunpack.c.h.b16 %v508
      %v1052 = vunpack.c.l.b16 %v509
      %v1053 = vunpack.c.h.b16 %v509
      %v1054 = vunpack.c.l.b16 %v510
      %v1055 = vunpack.c.h.b16 %v510
      %v1056 = vunpack.c.l.b16 %v511
      %v1057 = vunpack.c.h.b16 %v511
      %v1058 = vunpack.c.l.b16 %v512
      %v1059 = vunpack.c.h.b16 %v512
      %v1060 = vunpack.c.l.b16 %v513
      %v1061 = vunpack.c.h.b16 %v513
      %v1062 = vunpack.c.l.b16 %v514
      %v1063 = vunpack.c.h.b16 %v514
      %v1064 = vunpack.c.l.b16 %v515
      %v1065 = vunpack.c.h.b16 %v515
      %v1066 = vunpack.c.l.b16 %v516
      %v1067 = vunpack.c.h.b16 %v516
      %v1068 = vunpack.c.l.b16 %v517
      %v1069 = vunpack.c.h.b16 %v517
      %v1070 = vunpack.c.l.b16 %v518
      %v1071 = vunpack.c.h.b16 %v518
      %v1072 = vunpack.c.l.b16 %v519
      %v1073 = vunpack.c.h.b16 %v519
      %v1074 = vunpack.c.l.b16 %v520
      %v1075 = vunpack.c.h.b16 %v520
      %v1076 = vunpack.c.l.b16 %v521
      %v1077 = vunpack.c.h.b16 %v521
      %v1078 = vunpack.c.l.b16 %v522
      %v1079 = vunpack.c.h.b16 %v522
      %v1080 = vunpack.c.l.b16 %v523
      %v1081 = vunpack.c.h.b16 %v523
      %v1082 = vunpack.c.l.b16 %v524
      %v1083 = vunpack.c.h.b16 %v524
      %v1084 = vunpack.c.l.b16 %v525
      %v1085 = vunpack.c.h.b16 %v525
      %v1086 = vunpack.c.l.b16 %v526
      %v1087 = vunpack.c.h.b16 %v526
      %v1088 = vunpack.c.l.b16 %v527
      %v1089 = vunpack.c.h.b16 %v527
      %v1090 = vunpack.c.l.b16 %v528
      %v1091 = vunpack.c.h.b16 %v528
      %v1092 = vunpack.c.l.b16 %v529
      %v1093 = vunpack.c.h.b16 %v529
      %v1094 = vunpack.c.l.b16 %v530
      %v1095 = vunpack.c.h.b16 %v530
      %v1096 = vunpack.c.l.b16 %v531
      %v1097 = vunpack.c.h.b16 %v531
      %v1098 = vunpack.c.l.b16 %v532
      %v1099 = vunpack.c.h.b16 %v532
      %v1100 = vunpack.c.l.b16 %v533
      %v1101 = vunpack.c.h.b16 %v533
      %v1102 = vunpack.c.l.b16 %v534
      %v1103 = vunpack.c.h.b16 %v534
      %v1104 = vunpack.c.l.b16 %v535
      %v1105 = vunpack.c.h.b16 %v535
      %v1106 = vunpack.c.l.b16 %v536
      %v1107 = vunpack.c.h.b16 %v536
      %v1108 = vunpack.c.l.b16 %v537
      %v1109 = vunpack.c.h.b16 %v537
      %v1110 = vunpack.c.l.b16 %v538
      %v1111 = vunpack.c.h.b16 %v538
      %v1112 = vunpack.c.l.b16 %v539
      %v1113 = vunpack.c.h.b16 %v539
      %v1114 = vunpack.c.l.b16 %v540
      %v1115 = vunpack.c.h.b16 %v540
      %v1116 = vunpack.c.l.b16 %v541
      %v1117 = vunpack.c.h.b16 %v541
      %v1118 = vunpack.c.l.b16 %v542
      %v1119 = vunpack.c.h.b16 %v542
      %v1120 = vunpack.c.l.b16 %v543
      %v1121 = vunpack.c.h.b16 %v543
      %v1122 = vunpack.c.l.b16 %v544
      %v1123 = vunpack.c.h.b16 %v544
      %v1124 = vunpack.c.l.b16 %v545
      %v1125 = vunpack.c.h.b16 %v545
      %v1126 = vunpack.c.l.b16 %v546
      %v1127 = vunpack.c.h.b16 %v546
      %v1128 = vunpack.c.l.b16 %v547
      %v1129 = vunpack.c.h.b16 %v547
      %v1130 = vunpack.c.l.b16 %v548
      %v1131 = vunpack.c.h.b16 %v548
      %v1132 = vunpack.c.l.b16 %v549
      %v1133 = vunpack.c.h.b16 %v549
      %v1134 = vunpack.c.l.b16 %v550
      %v1135 = vunpack.c.h.b16 %v550
      %v1136 = vunpack.c.l.b16 %v551
      %v1137 = vunpack.c.h.b16 %v551
      %v1138 = vunpack.c.l.b16 %v552
      %v1139 = vunpack.c.h.b16 %v552
      %v1140 = vunpack.c.l.b16 %v553
      %v1141 = vunpack.c.h.b16 %v553
      %v1142 = vunpack.c.l.b16 %v554
      %v1143 = vunpack.c.h.b16 %v554
      %v1144 = vunpack.c.l.b16 %v555
      %v1145 = vunpack.c.h.b16 %v555
      %v1146 = vunpack.c.l.b16 %v556
      %v1147 = vunpack.c.h.b16 %v556
      %v1148 = vunpack.c.l.b16 %v557
      %v1149 = vunpack.c.h.b16 %v557
      %v1150 = vunpack.c.l.b16 %v558
      %v1151 = vunpack.c.h.b16 %v558
      %v1152 = vunpack.c.l.b16 %v559
      %v1153 = vunpack.c.h.b16 %v559
      %v1154 = vunpack.c.l.b16 %v560
      %v1155 = vunpack.c.h.b16 %v560
      %v1156 = vunpack.c.l.b16 %v561
      %v1157 = vunpack.c.h.b16 %v561
      %v1158 = vunpack.c.l.b16 %v562
      %v1159 = vunpack.c.h.b16 %v562
      %v1160 = vunpack.c.l.b16 %v563
      %v1161 = vunpack.c.h.b16 %v563
      %v1162 = vunpack.c.l.b16 %v564
      %v1163 = vunpack.c.h.b16 %v564
      %v1164 = vunpack.c.l.b16 %v565
      %v1165 = vunpack.c.h.b16 %v565
      %v1166 = vunpack.c.l.b16 %v566
      %v1167 = vunpack.c.h.b16 %v566
      %v1168 = vunpack.c.l.b16 %v567
      %v1169 = vunpack.c.h.b16 %v567
      %v1170 = vunpack.c.l.b16 %v568
      %v1171 = vunpack.c.h.b16 %v568
      %v1172 = vunpack.c.l.b16 %v569
      %v1173 = vunpack.c.h.b16 %v569
      %v1174 = vunpack.c.l.b16 %v570
      %v1175 = vunpack.c.h.b16 %v570
      %v1176 = vunpack.c.l.b16 %v571
      %v1177 = vunpack.c.h.b16 %v571
      %v1178 = vunpack.c.l.b16 %v572
      %v1179 = vunpack.c.h.b16 %v572
      %v1180 = vunpack.c.l.b16 %v573
      %v1181 = vunpack.c.h.b16 %v573
      %v1182 = vunpack.c.l.b16 %v574
      %v1183 = vunpack.c.h.b16 %v574
      %v1184 = vunpack.c.l.b16 %v575
      %v1185 = vunpack.c.h.b16 %v575
      %v1186 = vunpack.c.l.b16 %v576
      %v1187 = vunpack.c.h.b16 %v576
      %v1188 = vunpack.c.l.b16 %v577
      %v1189 = vunpack.c.h.b16 %v577
      %v1190 = vunpack.c.l.b16 %v578
      %v1191 = vunpack.c.h.b16 %v578
      %v1192 = vunpack.c.l.b16 %v579
      %v1193 = vunpack.c.h.b16 %v579
      %v1194 = vunpack.c.l.b16 %v580
      %v1195 = vunpack.c.h.b16 %v580
      %v1196 = vunpack.c.l.b16 %v581
      %v1197 = vunpack.c.h.b16 %v581
      %v1198 = vunpack.c.l.b16 %v582
      %v1199 = vunpack.c.h.b16 %v582
      %v1200 = vunpack.c.l.b16 %v583
      %v1201 = vunpack.c.h.b16 %v583
      %v1202 = vunpack.c.l.b16 %v584
      %v1203 = vunpack.c.h.b16 %v584
      %v1204 = vunpack.c.l.b16 %v585
      %v1205 = vunpack.c.h.b16 %v585
      %v1206 = vunpack.c.l.b16 %v586
      %v1207 = vunpack.c.h.b16 %v586
      %v1208 = vunpack.c.l.b16 %v587
      %v1209 = vunpack.c.h.b16 %v587
      %v1210 = vunpack.c.l.b16 %v588
      %v1211 = vunpack.c.h.b16 %v588
      %v1212 = vunpack.c.l.b16 %v589
      %v1213 = vunpack.c.h.b16 %v589
      %v1214 = vunpack.c.l.b16 %v590
      %v1215 = vunpack.c.h.b16 %v590
      %v1216 = vunpack.c.l.b16 %v591
      %v1217 = vunpack.c.h.b16 %v591
      %v1218 = vunpack.c.l.b16 %v592
      %v1219 = vunpack.c.h.b16 %v592
      %v1220 = vunpack.c.l.b16 %v593
      %v1221 = vunpack.c.h.b16 %v593
      %v1222 = vunpack.c.l.b16 %v594
      %v1223 = vunpack.c.h.b16 %v594
      %v1224 = vunpack.c.l.b16 %v595
      %v1225 = vunpack.c.h.b16 %v595
      %v1226 = vunpack.c.l.b16 %v596
      %v1227 = vunpack.c.h.b16 %v596
      %v1228 = vunpack.c.l.b16 %v597
      %v1229 = vunpack.c.h.b16 %v597
      %v1230 = vunpack.c.l.b16 %v598
      %v1231 = vunpack.c.h.b16 %v598
      %v1232 = vunpack.c.l.b16 %v599
      %v1233 = vunpack.c.h.b16 %v599
      %v1234 = vunpack.c.l.b16 %v600
      %v1235 = vunpack.c.h.b16 %v600
      %v1236 = vunpack.c.l.b16 %v601
      %v1237 = vunpack.c.h.b16 %v601
      %v1238 = vunpack.c.l.b16 %v602
      %v1239 = vunpack.c.h.b16 %v602
      %v1240 = vunpack.c.l.b16 %v603
      %v1241 = vunpack.c.h.b16 %v603
      %v1242 = vunpack.c.l.b16 %v604
      %v1243 = vunpack.c.h.b16 %v604
      %v1244 = vunpack.c.l.b16 %v605
      %v1245 = vunpack.c.h.b16 %v605
      %v1246 = vunpack.c.l.b16 %v606
      %v1247 = vunpack.c.h.b16 %v606
      %v1248 = vunpack.c.l.b16 %v607
      %v1249 = vunpack.c.h.b16 %v607
      %v1250 = vunpack.c.l.b16 %v608
      %v1251 = vunpack.c.h.b16 %v608
      %v1252 = vunpack.c.l.b16 %v609
      %v1253 = vunpack.c.h.b16 %v609
      %v1254 = vunpack.c.l.b16 %v610
      %v1255 = vunpack.c.h.b16 %v610
      %v1256 = vunpack.c.l.b16 %v611
      %v1257 = vunpack.c.h.b16 %v611
      %v1258 = vunpack.c.l.b16 %v612
      %v1259 = vunpack.c.h.b16 %v612
      %v1260 = vunpack.c.l.b16 %v613
      %v1261 = vunpack.c.h.b16 %v613
      %v1262 = vunpack.c.l.b16 %v614
      %v1263 = vunpack.c.h.b16 %v614
      %v1264 = vunpack.c.l.b16 %v615
      %v1265 = vunpack.c.h.b16 %v615
      %v1266 = vunpack.c.l.b16 %v616
      %v1267 = vunpack.c.h.b16 %v616
      %v1268 = vunpack.c.l.b16 %v617
      %v1269 = vunpack.c.h.b16 %v617
      %v1270 = vunpack.c.l.b16 %v618
      %v1271 = vunpack.c.h.b16 %v618
      %v1272 = vunpack.c.l.b16 %v619
      %v1273 = vunpack.c.h.b16 %v619
      %v1274 = vunpack.c.l.b16 %v620
      %v1275 = vunpack.c.h.b16 %v620
      %v1276 = vunpack.c.l.b16 %v621
      %v1277 = vunpack.c.h.b16 %v621
      %v1278 = vunpack.c.l.b16 %v622
      %v1279 = vunpack.c.h.b16 %v622
      %v1280 = vunpack.c.l.b16 %v623
      %v1281 = vunpack.c.h.b16 %v623
      %v1282 = vunpack.c.l.b16 %v624
      %v1283 = vunpack.c.h.b16 %v624
      %v1284 = vunpack.c.l.b16 %v625
      %v1285 = vunpack.c.h.b16 %v625
      %v1286 = vunpack.c.l.b16 %v626
      %v1287 = vunpack.c.h.b16 %v626
      %v1288 = vunpack.c.l.b16 %v627
      %v1289 = vunpack.c.h.b16 %v627
      %v1290 = vunpack.c.l.b16 %v628
      %v1291 = vunpack.c.h.b16 %v628
      %v1292 = vunpack.c.l.b16 %v629
      %v1293 = vunpack.c.h.b16 %v629
      %v1294 = vunpack.c.l.b16 %v630
      %v1295 = vunpack.c.h.b16 %v630
      %v1296 = vunpack.c.l.b16 %v631
      %v1297 = vunpack.c.h.b16 %v631
      %v1298 = vunpack.c.l.b16 %v632
      %v1299 = vunpack.c.h.b16 %v632
      %v1300 = vunpack.c.l.b16 %v633
      %v1301 = vunpack.c.h.b16 %v633
      %v1302 = vunpack.c.l.b16 %v634
      %v1303 = vunpack.c.h.b16 %v634
      %v1304 = vunpack.c.l.b16 %v635
      %v1305 = vunpack.c.h.b16 %v635
      %v1306 = vunpack.c.l.b16 %v636
      %v1307 = vunpack.c.h.b16 %v636
      %v1308 = vunpack.c.l.b16 %v637
      %v1309 = vunpack.c.h.b16 %v637
      %v1310 = vunpack.c.l.b16 %v638
      %v1311 = vunpack.c.h.b16 %v638
      %v1312 = vunpack.c.l.b16 %v639
      %v1313 = vunpack.c.h.b16 %v639
      %v1314 = vunpack.c.l.b16 %v640
      %v1315 = vunpack.c.h.b16 %v640
      %v1316 = vunpack.c.l.b16 %v641
      %v1317 = vunpack.c.h.b16 %v641
      %v1318 = vunpack.c.l.b16 %v642
      %v1319 = vunpack.c.h.b16 %v642
      %v1320 = vunpack.c.l.b16 %v643
      %v1321 = vunpack.c.h.b16 %v643
      %v1322 = vunpack.c.l.b16 %v644
      %v1323 = vunpack.c.h.b16 %v644
      %v1324 = vunpack.c.l.b16 %v645
      %v1325 = vunpack.c.h.b16 %v645
      %v1326 = vunpack.c.l.b16 %v646
      %v1327 = vunpack.c.h.b16 %v646
      %v1328 = vunpack.c.l.b16 %v647
      %v1329 = vunpack.c.h.b16 %v647
      %v1330 = vunpack.c.l.b16 %v648
      %v1331 = vunpack.c.h.b16 %v648
      %v1332 = vunpack.c.l.b16 %v649
      %v1333 = vunpack.c.h.b16 %v649
      %v1334 = vunpack.c.l.b16 %v650
      %v1335 = vunpack.c.h.b16 %v650
      %v1336 = vunpack.c.l.b16 %v651
      %v1337 = vunpack.c.h.b16 %v651
      %v1338 = vunpack.c.l.b16 %v652
      %v1339 = vunpack.c.h.b16 %v652
      %v1340 = vunpack.c.l.b16 %v653
      %v1341 = vunpack.c.h.b16 %v653
      %v1342 = vunpack.c.l.b16 %v654
      %v1343 = vunpack.c.h.b16 %v654
      %v1344 = vunpack.c.l.b16 %v655
      %v1345 = vunpack.c.h.b16 %v655
      %v1346 = vunpack.c.l.b16 %v656
      %v1347 = vunpack.c.h.b16 %v656
      %v1348 = vunpack.c.l.b16 %v657
      %v1349 = vunpack.c.h.b16 %v657
      %v1350 = vunpack.c.l.b16 %v658
      %v1351 = vunpack.c.h.b16 %v658
      %v1352 = vunpack.c.l.b16 %v659
      %v1353 = vunpack.c.h.b16 %v659
      %v1354 = vunpack.c.l.b16 %v660
      %v1355 = vunpack.c.h.b16 %v660
      %v1356 = vunpack.c.l.b16 %v661
      %v1357 = vunpack.c.h.b16 %v661
      %v1358 = vunpack.c.l.b16 %v662
      %v1359 = vunpack.c.h.b16 %v662
      %v1360 = vunpack.c.l.b16 %v663
      %v1361 = vunpack.c.h.b16 %v663
      %v1362 = vunpack.c.l.b16 %v664
      %v1363 = vunpack.c.h.b16 %v664
      %v1364 = vunpack.c.l.b16 %v665
      %v1365 = vunpack.c.h.b16 %v665
      %v1366 = vunpack.c.l.b16 %v666
      %v1367 = vunpack.c.h.b16 %v666
      %v1368 = vunpack.c.l.b16 %v667
      %v1369 = vunpack.c.h.b16 %v667
      %v1370 = vunpack.c.l.b16 %v668
      %v1371 = vunpack.c.h.b16 %v668
      %v1372 = vunpack.c.l.b16 %v669
      %v1373 = vunpack.c.h.b16 %v669
      %v1374 = vunpack.c.l.b16 %v670
      %v1375 = vunpack.c.h.b16 %v670
      %v1376 = vunpack.c.l.b16 %v671
      %v1377 = vunpack.c.h.b16 %v671
      %v1378 = vunpack.c.l.b16 %v672
      %v1379 = vunpack.c.h.b16 %v672
      %v1380 = vunpack.c.l.b16 %v673
      %v1381 = vunpack.c.h.b16 %v673
      %v1382 = vunpack.c.l.b16 %v674
      %v1383 = vunpack.c.h.b16 %v674
      %v1384 = vunpack.c.l.b16 %v675
      %v1385 = vunpack.c.h.b16 %v675
      %v1386 = vunpack.c.l.b16 %v676
      %v1387 = vunpack.c.h.b16 %v676
      %v1388 = vunpack.c.l.b16 %v677
      %v1389 = vunpack.c.h.b16 %v677
      %v1390 = vunpack.c.l.b16 %v678
      %v1391 = vunpack.c.h.b16 %v678
      %v1392 = vunpack.c.l.b16 %v679
      %v1393 = vunpack.c.h.b16 %v679
      %v1394 = vunpack.c.l.b16 %v680
      %v1395 = vunpack.c.h.b16 %v680
      %v1396 = vunpack.c.l.b16 %v681
      %v1397 = vunpack.c.h.b16 %v681
      %v1398 = vunpack.c.l.b16 %v682
      %v1399 = vunpack.c.h.b16 %v682
      %v1400 = vunpack.c.l.b16 %v683
      %v1401 = vunpack.c.h.b16 %v683
      %v1402 = vunpack.c.l.b16 %v684
      %v1403 = vunpack.c.h.b16 %v684
      %v1404 = vunpack.c.l.b16 %v685
      %v1405 = vunpack.c.h.b16 %v685
      %v1406 = vunpack.c.l.b16 %v686
      %v1407 = vunpack.c.h.b16 %v686
      %v1408 = vunpack.c.l.b16 %v687
      %v1409 = vunpack.c.h.b16 %v687
      %v1410 = vunpack.c.l.b16 %v688
      %v1411 = vunpack.c.h.b16 %v688
      %v1412 = vunpack.c.l.b16 %v689
      %v1413 = vunpack.c.h.b16 %v689
      %v1414 = vunpack.c.l.b16 %v690
      %v1415 = vunpack.c.h.b16 %v690
      %v1416 = vunpack.c.l.b16 %v691
      %v1417 = vunpack.c.h.b16 %v691
      %v1418 = vunpack.c.l.b16 %v692
      %v1419 = vunpack.c.h.b16 %v692
      %v1420 = vunpack.c.l.b16 %v693
      %v1421 = vunpack.c.h.b16 %v693
      %v1422 = vunpack.c.l.b16 %v694
      %v1423 = vunpack.c.h.b16 %v694
      %v1424 = vunpack.c.l.b16 %v695
      %v1425 = vunpack.c.h.b16 %v695
      %v1426 = vunpack.c.l.b16 %v696
      %v1427 = vunpack.c.h.b16 %v696
      %v1428 = vunpack.c.l.b16 %v697
      %v1429 = vunpack.c.h.b16 %v697
      %v1430 = vunpack.c.l.b16 %v698
      %v1431 = vunpack.c.h.b16 %v698
      %v1432 = vunpack.c.l.b16 %v699
      %v1433 = vunpack.c.h.b16 %v699
      %v1434 = vunpack.c.l.b16 %v700
      %v1435 = vunpack.c.h.b16 %v700
      %v1436 = vunpack.c.l.b16 %v701
      %v1437 = vunpack.c.h.b16 %v701
      %v1438 = vunpack.c.l.b16 %v702
      %v1439 = vunpack.c.h.b16 %v702
      %v1440 = vunpack.c.l.b16 %v703
      %v1441 = vunpack.c.h.b16 %v703
      %v1442 = vunpack.c.l.b16 %v704
      %v1443 = vunpack.c.h.b16 %v704
      %v1444 = vunpack.c.l.b16 %v705
      %v1445 = vunpack.c.h.b16 %v705
      %v1446 = vunpack.c.l.b16 %v706
      %v1447 = vunpack.c.h.b16 %v706
      %v1448 = vunpack.c.l.b16 %v707
      %v1449 = vunpack.c.h.b16 %v707
      %v1450 = vunpack.c.l.b16 %v708
      %v1451 = vunpack.c.h.b16 %v708
      %v1452 = vunpack.c.l.b16 %v709
      %v1453 = vunpack.c.h.b16 %v709
      %v1454 = vunpack.c.l.b16 %v710
      %v1455 = vunpack.c.h.b16 %v710
      %v1456 = vunpack.c.l.b16 %v711
      %v1457 = vunpack.c.h.b16 %v711
      %v1458 = vunpack.c.l.b16 %v712
      %v1459 = vunpack.c.h.b16 %v712
      %v1460 = vunpack.c.l.b16 %v713
      %v1461 = vunpack.c.h.b16 %v713
      %v1462 = vunpack.c.l.b16 %v714
      %v1463 = vunpack.c.h.b16 %v714
      %v1464 = vunpack.c.l.b16 %v715
      %v1465 = vunpack.c.h.b16 %v715
      %v1466 = vunpack.c.l.b16 %v716
      %v1467 = vunpack.c.h.b16 %v716
      %v1468 = vunpack.c.l.b16 %v717
      %v1469 = vunpack.c.h.b16 %v717
      %v1470 = vunpack.c.l.b16 %v718
      %v1471 = vunpack.c.h.b16 %v718
      %v1472 = vunpack.c.l.b16 %v719
      %v1473 = vunpack.c.h.b16 %v719
      %v1474 = vunpack.c.l.b16 %v720
      %v1475 = vunpack.c.h.b16 %v720
      %v1476 = vunpack.c.l.b16 %v721
      %v1477 = vunpack.c.h.b16 %v721
      %v1478 = vunpack.c.l.b16 %v722
      %v1479 = vunpack.c.h.b16 %v722
      %v1480 = vunpack.c.l.b16 %v723
      %v1481 = vunpack.c.h.b16 %v723
      %v1482 = vunpack.c.l.b16 %v724
      %v1483 = vunpack.c.h.b16 %v724
      %v1484 = vunpack.c.l.b16 %v725
      %v1485 = vunpack.c.h.b16 %v725
      %v1486 = vunpack.c.l.b16 %v726
      %v1487 = vunpack.c.h.b16 %v726
      %v1488 = vunpack.c.l.b16 %v727
      %v1489 = vunpack.c.h.b16 %v727
      %v1490 = vunpack.c.l.b16 %v728
      %v1491 = vunpack.c.h.b16 %v728
      %v1492 = vunpack.c.l.b16 %v729
      %v1493 = vunpack.c.h.b16 %v729
      %v1494 = vunpack.c.l.b16 %v730
      %v1495 = vunpack.c.h.b16 %v730
      %v1496 = vunpack.c.l.b16 %v731
      %v1497 = vunpack.c.h.b16 %v731
      %v1498 = vunpack.c.l.b16 %v732
      %v1499 = vunpack.c.h.b16 %v732
      %v1500 = vunpack.c.l.b16 %v733
      %v1501 = vunpack.c.h.b16 %v733
      %v1502 = vpack.c.b16 %v998, %v990
      %v1503 = vpack.c.b16 %v999, %v991
      %v1504 = vpack.c.b16 %v1000, %v992
      %v1505 = vpack.c.b16 %v1001, %v993
      %v1506 = vpack.c.b16 %v1002, %v994
      %v1507 = vpack.c.b16 %v1003, %v995
      %v1508 = vpack.c.b16 %v1004, %v996
      %v1509 = vpack.c.b16 %v1005, %v997
      %v1510 = vpack.c.b16 %v1014, %v1006
      %v1511 = vpack.c.b16 %v1015, %v1007
      %v1512 = vpack.c.b16 %v1016, %v1008
      %v1513 = vpack.c.b16 %v1017, %v1009
      %v1514 = vpack.c.b16 %v1018, %v1010
      %v1515 = vpack.c.b16 %v1019, %v1011
      %v1516 = vpack.c.b16 %v1020, %v1012
      %v1517 = vpack.c.b16 %v1021, %v1013
      %v1518 = vpack.c.b16 %v1030, %v1022
      %v1519 = vpack.c.b16 %v1031, %v1023
      %v1520 = vpack.c.b16 %v1032, %v1024
      %v1521 = vpack.c.b16 %v1033, %v1025
      %v1522 = vpack.c.b16 %v1034, %v1026
      %v1523 = vpack.c.b16 %v1035, %v1027
      %v1524 = vpack.c.b16 %v1036, %v1028
      %v1525 = vpack.c.b16 %v1037, %v1029
      %v1526 = vpack.c.b16 %v1046, %v1038
      %v1527 = vpack.c.b16 %v1047, %v1039
      %v1528 = vpack.c.b16 %v1048, %v1040
      %v1529 = vpack.c.b16 %v1049, %v1041
      %v1530 = vpack.c.b16 %v1050, %v1042
      %v1531 = vpack.c.b16 %v1051, %v1043
      %v1532 = vpack.c.b16 %v1052, %v1044
      %v1533 = vpack.c.b16 %v1053, %v1045
      %v1534 = vpack.c.b16 %v1062, %v1054
      %v1535 = vpack.c.b16 %v1063, %v1055
      %v1536 = vpack.c.b16 %v1064, %v1056
      %v1537 = vpack.c.b16 %v1065, %v1057
      %v1538 = vpack.c.b16 %v1066, %v1058
      %v1539 = vpack.c.b16 %v1067, %v1059
      %v1540 = vpack.c.b16 %v1068, %v1060
      %v1541 = vpack.c.b16 %v1069, %v1061
      %v1542 = vpack.c.b16 %v1078, %v1070
      %v1543 = vpack.c.b16 %v1079, %v1071
      %v1544 = vpack.c.b16 %v1080, %v1072
      %v1545 = vpack.c.b16 %v1081, %v1073
      %v1546 = vpack.c.b16 %v1082, %v1074
      %v1547 = vpack.c.b16 %v1083, %v1075
      %v1548 = vpack.c.b16 %v1084, %v1076
      %v1549 = vpack.c.b16 %v1085, %v1077
      %v1550 = vpack.c.b16 %v1094, %v1086
      %v1551 = vpack.c.b16 %v1095, %v1087
      %v1552 = vpack.c.b16 %v1096, %v1088
      %v1553 = vpack.c.b16 %v1097, %v1089
      %v1554 = vpack.c.b16 %v1098, %v1090
      %v1555 = vpack.c.b16 %v1099, %v1091
      %v1556 = vpack.c.b16 %v1100, %v1092
      %v1557 = vpack.c.b16 %v1101, %v1093
      %v1558 = vpack.c.b16 %v1110, %v1102
      %v1559 = vpack.c.b16 %v1111, %v1103
      %v1560 = vpack.c.b16 %v1112, %v1104
      %v1561 = vpack.c.b16 %v1113, %v1105
      %v1562 = vpack.c.b16 %v1114, %v1106
      %v1563 = vpack.c.b16 %v1115, %v1107
      %v1564 = vpack.c.b16 %v1116, %v1108
      %v1565 = vpack.c.b16 %v1117, %v1109
      %v1566 = vpack.c.b16 %v1126, %v1118
      %v1567 = vpack.c.b16 %v1127, %v1119
      %v1568 = vpack.c.b16 %v1128, %v1120
      %v1569 = vpack.c.b16 %v1129, %v1121
      %v1570 = vpack.c.b16 %v1130, %v1122
      %v1571 = vpack.c.b16 %v1131, %v1123
      %v1572 = vpack.c.b16 %v1132, %v1124
      %v1573 = vpack.c.b16 %v1133, %v1125
      %v1574 = vpack.c.b16 %v1142, %v1134
      %v1575 = vpack.c.b16 %v1143, %v1135
      %v1576 = vpack.c.b16 %v1144, %v1136
      %v1577 = vpack.c.b16 %v1145, %v1137
      %v1578 = vpack.c.b16 %v1146, %v1138
      %v1579 = vpack.c.b16 %v1147, %v1139
      %v1580 = vpack.c.b16 %v1148, %v1140
      %v1581 = vpack.c.b16 %v1149, %v1141
      %v1582 = vpack.c.b16 %v1158, %v1150
      %v1583 = vpack.c.b16 %v1159, %v1151
      %v1584 = vpack.c.b16 %v1160, %v1152
      %v1585 = vpack.c.b16 %v1161, %v1153
      %v1586 = vpack.c.b16 %v1162, %v1154
      %v1587 = vpack.c.b16 %v1163, %v1155
      %v1588 = vpack.c.b16 %v1164, %v1156
      %v1589 = vpack.c.b16 %v1165, %v1157
      %v1590 = vpack.c.b16 %v1174, %v1166
      %v1591 = vpack.c.b16 %v1175, %v1167
      %v1592 = vpack.c.b16 %v1176, %v1168
      %v1593 = vpack.c.b16 %v1177, %v1169
      %v1594 = vpack.c.b16 %v1178, %v1170
      %v1595 = vpack.c.b16 %v1179, %v1171
      %v1596 = vpack.c.b16 %v1180, %v1172
      %v1597 = vpack.c.b16 %v1181, %v1173
      %v1598 = vpack.c.b16 %v1190, %v1182
      %v1599 = vpack.c.b16 %v1191, %v1183
      %v1600 = vpack.c.b16 %v1192, %v1184
      %v1601 = vpack.c.b16 %v1193, %v1185
      %v1602 = vpack.c.b16 %v1194, %v1186
      %v1603 = vpack.c.b16 %v1195, %v1187
      %v1604 = vpack.c.b16 %v1196, %v1188
      %v1605 = vpack.c.b16 %v1197, %v1189
      %v1606 = vpack.c.b16 %v1206, %v1198
      %v1607 = vpack.c.b16 %v1207, %v1199
      %v1608 = vpack.c.b16 %v1208, %v1200
      %v1609 = vpack.c.b16 %v1209, %v1201
      %v1610 = vpack.c.b16 %v1210, %v1202
      %v1611 = vpack.c.b16 %v1211, %v1203
      %v1612 = vpack.c.b16 %v1212, %v1204
      %v1613 = vpack.c.b16 %v1213, %v1205
      %v1614 = vpack.c.b16 %v1222, %v1214
      %v1615 = vpack.c.b16 %v1223, %v1215
      %v1616 = vpack.c.b16 %v1224, %v1216
      %v1617 = vpack.c.b16 %v1225, %v1217
      %v1618 = vpack.c.b16 %v1226, %v1218
      %v1619 = vpack.c.b16 %v1227, %v1219
      %v1620 = vpack.c.b16 %v1228, %v1220
      %v1621 = vpack.c.b16 %v1229, %v1221
      %v1622 = vpack.c.b16 %v1238, %v1230
      %v1623 = vpack.c.b16 %v1239, %v1231
      %v1624 = vpack.c.b16 %v1240, %v1232
      %v1625 = vpack.c.b16 %v1241, %v1233
      %v1626 = vpack.c.b16 %v1242, %v1234
      %v1627 = vpack.c.b16 %v1243, %v1235
      %v1628 = vpack.c.b16 %v1244, %v1236
      %v1629 = vpack.c.b16 %v1245, %v1237
      %v1630 = vpack.c.b16 %v1254, %v1246
      %v1631 = vpack.c.b16 %v1255, %v1247
      %v1632 = vpack.c.b16 %v1256, %v1248
      %v1633 = vpack.c.b16 %v1257, %v1249
      %v1634 = vpack.c.b16 %v1258, %v1250
      %v1635 = vpack.c.b16 %v1259, %v1251
      %v1636 = vpack.c.b16 %v1260, %v1252
      %v1637 = vpack.c.b16 %v1261, %v1253
      %v1638 = vpack.c.b16 %v1270, %v1262
      %v1639 = vpack.c.b16 %v1271, %v1263
      %v1640 = vpack.c.b16 %v1272, %v1264
      %v1641 = vpack.c.b16 %v1273, %v1265
      %v1642 = vpack.c.b16 %v1274, %v1266
      %v1643 = vpack.c.b16 %v1275, %v1267
      %v1644 = vpack.c.b16 %v1276, %v1268
      %v1645 = vpack.c.b16 %v1277, %v1269
      %v1646 = vpack.c.b16 %v1286, %v1278
      %v1647 = vpack.c.b16 %v1287, %v1279
      %v1648 = vpack.c.b16 %v1288, %v1280
      %v1649 = vpack.c.b16 %v1289, %v1281
      %v1650 = vpack.c.b16 %v1290, %v1282
      %v1651 = vpack.c.b16 %v1291, %v1283
      %v1652 = vpack.c.b16 %v1292, %v1284
      %v1653 = vpack.c.b16 %v1293, %v1285
      %v1654 = vpack.c.b16 %v1302, %v1294
      %v1655 = vpack.c.b16 %v1303, %v1295
      %v1656 = vpack.c.b16 %v1304, %v1296
      %v1657 = vpack.c.b16 %v1305, %v1297
      %v1658 = vpack.c.b16 %v1306, %v1298
      %v1659 = vpack.c.b16 %v1307, %v1299
      %v1660 = vpack.c.b16 %v1308, %v1300
      %v1661 = vpack.c.b16 %v1309, %v1301
      %v1662 = vpack.c.b16 %v1318, %v1310
      %v1663 = vpack.c.b16 %v1319, %v1311
      %v1664 = vpack.c.b16 %v1320, %v1312
      %v1665 = vpack.c.b16 %v1321, %v1313
      %v1666 = vpack.c.b16 %v1322, %v1314
      %v1667 = vpack.c.b16 %v1323, %v1315
      %v1668 = vpack.c.b16 %v1324, %v1316
      %v1669 = vpack.c.b16 %v1325, %v1317
      %v1670 = vpack.c.b16 %v1334, %v1326
      %v1671 = vpack.c.b16 %v1335, %v1327
      %v1672 = vpack.c.b16 %v1336, %v1328
      %v1673 = vpack.c.b16 %v1337, %v1329
      %v1674 = vpack.c.b16 %v1338, %v1330
      %v1675 = vpack.c.b16 %v1339, %v1331
      %v1676 = vpack.c.b16 %v1340, %v1332
      %v1677 = vpack.c.b16 %v1341, %v1333
      %v1678 = vpack.c.b16 %v1350, %v1342
      %v1679 = vpack.c.b16 %v1351, %v1343
      %v1680 = vpack.c.b16 %v1352, %v1344
      %v1681 = vpack.c.b16 %v1353, %v1345
      %v1682 = vpack.c.b16 %v1354, %v1346
      %v1683 = vpack.c.b16 %v1355, %v1347
      %v1684 = vpack.c.b16 %v1356, %v1348
      %v1685 = vpack.c.b16 %v1357, %v1349
      %v1686 = vpack.c.b16 %v1366, %v1358
      %v1687 = vpack.c.b16 %v1367, %v1359
      %v1688 = vpack.c.b16 %v1368, %v1360
      %v1689 = vpack.c.b16 %v1369, %v1361
      %v1690 = vpack.c.b16 %v1370, %v1362
      %v1691 = vpack.c.b16 %v1371, %v1363
      %v1692 = vpack.c.b16 %v1372, %v1364
      %v1693 = vpack.c.b16 %v1373, %v1365
      %v1694 = vpack.c.b16 %v1382, %v1374
      %v1695 = vpack.c.b16 %v1383, %v1375
      %v1696 = vpack.c.b16 %v1384, %v1376
      %v1697 = vpack.c.b16 %v1385, %v1377
      %v1698 = vpack.c.b16 %v1386, %v1378
      %v1699 = vpack.c.b16 %v1387, %v1379
      %v1700 = vpack.c.b16 %v1388, %v1380
      %v1701 = vpack.c.b16 %v1389, %v1381
      %v1702 = vpack.c.b16 %v1398, %v1390
      %v1703 = vpack.c.b16 %v1399, %v1391
      %v1704 = vpack.c.b16 %v1400, %v1392
      %v1705 = vpack.c.b16 %v1401, %v1393
      %v1706 = vpack.c.b16 %v1402, %v1394
      %v1707 = vpack.c.b16 %v1403, %v1395
      %v1708 = vpack.c.b16 %v1404, %v1396
      %v1709 = vpack.c.b16 %v1405, %v1397
      %v1710 = vpack.c.b16 %v1414, %v1406
      %v1711 = vpack.c.b16 %v1415, %v1407
      %v1712 = vpack.c.b16 %v1416, %v1408
      %v1713 = vpack.c.b16 %v1417, %v1409
      %v1714 = vpack.c.b16 %v1418, %v1410
      %v1715 = vpack.c.b16 %v1419, %v1411
      %v1716 = vpack.c.b16 %v1420, %v1412
      %v1717 = vpack.c.b16 %v1421, %v1413
      %v1718 = vpack.c.b16 %v1430, %v1422
      %v1719 = vpack.c.b16 %v1431, %v1423
      %v1720 = vpack.c.b16 %v1432, %v1424
      %v1721 = vpack.c.b16 %v1433, %v1425
      %v1722 = vpack.c.b16 %v1434, %v1426
      %v1723 = vpack.c.b16 %v1435, %v1427
      %v1724 = vpack.c.b16 %v1436, %v1428
      %v1725 = vpack.c.b16 %v1437, %v1429
      %v1726 = vpack.c.b16 %v1446, %v1438
      %v1727 = vpack.c.b16 %v1447, %v1439
      %v1728 = vpack.c.b16 %v1448, %v1440
      %v1729 = vpack.c.b16 %v1449, %v1441
      %v1730 = vpack.c.b16 %v1450, %v1442
      %v1731 = vpack.c.b16 %v1451, %v1443
      %v1732 = vpack.c.b16 %v1452, %v1444
      %v1733 = vpack.c.b16 %v1453, %v1445
      %v1734 = vpack.c.b16 %v1462, %v1454
      %v1735 = vpack.c.b16 %v1463, %v1455
      %v1736 = vpack.c.b16 %v1464, %v1456
      %v1737 = vpack.c.b16 %v1465, %v1457
      %v1738 = vpack.c.b16 %v1466, %v1458
      %v1739 = vpack.c.b16 %v1467, %v1459
      %v1740 = vpack.c.b16 %v1468, %v1460
      %v1741 = vpack.c.b16 %v1469, %v1461
      %v1742 = vpack.c.b16 %v1478, %v1470
      %v1743 = vpack.c.b16 %v1479, %v1471
      %v1744 = vpack.c.b16 %v1480, %v1472
      %v1745 = vpack.c.b16 %v1481, %v1473
      %v1746 = vpack.c.b16 %v1482, %v1474
      %v1747 = vpack.c.b16 %v1483, %v1475
      %v1748 = vpack.c.b16 %v1484, %v1476
      %v1749 = vpack.c.b16 %v1485, %v1477
      %v1750 = vpack.c.b16 %v1494, %v1486
      %v1751 = vpack.c.b16 %v1495, %v1487
      %v1752 = vpack.c.b16 %v1496, %v1488
      %v1753 = vpack.c.b16 %v1497, %v1489
      %v1754 = vpack.c.b16 %v1498, %v1490
      %v1755 = vpack.c.b16 %v1499, %v1491
      %v1756 = vpack.c.b16 %v1500, %v1492
      %v1757 = vpack.c.b16 %v1501, %v1493
      %v2142 = vunpack.c.l.b16 %v286
      %v2143 = vunpack.c.l.b16 %v287
      %v2144 = vunpack.c.l.b16 %v288
      %v2145 = vunpack.c.l.b16 %v289
      %v2146 = vunpack.c.l.b16 %v290
      %v2147 = vunpack.c.l.b16 %v291
      %v2148 = vunpack.c.l.b16 %v292
      %v2149 = vunpack.c.l.b16 %v293
      %v2150 = vunpack.c.l.b16 %v294
      %v2151 = vunpack.c.l.b16 %v295
      %v2152 = vunpack.c.l.b16 %v296
      %v2153 = vunpack.c.l.b16 %v297
      %v2154 = vunpack.c.l.b16 %v298
      %v2155 = vunpack.c.l.b16 %v299
      %v2156 = vunpack.c.l.b16 %v300
      %v2157 = vunpack.c.l.b16 %v301
      %v2158 = vunpack.c.l.b16 %v302
      %v2159 = vunpack.c.l.b16 %v303
      %v2160 = vunpack.c.l.b16 %v304
      %v2161 = vunpack.c.l.b16 %v305
      %v2162 = vunpack.c.l.b16 %v306
      %v2163 = vunpack.c.l.b16 %v307
      %v2164 = vunpack.c.l.b16 %v308
      %v2165 = vunpack.c.l.b16 %v309
      %v2166 = vunpack.c.l.b16 %v310
      %v2167 = vunpack.c.l.b16 %v311
      %v2168 = vunpack.c.l.b16 %v312
      %v2169 = vunpack.c.l.b16 %v313
      %v2170 = vunpack.c.l.b16 %v314
      %v2171 = vunpack.c.l.b16 %v315
      %v2172 = vunpack.c.l.b16 %v316
      %v2173 = vunpack.c.l.b16 %v317
      %v2174 = vunpack.c.l.b16 %v318
      %v2175 = vunpack.c.l.b16 %v319
      %v2176 = vunpack.c.l.b16 %v320
      %v2177 = vunpack.c.l.b16 %v321
      %v2178 = vunpack.c.l.b16 %v322
      %v2179 = vunpack.c.l.b16 %v323
      %v2180 = vunpack.c.l.b16 %v324
      %v2181 = vunpack.c.l.b16 %v325
      %v2182 = vunpack.c.l.b16 %v326
      %v2183 = vunpack.c.l.b16 %v327
      %v2184 = vunpack.c.l.b16 %v328
      %v2185 = vunpack.c.l.b16 %v329
      %v2186 = vunpack.c.l.b16 %v330
      %v2187 = vunpack.c.l.b16 %v331
      %v2188 = vunpack.c.l.b16 %v332
      %v2189 = vunpack.c.l.b16 %v333
      %v2190 = vunpack.c.l.b16 %v334
      %v2191 = vunpack.c.l.b16 %v335
      %v2192 = vunpack.c.l.b16 %v336
      %v2193 = vunpack.c.l.b16 %v337
      %v2194 = vunpack.c.l.b16 %v338
      %v2195 = vunpack.c.l.b16 %v339
      %v2196 = vunpack.c.l.b16 %v340
      %v2197 = vunpack.c.l.b16 %v341
      %v2198 = vunpack.c.l.b16 %v342
      %v2199 = vunpack.c.l.b16 %v343
      %v2200 = vunpack.c.l.b16 %v344
      %v2201 = vunpack.c.l.b16 %v345
      %v2202 = vunpack.c.l.b16 %v346
      %v2203 = vunpack.c.l.b16 %v347
      %v2204 = vunpack.c.l.b16 %v348
      %v2205 = vunpack.c.l.b16 %v349
      %v2206 = vunpack.c.l.b16 %v350
      %v2207 = vunpack.c.l.b16 %v351
      %v2208 = vunpack.c.l.b16 %v352
      %v2209 = vunpack.c.l.b16 %v353
      %v2210 = vunpack.c.l.b16 %v354
      %v2211 = vunpack.c.l.b16 %v355
      %v2212 = vunpack.c.l.b16 %v356
      %v2213 = vunpack.c.l.b16 %v357
      %v2214 = vunpack.c.l.b16 %v358
      %v2215 = vunpack.c.l.b16 %v359
      %v2216 = vunpack.c.l.b16 %v360
      %v2217 = vunpack.c.l.b16 %v361
      %v2218 = vunpack.c.l.b16 %v362
      %v2219 = vunpack.c.l.b16 %v363
      %v2220 = vunpack.c.l.b16 %v364
      %v2221 = vunpack.c.l.b16 %v365
      %v2222 = vunpack.c.l.b16 %v366
      %v2223 = vunpack.c.l.b16 %v367
      %v2224 = vunpack.c.l.b16 %v368
      %v2225 = vunpack.c.l.b16 %v369
      %v2226 = vunpack.c.l.b16 %v370
      %v2227 = vunpack.c.l.b16 %v371
      %v2228 = vunpack.c.l.b16 %v372
      %v2229 = vunpack.c.l.b16 %v373
      %v2230 = vunpack.c.l.b16 %v374
      %v2231 = vunpack.c.l.b16 %v375
      %v2232 = vunpack.c.l.b16 %v376
      %v2233 = vunpack.c.l.b16 %v377
      %v2234 = vunpack.c.l.b16 %v378
      %v2235 = vunpack.c.l.b16 %v379
      %v2236 = vunpack.c.l.b16 %v380
      %v2237 = vunpack.c.l.b16 %v381
      %v2238 = vunpack.c.l.b16 %v382
      %v2239 = vunpack.c.l.b16 %v383
      %v2240 = vunpack.c.l.b16 %v384
      %v2241 = vunpack.c.l.b16 %v385
      %v2242 = vunpack.c.l.b16 %v386
      %v2243 = vunpack.c.l.b16 %v387
      %v2244 = vunpack.c.l.b16 %v388
      %v2245 = vunpack.c.l.b16 %v389
      %v2246 = vunpack.c.l.b16 %v390
      %v2247 = vunpack.c.l.b16 %v391
      %v2248 = vunpack.c.l.b16 %v392
      %v2249 = vunpack.c.l.b16 %v393
      %v2250 = vunpack.c.l.b16 %v394
      %v2251 = vunpack.c.l.b16 %v395
      %v2252 = vunpack.c.l.b16 %v396
      %v2253 = vunpack.c.l.b16 %v397
      %v2254 = vunpack.c.l.b16 %v398
      %v2255 = vunpack.c.l.b16 %v399
      %v2256 = vunpack.c.l.b16 %v400
      %v2257 = vunpack.c.l.b16 %v401
      %v2258 = vunpack.c.l.b16 %v402
      %v2259 = vunpack.c.l.b16 %v403
      %v2260 = vunpack.c.l.b16 %v404
      %v2261 = vunpack.c.l.b16 %v405
      %v2262 = vunpack.c.l.b16 %v406
      %v2263 = vunpack.c.l.b16 %v407
      %v2264 = vunpack.c.l.b16 %v408
      %v2265 = vunpack.c.l.b16 %v409
      %v2266 = vunpack.c.l.b16 %v410
      %v2267 = vunpack.c.l.b16 %v411
      %v2268 = vunpack.c.l.b16 %v412
      %v2269 = vunpack.c.l.b16 %v413
      %v2270 = vpack.c.b16 %v2143, %v2142
      %v2271 = vpack.c.b16 %v2145, %v2144
      %v2272 = vpack.c.b16 %v2147, %v2146
      %v2273 = vpack.c.b16 %v2149, %v2148
      %v2274 = vpack.c.b16 %v2151, %v2150
      %v2275 = vpack.c.b16 %v2153, %v2152
      %v2276 = vpack.c.b16 %v2155, %v2154
      %v2277 = vpack.c.b16 %v2157, %v2156
      %v2278 = vpack.c.b16 %v2159, %v2158
      %v2279 = vpack.c.b16 %v2161, %v2160
      %v2280 = vpack.c.b16 %v2163, %v2162
      %v2281 = vpack.c.b16 %v2165, %v2164
      %v2282 = vpack.c.b16 %v2167, %v2166
      %v2283 = vpack.c.b16 %v2169, %v2168
      %v2284 = vpack.c.b16 %v2171, %v2170
      %v2285 = vpack.c.b16 %v2173, %v2172
      %v2286 = vpack.c.b16 %v2175, %v2174
      %v2287 = vpack.c.b16 %v2177, %v2176
      %v2288 = vpack.c.b16 %v2179, %v2178
      %v2289 = vpack.c.b16 %v2181, %v2180
      %v2290 = vpack.c.b16 %v2183, %v2182
      %v2291 = vpack.c.b16 %v2185, %v2184
      %v2292 = vpack.c.b16 %v2187, %v2186
      %v2293 = vpack.c.b16 %v2189, %v2188
      %v2294 = vpack.c.b16 %v2191, %v2190
      %v2295 = vpack.c.b16 %v2193, %v2192
      %v2296 = vpack.c.b16 %v2195, %v2194
      %v2297 = vpack.c.b16 %v2197, %v2196
      %v2298 = vpack.c.b16 %v2199, %v2198
      %v2299 = vpack.c.b16 %v2201, %v2200
      %v2300 = vpack.c.b16 %v2203, %v2202
      %v2301 = vpack.c.b16 %v2205, %v2204
      %v2302 = vpack.c.b16 %v2207, %v2206
      %v2303 = vpack.c.b16 %v2209, %v2208
      %v2304 = vpack.c.b16 %v2211, %v2210
      %v2305 = vpack.c.b16 %v2213, %v2212
      %v2306 = vpack.c.b16 %v2215, %v2214
      %v2307 = vpack.c.b16 %v2217, %v2216
      %v2308 = vpack.c.b16 %v2219, %v2218
      %v2309 = vpack.c.b16 %v2221, %v2220
      %v2310 = vpack.c.b16 %v2223, %v2222
      %v2311 = vpack.c.b16 %v2225, %v2224
      %v2312 = vpack.c.b16 %v2227, %v2226
      %v2313 = vpack.c.b16 %v2229, %v2228
      %v2314 = vpack.c.b16 %v2231, %v2230
      %v2315 = vpack.c.b16 %v2233, %v2232
      %v2316 = vpack.c.b16 %v2235, %v2234
      %v2317 = vpack.c.b16 %v2237, %v2236
      %v2318 = vpack.c.b16 %v2239, %v2238
      %v2319 = vpack.c.b16 %v2241, %v2240
      %v2320 = vpack.c.b16 %v2243, %v2242
      %v2321 = vpack.c.b16 %v2245, %v2244
      %v2322 = vpack.c.b16 %v2247, %v2246
      %v2323 = vpack.c.b16 %v2249, %v2248
      %v2324 = vpack.c.b16 %v2251, %v2250
      %v2325 = vpack.c.b16 %v2253, %v2252
      %v2326 = vpack.c.b16 %v2255, %v2254
      %v2327 = vpack.c.b16 %v2257, %v2256
      %v2328 = vpack.c.b16 %v2259, %v2258
      %v2329 = vpack.c.b16 %v2261, %v2260
      %v2330 = vpack.c.b16 %v2263, %v2262
      %v2331 = vpack.c.b16 %v2265, %v2264
      %v2332 = vpack.c.b16 %v2267, %v2266
      %v2333 = vpack.c.b16 %v2269, %v2268
      %2398 = vmatprep.subr.bf16.mxu0 0
      %2399 = vmatpush1.bf16.msra.mxu0 %v2270
      %2400 = vmatprep.subr.bf16.mxu0 0
      %2401 = vmatpush1.bf16.msra.mxu0 %v2271
      %2402 = vmatprep.subr.bf16.mxu0 0
      %2403 = vmatpush1.bf16.msra.mxu0 %v2272
      %2404 = vmatprep.subr.bf16.mxu0 0
      %2405 = vmatpush1.bf16.msra.mxu0 %v2273
      %2406 = vmatprep.subr.bf16.mxu0 0
      %2407 = vmatpush1.bf16.msra.mxu0 %v2274
      %2408 = vmatprep.subr.bf16.mxu0 0
      %2409 = vmatpush1.bf16.msra.mxu0 %v2275
      %2410 = vmatprep.subr.bf16.mxu0 0
      %2411 = vmatpush1.bf16.msra.mxu0 %v2276
      %2412 = vmatprep.subr.bf16.mxu0 0
      %2413 = vmatpush1.bf16.msra.mxu0 %v2277
      %2414 = vmatprep.subr.bf16.mxu0 0
      %2415 = vmatpush1.bf16.msra.mxu0 %v2278
      %2416 = vmatprep.subr.bf16.mxu0 0
      %2417 = vmatpush1.bf16.msra.mxu0 %v2279
      %2418 = vmatprep.subr.bf16.mxu0 0
      %2419 = vmatpush1.bf16.msra.mxu0 %v2280
      %2420 = vmatprep.subr.bf16.mxu0 0
      %2421 = vmatpush1.bf16.msra.mxu0 %v2281
      %2422 = vmatprep.subr.bf16.mxu0 0
      %2423 = vmatpush1.bf16.msra.mxu0 %v2282
      %2424 = vmatprep.subr.bf16.mxu0 0
      %2425 = vmatpush1.bf16.msra.mxu0 %v2283
      %2426 = vmatprep.subr.bf16.mxu0 0
      %2427 = vmatpush1.bf16.msra.mxu0 %v2284
      %2428 = vmatprep.subr.bf16.mxu0 0
      %2429 = vmatpush1.bf16.msra.mxu0 %v2285
      %2430 = vmatprep.mubr.bf16.mxu0 %v1503
      %2431 = vmatmul.mubr.bf16.gmra.mrb[0].mxu0 %v1502
      %v2432 = vpop.f32.mrb[0].mxu0
      %v2433 = vadd.f32 0.0, %v2432
      %v2434 = vpop.f32.mrb[0].mxu0
      %v2435 = vpop.f32.mrb[0].mxu0
      %v2436 = vadd.f32 0.0, %v2435
      %v2437 = vpop.f32.mrb[0].mxu0
      %2438 = vmatprep.mubr.bf16.mxu0 %v1511
      %2439 = vmatmul.mubr.bf16.gmra.mrb[0].mxu0 %v1510
      %v2440 = vpop.f32.mrb[0].mxu0
      %v2441 = vadd.f32 0.0, %v2440
      %v2442 = vpop.f32.mrb[0].mxu0
      %v2443 = vpop.f32.mrb[0].mxu0
      %v2444 = vadd.f32 0.0, %v2443
      %v2445 = vpop.f32.mrb[0].mxu0
      %2446 = vmatprep.mubr.bf16.mxu0 %v1519
      %2447 = vmatmul.mubr.bf16.gmra.mrb[0].mxu0 %v1518
      %v2448 = vpop.f32.mrb[0].mxu0
      %v2449 = vadd.f32 0.0, %v2448
      %v2450 = vpop.f32.mrb[0].mxu0
      %v2451 = vpop.f32.mrb[0].mxu0
      %v2452 = vadd.f32 0.0, %v2451
      %v2453 = vpop.f32.mrb[0].mxu0
      %2454 = vmatprep.mubr.bf16.mxu0 %v1527
      %2455 = vmatmul.mubr.bf16.gmra.mrb[0].mxu0 %v1526
      %v2456 = vpop.f32.mrb[0].mxu0
      %v2457 = vadd.f32 0.0, %v2456
      %v2458 = vpop.f32.mrb[0].mxu0
      %v2459 = vpop.f32.mrb[0].mxu0
      %v2460 = vadd.f32 0.0, %v2459
      %v2461 = vpop.f32.mrb[0].mxu0
      %2462 = vmatprep.mubr.bf16.mxu0 %v1535
      %2463 = vmatmul.mubr.bf16.gmra.mrb[0].mxu0 %v1534
      %v2464 = vpop.f32.mrb[0].mxu0
      %v2465 = vadd.f32 0.0, %v2464
      %v2466 = vpop.f32.mrb[0].mxu0
      %v2467 = vpop.f32.mrb[0].mxu0
      %v2468 = vadd.f32 0.0, %v2467
      %v2469 = vpop.f32.mrb[0].mxu0
      %2470 = vmatprep.mubr.bf16.mxu0 %v1543
      %2471 = vmatmul.mubr.bf16.gmra.mrb[0].mxu0 %v1542
      %v2472 = vpop.f32.mrb[0].mxu0
      %v2473 = vadd.f32 0.0, %v2472
      %v2474 = vpop.f32.mrb[0].mxu0
      %v2475 = vpop.f32.mrb[0].mxu0
      %v2476 = vadd.f32 0.0, %v2475
      %v2477 = vpop.f32.mrb[0].mxu0
      %2478 = vmatprep.mubr.bf16.mxu0 %v1551
      %2479 = vmatmul.mubr.bf16.gmra.mrb[0].mxu0 %v1550
      %v2480 = vpop.f32.mrb[0].mxu0
      %v2481 = vadd.f32 0.0, %v2480
      %v2482 = vpop.f32.mrb[0].mxu0
      %v2483 = vpop.f32.mrb[0].mxu0
      %v2484 = vadd.f32 0.0, %v2483
      %v2485 = vpop.f32.mrb[0].mxu0
      %2486 = vmatprep.mubr.bf16.mxu0 %v1559
      %2487 = vmatmul.mubr.bf16.gmra.mrb[0].mxu0 %v1558
      %v2488 = vpop.f32.mrb[0].mxu0
      %v2489 = vadd.f32 0.0, %v2488
      %v2490 = vpop.f32.mrb[0].mxu0
      %v2491 = vpop.f32.mrb[0].mxu0
      %v2492 = vadd.f32 0.0, %v2491
      %v2493 = vpop.f32.mrb[0].mxu0
      %2494 = vmatprep.mubr.bf16.mxu0 %v1567
      %2495 = vmatmul.mubr.bf16.gmra.mrb[0].mxu0 %v1566
      %v2496 = vpop.f32.mrb[0].mxu0
      %v2497 = vadd.f32 0.0, %v2496
      %v2498 = vpop.f32.mrb[0].mxu0
      %v2499 = vpop.f32.mrb[0].mxu0
      %v2500 = vadd.f32 0.0, %v2499
      %v2501 = vpop.f32.mrb[0].mxu0
      %2502 = vmatprep.mubr.bf16.mxu0 %v1575
      %2503 = vmatmul.mubr.bf16.gmra.mrb[0].mxu0 %v1574
      %v2504 = vpop.f32.mrb[0].mxu0
      %v2505 = vadd.f32 0.0, %v2504
      %v2506 = vpop.f32.mrb[0].mxu0
      %v2507 = vpop.f32.mrb[0].mxu0
      %v2508 = vadd.f32 0.0, %v2507
      %v2509 = vpop.f32.mrb[0].mxu0
      %2510 = vmatprep.mubr.bf16.mxu0 %v1583
      %2511 = vmatmul.mubr.bf16.gmra.mrb[0].mxu0 %v1582
      %v2512 = vpop.f32.mrb[0].mxu0
      %v2513 = vadd.f32 0.0, %v2512
      %v2514 = vpop.f32.mrb[0].mxu0
      %v2515 = vpop.f32.mrb[0].mxu0
      %v2516 = vadd.f32 0.0, %v2515
      %v2517 = vpop.f32.mrb[0].mxu0
      %2518 = vmatprep.mubr.bf16.mxu0 %v1591
      %2519 = vmatmul.mubr.bf16.gmra.mrb[0].mxu0 %v1590
      %v2520 = vpop.f32.mrb[0].mxu0
      %v2521 = vadd.f32 0.0, %v2520
      %v2522 = vpop.f32.mrb[0].mxu0
      %v2523 = vpop.f32.mrb[0].mxu0
      %v2524 = vadd.f32 0.0, %v2523
      %v2525 = vpop.f32.mrb[0].mxu0
      %2526 = vmatprep.mubr.bf16.mxu0 %v1599
      %2527 = vmatmul.mubr.bf16.gmra.mrb[0].mxu0 %v1598
      %v2528 = vpop.f32.mrb[0].mxu0
      %v2529 = vadd.f32 0.0, %v2528
      %v2530 = vpop.f32.mrb[0].mxu0
      %v2531 = vpop.f32.mrb[0].mxu0
      %v2532 = vadd.f32 0.0, %v2531
      %v2533 = vpop.f32.mrb[0].mxu0
      %2534 = vmatprep.mubr.bf16.mxu0 %v1607
      %2535 = vmatmul.mubr.bf16.gmra.mrb[0].mxu0 %v1606
      %v2536 = vpop.f32.mrb[0].mxu0
      %v2537 = vadd.f32 0.0, %v2536
      %v2538 = vpop.f32.mrb[0].mxu0
      %v2539 = vpop.f32.mrb[0].mxu0
      %v2540 = vadd.f32 0.0, %v2539
      %v2541 = vpop.f32.mrb[0].mxu0
      %2542 = vmatprep.mubr.bf16.mxu0 %v1615
      %2543 = vmatmul.mubr.bf16.gmra.mrb[0].mxu0 %v1614
      %v2544 = vpop.f32.mrb[0].mxu0
      %v2545 = vadd.f32 0.0, %v2544
      %v2546 = vpop.f32.mrb[0].mxu0
      %v2547 = vpop.f32.mrb[0].mxu0
      %v2548 = vadd.f32 0.0, %v2547
      %v2549 = vpop.f32.mrb[0].mxu0
      %2550 = vmatprep.mubr.bf16.mxu0 %v1623
      %2551 = vmatmul.mubr.bf16.gmra.mrb[0].mxu0 %v1622
      %v2552 = vpop.f32.mrb[0].mxu0
      %v2553 = vadd.f32 0.0, %v2552
      %v2554 = vpop.f32.mrb[0].mxu0
      %v2555 = vpop.f32.mrb[0].mxu0
      %v2556 = vadd.f32 0.0, %v2555
      %v2557 = vpop.f32.mrb[0].mxu0
      %2558 = vmatprep.mubr.bf16.mxu0 %v1631
      %2559 = vmatmul.mubr.bf16.gmra.mrb[0].mxu0 %v1630
      %v2560 = vpop.f32.mrb[0].mxu0
      %v2561 = vadd.f32 0.0, %v2560
      %v2562 = vpop.f32.mrb[0].mxu0
      %v2563 = vpop.f32.mrb[0].mxu0
      %v2564 = vadd.f32 0.0, %v2563
      %v2565 = vpop.f32.mrb[0].mxu0
      %2566 = vmatprep.mubr.bf16.mxu0 %v1639
      %2567 = vmatmul.mubr.bf16.gmra.mrb[0].mxu0 %v1638
      %v2568 = vpop.f32.mrb[0].mxu0
      %v2569 = vadd.f32 0.0, %v2568
      %v2570 = vpop.f32.mrb[0].mxu0
      %v2571 = vpop.f32.mrb[0].mxu0
      %v2572 = vadd.f32 0.0, %v2571
      %v2573 = vpop.f32.mrb[0].mxu0
      %2574 = vmatprep.mubr.bf16.mxu0 %v1647
      %2575 = vmatmul.mubr.bf16.gmra.mrb[0].mxu0 %v1646
      %v2576 = vpop.f32.mrb[0].mxu0
      %v2577 = vadd.f32 0.0, %v2576
      %v2578 = vpop.f32.mrb[0].mxu0
      %v2579 = vpop.f32.mrb[0].mxu0
      %v2580 = vadd.f32 0.0, %v2579
      %v2581 = vpop.f32.mrb[0].mxu0
      %2582 = vmatprep.mubr.bf16.mxu0 %v1655
      %2583 = vmatmul.mubr.bf16.gmra.mrb[0].mxu0 %v1654
      %v2584 = vpop.f32.mrb[0].mxu0
      %v2585 = vadd.f32 0.0, %v2584
      %v2586 = vpop.f32.mrb[0].mxu0
      %v2587 = vpop.f32.mrb[0].mxu0
      %v2588 = vadd.f32 0.0, %v2587
      %v2589 = vpop.f32.mrb[0].mxu0
      %2590 = vmatprep.mubr.bf16.mxu0 %v1663
      %2591 = vmatmul.mubr.bf16.gmra.mrb[0].mxu0 %v1662
      %v2592 = vpop.f32.mrb[0].mxu0
      %v2593 = vadd.f32 0.0, %v2592
      %v2594 = vpop.f32.mrb[0].mxu0
      %v2595 = vpop.f32.mrb[0].mxu0
      %v2596 = vadd.f32 0.0, %v2595
      %v2597 = vpop.f32.mrb[0].mxu0
      %2598 = vmatprep.mubr.bf16.mxu0 %v1671
      %2599 = vmatmul.mubr.bf16.gmra.mrb[0].mxu0 %v1670
      %v2600 = vpop.f32.mrb[0].mxu0
      %v2601 = vadd.f32 0.0, %v2600
      %v2602 = vpop.f32.mrb[0].mxu0
      %v2603 = vpop.f32.mrb[0].mxu0
      %v2604 = vadd.f32 0.0, %v2603
      %v2605 = vpop.f32.mrb[0].mxu0
      %2606 = vmatprep.mubr.bf16.mxu0 %v1679
      %2607 = vmatmul.mubr.bf16.gmra.mrb[0].mxu0 %v1678
      %v2608 = vpop.f32.mrb[0].mxu0
      %v2609 = vadd.f32 0.0, %v2608
      %v2610 = vpop.f32.mrb[0].mxu0
      %v2611 = vpop.f32.mrb[0].mxu0
      %v2612 = vadd.f32 0.0, %v2611
      %v2613 = vpop.f32.mrb[0].mxu0
      %2614 = vmatprep.mubr.bf16.mxu0 %v1687
      %2615 = vmatmul.mubr.bf16.gmra.mrb[0].mxu0 %v1686
      %v2616 = vpop.f32.mrb[0].mxu0
      %v2617 = vadd.f32 0.0, %v2616
      %v2618 = vpop.f32.mrb[0].mxu0
      %v2619 = vpop.f32.mrb[0].mxu0
      %v2620 = vadd.f32 0.0, %v2619
      %v2621 = vpop.f32.mrb[0].mxu0
      %2622 = vmatprep.mubr.bf16.mxu0 %v1695
      %2623 = vmatmul.mubr.bf16.gmra.mrb[0].mxu0 %v1694
      %v2624 = vpop.f32.mrb[0].mxu0
      %v2625 = vadd.f32 0.0, %v2624
      %v2626 = vpop.f32.mrb[0].mxu0
      %v2627 = vpop.f32.mrb[0].mxu0
      %v2628 = vadd.f32 0.0, %v2627
      %v2629 = vpop.f32.mrb[0].mxu0
      %2630 = vmatprep.mubr.bf16.mxu0 %v1703
      %2631 = vmatmul.mubr.bf16.gmra.mrb[0].mxu0 %v1702
      %v2632 = vpop.f32.mrb[0].mxu0
      %v2633 = vadd.f32 0.0, %v2632
      %v2634 = vpop.f32.mrb[0].mxu0
      %v2635 = vpop.f32.mrb[0].mxu0
      %v2636 = vadd.f32 0.0, %v2635
      %v2637 = vpop.f32.mrb[0].mxu0
      %2638 = vmatprep.mubr.bf16.mxu0 %v1711
      %2639 = vmatmul.mubr.bf16.gmra.mrb[0].mxu0 %v1710
      %v2640 = vpop.f32.mrb[0].mxu0
      %v2641 = vadd.f32 0.0, %v2640
      %v2642 = vpop.f32.mrb[0].mxu0
      %v2643 = vpop.f32.mrb[0].mxu0
      %v2644 = vadd.f32 0.0, %v2643
      %v2645 = vpop.f32.mrb[0].mxu0
      %2646 = vmatprep.mubr.bf16.mxu0 %v1719
      %2647 = vmatmul.mubr.bf16.gmra.mrb[0].mxu0 %v1718
      %v2648 = vpop.f32.mrb[0].mxu0
      %v2649 = vadd.f32 0.0, %v2648
      %v2650 = vpop.f32.mrb[0].mxu0
      %v2651 = vpop.f32.mrb[0].mxu0
      %v2652 = vadd.f32 0.0, %v2651
      %v2653 = vpop.f32.mrb[0].mxu0
      %2654 = vmatprep.mubr.bf16.mxu0 %v1727
      %2655 = vmatmul.mubr.bf16.gmra.mrb[0].mxu0 %v1726
      %v2656 = vpop.f32.mrb[0].mxu0
      %v2657 = vadd.f32 0.0, %v2656
      %v2658 = vpop.f32.mrb[0].mxu0
      %v2659 = vpop.f32.mrb[0].mxu0
      %v2660 = vadd.f32 0.0, %v2659
      %v2661 = vpop.f32.mrb[0].mxu0
      %2662 = vmatprep.mubr.bf16.mxu0 %v1735
      %2663 = vmatmul.mubr.bf16.gmra.mrb[0].mxu0 %v1734
      %v2664 = vpop.f32.mrb[0].mxu0
      %v2665 = vadd.f32 0.0, %v2664
      %v2666 = vpop.f32.mrb[0].mxu0
      %v2667 = vpop.f32.mrb[0].mxu0
      %v2668 = vadd.f32 0.0, %v2667
      %v2669 = vpop.f32.mrb[0].mxu0
      %2670 = vmatprep.mubr.bf16.mxu0 %v1743
      %2671 = vmatmul.mubr.bf16.gmra.mrb[0].mxu0 %v1742
      %v2672 = vpop.f32.mrb[0].mxu0
      %v2673 = vadd.f32 0.0, %v2672
      %v2674 = vpop.f32.mrb[0].mxu0
      %v2675 = vpop.f32.mrb[0].mxu0
      %v2676 = vadd.f32 0.0, %v2675
      %v2677 = vpop.f32.mrb[0].mxu0
      %2678 = vmatprep.mubr.bf16.mxu0 %v1751
      %2679 = vmatmul.mubr.bf16.gmra.mrb[0].mxu0 %v1750
      %v2680 = vpop.f32.mrb[0].mxu0
      %v2681 = vadd.f32 0.0, %v2680
      %v2682 = vpop.f32.mrb[0].mxu0
      %v2683 = vpop.f32.mrb[0].mxu0
      %v2684 = vadd.f32 0.0, %v2683
      %v2685 = vpop.f32.mrb[0].mxu0
      %2686 = vdwg.mxu0
      %2687 = vmatprep.subr.bf16.mxu0 0
      %2688 = vmatpush1.bf16.msra.mxu0 %v2286
      %2689 = vmatprep.subr.bf16.mxu0 0
      %2690 = vmatpush1.bf16.msra.mxu0 %v2287
      %2691 = vmatprep.subr.bf16.mxu0 0
      %2692 = vmatpush1.bf16.msra.mxu0 %v2288
      %2693 = vmatprep.subr.bf16.mxu0 0
      %2694 = vmatpush1.bf16.msra.mxu0 %v2289
      %2695 = vmatprep.subr.bf16.mxu0 0
      %2696 = vmatpush1.bf16.msra.mxu0 %v2290
      %2697 = vmatprep.subr.bf16.mxu0 0
      %2698 = vmatpush1.bf16.msra.mxu0 %v2291
      %2699 = vmatprep.subr.bf16.mxu0 0
      %2700 = vmatpush1.bf16.msra.mxu0 %v2292
      %2701 = vmatprep.subr.bf16.mxu0 0
      %2702 = vmatpush1.bf16.msra.mxu0 %v2293
      %2703 = vmatprep.subr.bf16.mxu0 0
      %2704 = vmatpush1.bf16.msra.mxu0 %v2294
      %2705 = vmatprep.subr.bf16.mxu0 0
      %2706 = vmatpush1.bf16.msra.mxu0 %v2295
      %2707 = vmatprep.subr.bf16.mxu0 0
      %2708 = vmatpush1.bf16.msra.mxu0 %v2296
      %2709 = vmatprep.subr.bf16.mxu0 0
      %2710 = vmatpush1.bf16.msra.mxu0 %v2297
      %2711 = vmatprep.subr.bf16.mxu0 0
      %2712 = vmatpush1.bf16.msra.mxu0 %v2298
      %2713 = vmatprep.subr.bf16.mxu0 0
      %2714 = vmatpush1.bf16.msra.mxu0 %v2299
      %2715 = vmatprep.subr.bf16.mxu0 0
      %2716 = vmatpush1.bf16.msra.mxu0 %v2300
      %2717 = vmatprep.subr.bf16.mxu0 0
      %2718 = vmatpush1.bf16.msra.mxu0 %v2301
      %2719 = vmatprep.mubr.bf16.mxu0 %v1505
      %2720 = vmatmul.mubr.bf16.gmra.mrb[0].mxu0 %v1504
      %v2721 = vpop.f32.mrb[0].mxu0
      %v2722 = vadd.f32 %v2433, %v2721
      %v2723 = vpop.f32.mrb[0].mxu0
      %v2724 = vpop.f32.mrb[0].mxu0
      %v2725 = vadd.f32 %v2436, %v2724
      %v2726 = vpop.f32.mrb[0].mxu0
      %2727 = vmatprep.mubr.bf16.mxu0 %v1513
      %2728 = vmatmul.mubr.bf16.gmra.mrb[0].mxu0 %v1512
      %v2729 = vpop.f32.mrb[0].mxu0
      %v2730 = vadd.f32 %v2441, %v2729
      %v2731 = vpop.f32.mrb[0].mxu0
      %v2732 = vpop.f32.mrb[0].mxu0
      %v2733 = vadd.f32 %v2444, %v2732
      %v2734 = vpop.f32.mrb[0].mxu0
      %2735 = vmatprep.mubr.bf16.mxu0 %v1521
      %2736 = vmatmul.mubr.bf16.gmra.mrb[0].mxu0 %v1520
      %v2737 = vpop.f32.mrb[0].mxu0
      %v2738 = vadd.f32 %v2449, %v2737
      %v2739 = vpop.f32.mrb[0].mxu0
      %v2740 = vpop.f32.mrb[0].mxu0
      %v2741 = vadd.f32 %v2452, %v2740
      %v2742 = vpop.f32.mrb[0].mxu0
      %2743 = vmatprep.mubr.bf16.mxu0 %v1529
      %2744 = vmatmul.mubr.bf16.gmra.mrb[0].mxu0 %v1528
      %v2745 = vpop.f32.mrb[0].mxu0
      %v2746 = vadd.f32 %v2457, %v2745
      %v2747 = vpop.f32.mrb[0].mxu0
      %v2748 = vpop.f32.mrb[0].mxu0
      %v2749 = vadd.f32 %v2460, %v2748
      %v2750 = vpop.f32.mrb[0].mxu0
      %2751 = vmatprep.mubr.bf16.mxu0 %v1537
      %2752 = vmatmul.mubr.bf16.gmra.mrb[0].mxu0 %v1536
      %v2753 = vpop.f32.mrb[0].mxu0
      %v2754 = vadd.f32 %v2465, %v2753
      %v2755 = vpop.f32.mrb[0].mxu0
      %v2756 = vpop.f32.mrb[0].mxu0
      %v2757 = vadd.f32 %v2468, %v2756
      %v2758 = vpop.f32.mrb[0].mxu0
      %2759 = vmatprep.mubr.bf16.mxu0 %v1545
      %2760 = vmatmul.mubr.bf16.gmra.mrb[0].mxu0 %v1544
      %v2761 = vpop.f32.mrb[0].mxu0
      %v2762 = vadd.f32 %v2473, %v2761
      %v2763 = vpop.f32.mrb[0].mxu0
      %v2764 = vpop.f32.mrb[0].mxu0
      %v2765 = vadd.f32 %v2476, %v2764
      %v2766 = vpop.f32.mrb[0].mxu0
      %2767 = vmatprep.mubr.bf16.mxu0 %v1553
      %2768 = vmatmul.mubr.bf16.gmra.mrb[0].mxu0 %v1552
      %v2769 = vpop.f32.mrb[0].mxu0
      %v2770 = vadd.f32 %v2481, %v2769
      %v2771 = vpop.f32.mrb[0].mxu0
      %v2772 = vpop.f32.mrb[0].mxu0
      %v2773 = vadd.f32 %v2484, %v2772
      %v2774 = vpop.f32.mrb[0].mxu0
      %2775 = vmatprep.mubr.bf16.mxu0 %v1561
      %2776 = vmatmul.mubr.bf16.gmra.mrb[0].mxu0 %v1560
      %v2777 = vpop.f32.mrb[0].mxu0
      %v2778 = vadd.f32 %v2489, %v2777
      %v2779 = vpop.f32.mrb[0].mxu0
      %v2780 = vpop.f32.mrb[0].mxu0
      %v2781 = vadd.f32 %v2492, %v2780
      %v2782 = vpop.f32.mrb[0].mxu0
      %2783 = vmatprep.mubr.bf16.mxu0 %v1569
      %2784 = vmatmul.mubr.bf16.gmra.mrb[0].mxu0 %v1568
      %v2785 = vpop.f32.mrb[0].mxu0
      %v2786 = vadd.f32 %v2497, %v2785
      %v2787 = vpop.f32.mrb[0].mxu0
      %v2788 = vpop.f32.mrb[0].mxu0
      %v2789 = vadd.f32 %v2500, %v2788
      %v2790 = vpop.f32.mrb[0].mxu0
      %2791 = vmatprep.mubr.bf16.mxu0 %v1577
      %2792 = vmatmul.mubr.bf16.gmra.mrb[0].mxu0 %v1576
      %v2793 = vpop.f32.mrb[0].mxu0
      %v2794 = vadd.f32 %v2505, %v2793
      %v2795 = vpop.f32.mrb[0].mxu0
      %v2796 = vpop.f32.mrb[0].mxu0
      %v2797 = vadd.f32 %v2508, %v2796
      %v2798 = vpop.f32.mrb[0].mxu0
      %2799 = vmatprep.mubr.bf16.mxu0 %v1585
      %2800 = vmatmul.mubr.bf16.gmra.mrb[0].mxu0 %v1584
      %v2801 = vpop.f32.mrb[0].mxu0
      %v2802 = vadd.f32 %v2513, %v2801
      %v2803 = vpop.f32.mrb[0].mxu0
      %v2804 = vpop.f32.mrb[0].mxu0
      %v2805 = vadd.f32 %v2516, %v2804
      %v2806 = vpop.f32.mrb[0].mxu0
      %2807 = vmatprep.mubr.bf16.mxu0 %v1593
      %2808 = vmatmul.mubr.bf16.gmra.mrb[0].mxu0 %v1592
      %v2809 = vpop.f32.mrb[0].mxu0
      %v2810 = vadd.f32 %v2521, %v2809
      %v2811 = vpop.f32.mrb[0].mxu0
      %v2812 = vpop.f32.mrb[0].mxu0
      %v2813 = vadd.f32 %v2524, %v2812
      %v2814 = vpop.f32.mrb[0].mxu0
      %2815 = vmatprep.mubr.bf16.mxu0 %v1601
      %2816 = vmatmul.mubr.bf16.gmra.mrb[0].mxu0 %v1600
      %v2817 = vpop.f32.mrb[0].mxu0
      %v2818 = vadd.f32 %v2529, %v2817
      %v2819 = vpop.f32.mrb[0].mxu0
      %v2820 = vpop.f32.mrb[0].mxu0
      %v2821 = vadd.f32 %v2532, %v2820
      %v2822 = vpop.f32.mrb[0].mxu0
      %2823 = vmatprep.mubr.bf16.mxu0 %v1609
      %2824 = vmatmul.mubr.bf16.gmra.mrb[0].mxu0 %v1608
      %v2825 = vpop.f32.mrb[0].mxu0
      %v2826 = vadd.f32 %v2537, %v2825
      %v2827 = vpop.f32.mrb[0].mxu0
      %v2828 = vpop.f32.mrb[0].mxu0
      %v2829 = vadd.f32 %v2540, %v2828
      %v2830 = vpop.f32.mrb[0].mxu0
      %2831 = vmatprep.mubr.bf16.mxu0 %v1617
      %2832 = vmatmul.mubr.bf16.gmra.mrb[0].mxu0 %v1616
      %v2833 = vpop.f32.mrb[0].mxu0
      %v2834 = vadd.f32 %v2545, %v2833
      %v2835 = vpop.f32.mrb[0].mxu0
      %v2836 = vpop.f32.mrb[0].mxu0
      %v2837 = vadd.f32 %v2548, %v2836
      %v2838 = vpop.f32.mrb[0].mxu0
      %2839 = vmatprep.mubr.bf16.mxu0 %v1625
      %2840 = vmatmul.mubr.bf16.gmra.mrb[0].mxu0 %v1624
      %v2841 = vpop.f32.mrb[0].mxu0
      %v2842 = vadd.f32 %v2553, %v2841
      %v2843 = vpop.f32.mrb[0].mxu0
      %v2844 = vpop.f32.mrb[0].mxu0
      %v2845 = vadd.f32 %v2556, %v2844
      %v2846 = vpop.f32.mrb[0].mxu0
      %2847 = vmatprep.mubr.bf16.mxu0 %v1633
      %2848 = vmatmul.mubr.bf16.gmra.mrb[0].mxu0 %v1632
      %v2849 = vpop.f32.mrb[0].mxu0
      %v2850 = vadd.f32 %v2561, %v2849
      %v2851 = vpop.f32.mrb[0].mxu0
      %v2852 = vpop.f32.mrb[0].mxu0
      %v2853 = vadd.f32 %v2564, %v2852
      %v2854 = vpop.f32.mrb[0].mxu0
      %2855 = vmatprep.mubr.bf16.mxu0 %v1641
      %2856 = vmatmul.mubr.bf16.gmra.mrb[0].mxu0 %v1640
      %v2857 = vpop.f32.mrb[0].mxu0
      %v2858 = vadd.f32 %v2569, %v2857
      %v2859 = vpop.f32.mrb[0].mxu0
      %v2860 = vpop.f32.mrb[0].mxu0
      %v2861 = vadd.f32 %v2572, %v2860
      %v2862 = vpop.f32.mrb[0].mxu0
      %2863 = vmatprep.mubr.bf16.mxu0 %v1649
      %2864 = vmatmul.mubr.bf16.gmra.mrb[0].mxu0 %v1648
      %v2865 = vpop.f32.mrb[0].mxu0
      %v2866 = vadd.f32 %v2577, %v2865
      %v2867 = vpop.f32.mrb[0].mxu0
      %v2868 = vpop.f32.mrb[0].mxu0
      %v2869 = vadd.f32 %v2580, %v2868
      %v2870 = vpop.f32.mrb[0].mxu0
      %2871 = vmatprep.mubr.bf16.mxu0 %v1657
      %2872 = vmatmul.mubr.bf16.gmra.mrb[0].mxu0 %v1656
      %v2873 = vpop.f32.mrb[0].mxu0
      %v2874 = vadd.f32 %v2585, %v2873
      %v2875 = vpop.f32.mrb[0].mxu0
      %v2876 = vpop.f32.mrb[0].mxu0
      %v2877 = vadd.f32 %v2588, %v2876
      %v2878 = vpop.f32.mrb[0].mxu0
      %2879 = vmatprep.mubr.bf16.mxu0 %v1665
      %2880 = vmatmul.mubr.bf16.gmra.mrb[0].mxu0 %v1664
      %v2881 = vpop.f32.mrb[0].mxu0
      %v2882 = vadd.f32 %v2593, %v2881
      %v2883 = vpop.f32.mrb[0].mxu0
      %v2884 = vpop.f32.mrb[0].mxu0
      %v2885 = vadd.f32 %v2596, %v2884
      %v2886 = vpop.f32.mrb[0].mxu0
      %2887 = vmatprep.mubr.bf16.mxu0 %v1673
      %2888 = vmatmul.mubr.bf16.gmra.mrb[0].mxu0 %v1672
      %v2889 = vpop.f32.mrb[0].mxu0
      %v2890 = vadd.f32 %v2601, %v2889
      %v2891 = vpop.f32.mrb[0].mxu0
      %v2892 = vpop.f32.mrb[0].mxu0
      %v2893 = vadd.f32 %v2604, %v2892
      %v2894 = vpop.f32.mrb[0].mxu0
      %2895 = vmatprep.mubr.bf16.mxu0 %v1681
      %2896 = vmatmul.mubr.bf16.gmra.mrb[0].mxu0 %v1680
      %v2897 = vpop.f32.mrb[0].mxu0
      %v2898 = vadd.f32 %v2609, %v2897
      %v2899 = vpop.f32.mrb[0].mxu0
      %v2900 = vpop.f32.mrb[0].mxu0
      %v2901 = vadd.f32 %v2612, %v2900
      %v2902 = vpop.f32.mrb[0].mxu0
      %2903 = vmatprep.mubr.bf16.mxu0 %v1689
      %2904 = vmatmul.mubr.bf16.gmra.mrb[0].mxu0 %v1688
      %v2905 = vpop.f32.mrb[0].mxu0
      %v2906 = vadd.f32 %v2617, %v2905
      %v2907 = vpop.f32.mrb[0].mxu0
      %v2908 = vpop.f32.mrb[0].mxu0
      %v2909 = vadd.f32 %v2620, %v2908
      %v2910 = vpop.f32.mrb[0].mxu0
      %2911 = vmatprep.mubr.bf16.mxu0 %v1697
      %2912 = vmatmul.mubr.bf16.gmra.mrb[0].mxu0 %v1696
      %v2913 = vpop.f32.mrb[0].mxu0
      %v2914 = vadd.f32 %v2625, %v2913
      %v2915 = vpop.f32.mrb[0].mxu0
      %v2916 = vpop.f32.mrb[0].mxu0
      %v2917 = vadd.f32 %v2628, %v2916
      %v2918 = vpop.f32.mrb[0].mxu0
      %2919 = vmatprep.mubr.bf16.mxu0 %v1705
      %2920 = vmatmul.mubr.bf16.gmra.mrb[0].mxu0 %v1704
      %v2921 = vpop.f32.mrb[0].mxu0
      %v2922 = vadd.f32 %v2633, %v2921
      %v2923 = vpop.f32.mrb[0].mxu0
      %v2924 = vpop.f32.mrb[0].mxu0
      %v2925 = vadd.f32 %v2636, %v2924
      %v2926 = vpop.f32.mrb[0].mxu0
      %2927 = vmatprep.mubr.bf16.mxu0 %v1713
      %2928 = vmatmul.mubr.bf16.gmra.mrb[0].mxu0 %v1712
      %v2929 = vpop.f32.mrb[0].mxu0
      %v2930 = vadd.f32 %v2641, %v2929
      %v2931 = vpop.f32.mrb[0].mxu0
      %v2932 = vpop.f32.mrb[0].mxu0
      %v2933 = vadd.f32 %v2644, %v2932
      %v2934 = vpop.f32.mrb[0].mxu0
      %2935 = vmatprep.mubr.bf16.mxu0 %v1721
      %2936 = vmatmul.mubr.bf16.gmra.mrb[0].mxu0 %v1720
      %v2937 = vpop.f32.mrb[0].mxu0
      %v2938 = vadd.f32 %v2649, %v2937
      %v2939 = vpop.f32.mrb[0].mxu0
      %v2940 = vpop.f32.mrb[0].mxu0
      %v2941 = vadd.f32 %v2652, %v2940
      %v2942 = vpop.f32.mrb[0].mxu0
      %2943 = vmatprep.mubr.bf16.mxu0 %v1729
      %2944 = vmatmul.mubr.bf16.gmra.mrb[0].mxu0 %v1728
      %v2945 = vpop.f32.mrb[0].mxu0
      %v2946 = vadd.f32 %v2657, %v2945
      %v2947 = vpop.f32.mrb[0].mxu0
      %v2948 = vpop.f32.mrb[0].mxu0
      %v2949 = vadd.f32 %v2660, %v2948
      %v2950 = vpop.f32.mrb[0].mxu0
      %2951 = vmatprep.mubr.bf16.mxu0 %v1737
      %2952 = vmatmul.mubr.bf16.gmra.mrb[0].mxu0 %v1736
      %v2953 = vpop.f32.mrb[0].mxu0
      %v2954 = vadd.f32 %v2665, %v2953
      %v2955 = vpop.f32.mrb[0].mxu0
      %v2956 = vpop.f32.mrb[0].mxu0
      %v2957 = vadd.f32 %v2668, %v2956
      %v2958 = vpop.f32.mrb[0].mxu0
      %2959 = vmatprep.mubr.bf16.mxu0 %v1745
      %2960 = vmatmul.mubr.bf16.gmra.mrb[0].mxu0 %v1744
      %v2961 = vpop.f32.mrb[0].mxu0
      %v2962 = vadd.f32 %v2673, %v2961
      %v2963 = vpop.f32.mrb[0].mxu0
      %v2964 = vpop.f32.mrb[0].mxu0
      %v2965 = vadd.f32 %v2676, %v2964
      %v2966 = vpop.f32.mrb[0].mxu0
      %2967 = vmatprep.mubr.bf16.mxu0 %v1753
      %2968 = vmatmul.mubr.bf16.gmra.mrb[0].mxu0 %v1752
      %v2969 = vpop.f32.mrb[0].mxu0
      %v2970 = vadd.f32 %v2681, %v2969
      %v2971 = vpop.f32.mrb[0].mxu0
      %v2972 = vpop.f32.mrb[0].mxu0
      %v2973 = vadd.f32 %v2684, %v2972
      %v2974 = vpop.f32.mrb[0].mxu0
      %2975 = vdwg.mxu0
      %2976 = vmatprep.subr.bf16.mxu0 0
      %2977 = vmatpush1.bf16.msra.mxu0 %v2302
      %2978 = vmatprep.subr.bf16.mxu0 0
      %2979 = vmatpush1.bf16.msra.mxu0 %v2303
      %2980 = vmatprep.subr.bf16.mxu0 0
      %2981 = vmatpush1.bf16.msra.mxu0 %v2304
      %2982 = vmatprep.subr.bf16.mxu0 0
      %2983 = vmatpush1.bf16.msra.mxu0 %v2305
      %2984 = vmatprep.subr.bf16.mxu0 0
      %2985 = vmatpush1.bf16.msra.mxu0 %v2306
      %2986 = vmatprep.subr.bf16.mxu0 0
      %2987 = vmatpush1.bf16.msra.mxu0 %v2307
      %2988 = vmatprep.subr.bf16.mxu0 0
      %2989 = vmatpush1.bf16.msra.mxu0 %v2308
      %2990 = vmatprep.subr.bf16.mxu0 0
      %2991 = vmatpush1.bf16.msra.mxu0 %v2309
      %2992 = vmatprep.subr.bf16.mxu0 0
      %2993 = vmatpush1.bf16.msra.mxu0 %v2310
      %2994 = vmatprep.subr.bf16.mxu0 0
      %2995 = vmatpush1.bf16.msra.mxu0 %v2311
      %2996 = vmatprep.subr.bf16.mxu0 0
      %2997 = vmatpush1.bf16.msra.mxu0 %v2312
      %2998 = vmatprep.subr.bf16.mxu0 0
      %2999 = vmatpush1.bf16.msra.mxu0 %v2313
      %3000 = vmatprep.subr.bf16.mxu0 0
      %3001 = vmatpush1.bf16.msra.mxu0 %v2314
      %3002 = vmatprep.subr.bf16.mxu0 0
      %3003 = vmatpush1.bf16.msra.mxu0 %v2315
      %3004 = vmatprep.subr.bf16.mxu0 0
      %3005 = vmatpush1.bf16.msra.mxu0 %v2316
      %3006 = vmatprep.subr.bf16.mxu0 0
      %3007 = vmatpush1.bf16.msra.mxu0 %v2317
      %3008 = vmatprep.mubr.bf16.mxu0 %v1507
      %3009 = vmatmul.mubr.bf16.gmra.mrb[0].mxu0 %v1506
      %v3010 = vpop.f32.mrb[0].mxu0
      %v3011 = vadd.f32 %v2722, %v3010
      %v3012 = vpop.f32.mrb[0].mxu0
      %v3013 = vpop.f32.mrb[0].mxu0
      %v3014 = vadd.f32 %v2725, %v3013
      %v3015 = vpop.f32.mrb[0].mxu0
      %3016 = vmatprep.mubr.bf16.mxu0 %v1515
      %3017 = vmatmul.mubr.bf16.gmra.mrb[0].mxu0 %v1514
      %v3018 = vpop.f32.mrb[0].mxu0
      %v3019 = vadd.f32 %v2730, %v3018
      %v3020 = vpop.f32.mrb[0].mxu0
      %v3021 = vpop.f32.mrb[0].mxu0
      %v3022 = vadd.f32 %v2733, %v3021
      %v3023 = vpop.f32.mrb[0].mxu0
      %3024 = vmatprep.mubr.bf16.mxu0 %v1523
      %3025 = vmatmul.mubr.bf16.gmra.mrb[0].mxu0 %v1522
      %v3026 = vpop.f32.mrb[0].mxu0
      %v3027 = vadd.f32 %v2738, %v3026
      %v3028 = vpop.f32.mrb[0].mxu0
      %v3029 = vpop.f32.mrb[0].mxu0
      %v3030 = vadd.f32 %v2741, %v3029
      %v3031 = vpop.f32.mrb[0].mxu0
      %3032 = vmatprep.mubr.bf16.mxu0 %v1531
      %3033 = vmatmul.mubr.bf16.gmra.mrb[0].mxu0 %v1530
      %v3034 = vpop.f32.mrb[0].mxu0
      %v3035 = vadd.f32 %v2746, %v3034
      %v3036 = vpop.f32.mrb[0].mxu0
      %v3037 = vpop.f32.mrb[0].mxu0
      %v3038 = vadd.f32 %v2749, %v3037
      %v3039 = vpop.f32.mrb[0].mxu0
      %3040 = vmatprep.mubr.bf16.mxu0 %v1539
      %3041 = vmatmul.mubr.bf16.gmra.mrb[0].mxu0 %v1538
      %v3042 = vpop.f32.mrb[0].mxu0
      %v3043 = vadd.f32 %v2754, %v3042
      %v3044 = vpop.f32.mrb[0].mxu0
      %v3045 = vpop.f32.mrb[0].mxu0
      %v3046 = vadd.f32 %v2757, %v3045
      %v3047 = vpop.f32.mrb[0].mxu0
      %3048 = vmatprep.mubr.bf16.mxu0 %v1547
      %3049 = vmatmul.mubr.bf16.gmra.mrb[0].mxu0 %v1546
      %v3050 = vpop.f32.mrb[0].mxu0
      %v3051 = vadd.f32 %v2762, %v3050
      %v3052 = vpop.f32.mrb[0].mxu0
      %v3053 = vpop.f32.mrb[0].mxu0
      %v3054 = vadd.f32 %v2765, %v3053
      %v3055 = vpop.f32.mrb[0].mxu0
      %3056 = vmatprep.mubr.bf16.mxu0 %v1555
      %3057 = vmatmul.mubr.bf16.gmra.mrb[0].mxu0 %v1554
      %v3058 = vpop.f32.mrb[0].mxu0
      %v3059 = vadd.f32 %v2770, %v3058
      %v3060 = vpop.f32.mrb[0].mxu0
      %v3061 = vpop.f32.mrb[0].mxu0
      %v3062 = vadd.f32 %v2773, %v3061
      %v3063 = vpop.f32.mrb[0].mxu0
      %3064 = vmatprep.mubr.bf16.mxu0 %v1563
      %3065 = vmatmul.mubr.bf16.gmra.mrb[0].mxu0 %v1562
      %v3066 = vpop.f32.mrb[0].mxu0
      %v3067 = vadd.f32 %v2778, %v3066
      %v3068 = vpop.f32.mrb[0].mxu0
      %v3069 = vpop.f32.mrb[0].mxu0
      %v3070 = vadd.f32 %v2781, %v3069
      %v3071 = vpop.f32.mrb[0].mxu0
      %3072 = vmatprep.mubr.bf16.mxu0 %v1571
      %3073 = vmatmul.mubr.bf16.gmra.mrb[0].mxu0 %v1570
      %v3074 = vpop.f32.mrb[0].mxu0
      %v3075 = vadd.f32 %v2786, %v3074
      %v3076 = vpop.f32.mrb[0].mxu0
      %v3077 = vpop.f32.mrb[0].mxu0
      %v3078 = vadd.f32 %v2789, %v3077
      %v3079 = vpop.f32.mrb[0].mxu0
      %3080 = vmatprep.mubr.bf16.mxu0 %v1579
      %3081 = vmatmul.mubr.bf16.gmra.mrb[0].mxu0 %v1578
      %v3082 = vpop.f32.mrb[0].mxu0
      %v3083 = vadd.f32 %v2794, %v3082
      %v3084 = vpop.f32.mrb[0].mxu0
      %v3085 = vpop.f32.mrb[0].mxu0
      %v3086 = vadd.f32 %v2797, %v3085
      %v3087 = vpop.f32.mrb[0].mxu0
      %3088 = vmatprep.mubr.bf16.mxu0 %v1587
      %3089 = vmatmul.mubr.bf16.gmra.mrb[0].mxu0 %v1586
      %v3090 = vpop.f32.mrb[0].mxu0
      %v3091 = vadd.f32 %v2802, %v3090
      %v3092 = vpop.f32.mrb[0].mxu0
      %v3093 = vpop.f32.mrb[0].mxu0
      %v3094 = vadd.f32 %v2805, %v3093
      %v3095 = vpop.f32.mrb[0].mxu0
      %3096 = vmatprep.mubr.bf16.mxu0 %v1595
      %3097 = vmatmul.mubr.bf16.gmra.mrb[0].mxu0 %v1594
      %v3098 = vpop.f32.mrb[0].mxu0
      %v3099 = vadd.f32 %v2810, %v3098
      %v3100 = vpop.f32.mrb[0].mxu0
      %v3101 = vpop.f32.mrb[0].mxu0
      %v3102 = vadd.f32 %v2813, %v3101
      %v3103 = vpop.f32.mrb[0].mxu0
      %3104 = vmatprep.mubr.bf16.mxu0 %v1603
      %3105 = vmatmul.mubr.bf16.gmra.mrb[0].mxu0 %v1602
      %v3106 = vpop.f32.mrb[0].mxu0
      %v3107 = vadd.f32 %v2818, %v3106
      %v3108 = vpop.f32.mrb[0].mxu0
      %v3109 = vpop.f32.mrb[0].mxu0
      %v3110 = vadd.f32 %v2821, %v3109
      %v3111 = vpop.f32.mrb[0].mxu0
      %3112 = vmatprep.mubr.bf16.mxu0 %v1611
      %3113 = vmatmul.mubr.bf16.gmra.mrb[0].mxu0 %v1610
      %v3114 = vpop.f32.mrb[0].mxu0
      %v3115 = vadd.f32 %v2826, %v3114
      %v3116 = vpop.f32.mrb[0].mxu0
      %v3117 = vpop.f32.mrb[0].mxu0
      %v3118 = vadd.f32 %v2829, %v3117
      %v3119 = vpop.f32.mrb[0].mxu0
      %3120 = vmatprep.mubr.bf16.mxu0 %v1619
      %3121 = vmatmul.mubr.bf16.gmra.mrb[0].mxu0 %v1618
      %v3122 = vpop.f32.mrb[0].mxu0
      %v3123 = vadd.f32 %v2834, %v3122
      %v3124 = vpop.f32.mrb[0].mxu0
      %v3125 = vpop.f32.mrb[0].mxu0
      %v3126 = vadd.f32 %v2837, %v3125
      %v3127 = vpop.f32.mrb[0].mxu0
      %3128 = vmatprep.mubr.bf16.mxu0 %v1627
      %3129 = vmatmul.mubr.bf16.gmra.mrb[0].mxu0 %v1626
      %v3130 = vpop.f32.mrb[0].mxu0
      %v3131 = vadd.f32 %v2842, %v3130
      %v3132 = vpop.f32.mrb[0].mxu0
      %v3133 = vpop.f32.mrb[0].mxu0
      %v3134 = vadd.f32 %v2845, %v3133
      %v3135 = vpop.f32.mrb[0].mxu0
      %3136 = vmatprep.mubr.bf16.mxu0 %v1635
      %3137 = vmatmul.mubr.bf16.gmra.mrb[0].mxu0 %v1634
      %v3138 = vpop.f32.mrb[0].mxu0
      %v3139 = vadd.f32 %v2850, %v3138
      %v3140 = vpop.f32.mrb[0].mxu0
      %v3141 = vpop.f32.mrb[0].mxu0
      %v3142 = vadd.f32 %v2853, %v3141
      %v3143 = vpop.f32.mrb[0].mxu0
      %3144 = vmatprep.mubr.bf16.mxu0 %v1643
      %3145 = vmatmul.mubr.bf16.gmra.mrb[0].mxu0 %v1642
      %v3146 = vpop.f32.mrb[0].mxu0
      %v3147 = vadd.f32 %v2858, %v3146
      %v3148 = vpop.f32.mrb[0].mxu0
      %v3149 = vpop.f32.mrb[0].mxu0
      %v3150 = vadd.f32 %v2861, %v3149
      %v3151 = vpop.f32.mrb[0].mxu0
      %3152 = vmatprep.mubr.bf16.mxu0 %v1651
      %3153 = vmatmul.mubr.bf16.gmra.mrb[0].mxu0 %v1650
      %v3154 = vpop.f32.mrb[0].mxu0
      %v3155 = vadd.f32 %v2866, %v3154
      %v3156 = vpop.f32.mrb[0].mxu0
      %v3157 = vpop.f32.mrb[0].mxu0
      %v3158 = vadd.f32 %v2869, %v3157
      %v3159 = vpop.f32.mrb[0].mxu0
      %3160 = vmatprep.mubr.bf16.mxu0 %v1659
      %3161 = vmatmul.mubr.bf16.gmra.mrb[0].mxu0 %v1658
      %v3162 = vpop.f32.mrb[0].mxu0
      %v3163 = vadd.f32 %v2874, %v3162
      %v3164 = vpop.f32.mrb[0].mxu0
      %v3165 = vpop.f32.mrb[0].mxu0
      %v3166 = vadd.f32 %v2877, %v3165
      %v3167 = vpop.f32.mrb[0].mxu0
      %3168 = vmatprep.mubr.bf16.mxu0 %v1667
      %3169 = vmatmul.mubr.bf16.gmra.mrb[0].mxu0 %v1666
      %v3170 = vpop.f32.mrb[0].mxu0
      %v3171 = vadd.f32 %v2882, %v3170
      %v3172 = vpop.f32.mrb[0].mxu0
      %v3173 = vpop.f32.mrb[0].mxu0
      %v3174 = vadd.f32 %v2885, %v3173
      %v3175 = vpop.f32.mrb[0].mxu0
      %3176 = vmatprep.mubr.bf16.mxu0 %v1675
      %3177 = vmatmul.mubr.bf16.gmra.mrb[0].mxu0 %v1674
      %v3178 = vpop.f32.mrb[0].mxu0
      %v3179 = vadd.f32 %v2890, %v3178
      %v3180 = vpop.f32.mrb[0].mxu0
      %v3181 = vpop.f32.mrb[0].mxu0
      %v3182 = vadd.f32 %v2893, %v3181
      %v3183 = vpop.f32.mrb[0].mxu0
      %3184 = vmatprep.mubr.bf16.mxu0 %v1683
      %3185 = vmatmul.mubr.bf16.gmra.mrb[0].mxu0 %v1682
      %v3186 = vpop.f32.mrb[0].mxu0
      %v3187 = vadd.f32 %v2898, %v3186
      %v3188 = vpop.f32.mrb[0].mxu0
      %v3189 = vpop.f32.mrb[0].mxu0
      %v3190 = vadd.f32 %v2901, %v3189
      %v3191 = vpop.f32.mrb[0].mxu0
      %3192 = vmatprep.mubr.bf16.mxu0 %v1691
      %3193 = vmatmul.mubr.bf16.gmra.mrb[0].mxu0 %v1690
      %v3194 = vpop.f32.mrb[0].mxu0
      %v3195 = vadd.f32 %v2906, %v3194
      %v3196 = vpop.f32.mrb[0].mxu0
      %v3197 = vpop.f32.mrb[0].mxu0
      %v3198 = vadd.f32 %v2909, %v3197
      %v3199 = vpop.f32.mrb[0].mxu0
      %3200 = vmatprep.mubr.bf16.mxu0 %v1699
      %3201 = vmatmul.mubr.bf16.gmra.mrb[0].mxu0 %v1698
      %v3202 = vpop.f32.mrb[0].mxu0
      %v3203 = vadd.f32 %v2914, %v3202
      %v3204 = vpop.f32.mrb[0].mxu0
      %v3205 = vpop.f32.mrb[0].mxu0
      %v3206 = vadd.f32 %v2917, %v3205
      %v3207 = vpop.f32.mrb[0].mxu0
      %3208 = vmatprep.mubr.bf16.mxu0 %v1707
      %3209 = vmatmul.mubr.bf16.gmra.mrb[0].mxu0 %v1706
      %v3210 = vpop.f32.mrb[0].mxu0
      %v3211 = vadd.f32 %v2922, %v3210
      %v3212 = vpop.f32.mrb[0].mxu0
      %v3213 = vpop.f32.mrb[0].mxu0
      %v3214 = vadd.f32 %v2925, %v3213
      %v3215 = vpop.f32.mrb[0].mxu0
      %3216 = vmatprep.mubr.bf16.mxu0 %v1715
      %3217 = vmatmul.mubr.bf16.gmra.mrb[0].mxu0 %v1714
      %v3218 = vpop.f32.mrb[0].mxu0
      %v3219 = vadd.f32 %v2930, %v3218
      %v3220 = vpop.f32.mrb[0].mxu0
      %v3221 = vpop.f32.mrb[0].mxu0
      %v3222 = vadd.f32 %v2933, %v3221
      %v3223 = vpop.f32.mrb[0].mxu0
      %3224 = vmatprep.mubr.bf16.mxu0 %v1723
      %3225 = vmatmul.mubr.bf16.gmra.mrb[0].mxu0 %v1722
      %v3226 = vpop.f32.mrb[0].mxu0
      %v3227 = vadd.f32 %v2938, %v3226
      %v3228 = vpop.f32.mrb[0].mxu0
      %v3229 = vpop.f32.mrb[0].mxu0
      %v3230 = vadd.f32 %v2941, %v3229
      %v3231 = vpop.f32.mrb[0].mxu0
      %3232 = vmatprep.mubr.bf16.mxu0 %v1731
      %3233 = vmatmul.mubr.bf16.gmra.mrb[0].mxu0 %v1730
      %v3234 = vpop.f32.mrb[0].mxu0
      %v3235 = vadd.f32 %v2946, %v3234
      %v3236 = vpop.f32.mrb[0].mxu0
      %v3237 = vpop.f32.mrb[0].mxu0
      %v3238 = vadd.f32 %v2949, %v3237
      %v3239 = vpop.f32.mrb[0].mxu0
      %3240 = vmatprep.mubr.bf16.mxu0 %v1739
      %3241 = vmatmul.mubr.bf16.gmra.mrb[0].mxu0 %v1738
      %v3242 = vpop.f32.mrb[0].mxu0
      %v3243 = vadd.f32 %v2954, %v3242
      %v3244 = vpop.f32.mrb[0].mxu0
      %v3245 = vpop.f32.mrb[0].mxu0
      %v3246 = vadd.f32 %v2957, %v3245
      %v3247 = vpop.f32.mrb[0].mxu0
      %3248 = vmatprep.mubr.bf16.mxu0 %v1747
      %3249 = vmatmul.mubr.bf16.gmra.mrb[0].mxu0 %v1746
      %v3250 = vpop.f32.mrb[0].mxu0
      %v3251 = vadd.f32 %v2962, %v3250
      %v3252 = vpop.f32.mrb[0].mxu0
      %v3253 = vpop.f32.mrb[0].mxu0
      %v3254 = vadd.f32 %v2965, %v3253
      %v3255 = vpop.f32.mrb[0].mxu0
      %3256 = vmatprep.mubr.bf16.mxu0 %v1755
      %3257 = vmatmul.mubr.bf16.gmra.mrb[0].mxu0 %v1754
      %v3258 = vpop.f32.mrb[0].mxu0
      %v3259 = vadd.f32 %v2970, %v3258
      %v3260 = vpop.f32.mrb[0].mxu0
      %v3261 = vpop.f32.mrb[0].mxu0
      %v3262 = vadd.f32 %v2973, %v3261
      %v3263 = vpop.f32.mrb[0].mxu0
      %3264 = vdwg.mxu0
      %3265 = vmatprep.subr.bf16.mxu0 0
      %3266 = vmatpush1.bf16.msra.mxu0 %v2318
      %3267 = vmatprep.subr.bf16.mxu0 0
      %3268 = vmatpush1.bf16.msra.mxu0 %v2319
      %3269 = vmatprep.subr.bf16.mxu0 0
      %3270 = vmatpush1.bf16.msra.mxu0 %v2320
      %3271 = vmatprep.subr.bf16.mxu0 0
      %3272 = vmatpush1.bf16.msra.mxu0 %v2321
      %3273 = vmatprep.subr.bf16.mxu0 0
      %3274 = vmatpush1.bf16.msra.mxu0 %v2322
      %3275 = vmatprep.subr.bf16.mxu0 0
      %3276 = vmatpush1.bf16.msra.mxu0 %v2323
      %3277 = vmatprep.subr.bf16.mxu0 0
      %3278 = vmatpush1.bf16.msra.mxu0 %v2324
      %3279 = vmatprep.subr.bf16.mxu0 0
      %3280 = vmatpush1.bf16.msra.mxu0 %v2325
      %3281 = vmatprep.subr.bf16.mxu0 0
      %3282 = vmatpush1.bf16.msra.mxu0 %v2326
      %3283 = vmatprep.subr.bf16.mxu0 0
      %3284 = vmatpush1.bf16.msra.mxu0 %v2327
      %3285 = vmatprep.subr.bf16.mxu0 0
      %3286 = vmatpush1.bf16.msra.mxu0 %v2328
      %3287 = vmatprep.subr.bf16.mxu0 0
      %3288 = vmatpush1.bf16.msra.mxu0 %v2329
      %3289 = vmatprep.subr.bf16.mxu0 0
      %3290 = vmatpush1.bf16.msra.mxu0 %v2330
      %3291 = vmatprep.subr.bf16.mxu0 0
      %3292 = vmatpush1.bf16.msra.mxu0 %v2331
      %3293 = vmatprep.subr.bf16.mxu0 0
      %3294 = vmatpush1.bf16.msra.mxu0 %v2332
      %3295 = vmatprep.subr.bf16.mxu0 0
      %3296 = vmatpush1.bf16.msra.mxu0 %v2333
      %3297 = vmatprep.mubr.bf16.mxu0 %v1509
      %3298 = vmatmul.mubr.bf16.gmra.mrb[0].mxu0 %v1508
      %v3299 = vpop.f32.mrb[0].mxu0
      %v3300 = vadd.f32 %v3011, %v3299
      %v3301 = vpop.f32.mrb[0].mxu0
      %v3302 = vpop.f32.mrb[0].mxu0
      %v3303 = vadd.f32 %v3014, %v3302
      %v3304 = vpop.f32.mrb[0].mxu0
      %3305 = vmatprep.mubr.bf16.mxu0 %v1517
      %3306 = vmatmul.mubr.bf16.gmra.mrb[0].mxu0 %v1516
      %v3307 = vpop.f32.mrb[0].mxu0
      %v3308 = vadd.f32 %v3019, %v3307
      %v3309 = vpop.f32.mrb[0].mxu0
      %v3310 = vpop.f32.mrb[0].mxu0
      %v3311 = vadd.f32 %v3022, %v3310
      %v3312 = vpop.f32.mrb[0].mxu0
      %3313 = vmatprep.mubr.bf16.mxu0 %v1525
      %3314 = vmatmul.mubr.bf16.gmra.mrb[0].mxu0 %v1524
      %v3315 = vpop.f32.mrb[0].mxu0
      %v3316 = vadd.f32 %v3027, %v3315
      %v3317 = vpop.f32.mrb[0].mxu0
      %v3318 = vpop.f32.mrb[0].mxu0
      %v3319 = vadd.f32 %v3030, %v3318
      %v3320 = vpop.f32.mrb[0].mxu0
      %3321 = vmatprep.mubr.bf16.mxu0 %v1533
      %3322 = vmatmul.mubr.bf16.gmra.mrb[0].mxu0 %v1532
      %v3323 = vpop.f32.mrb[0].mxu0
      %v3324 = vadd.f32 %v3035, %v3323
      %v3325 = vpop.f32.mrb[0].mxu0
      %v3326 = vpop.f32.mrb[0].mxu0
      %v3327 = vadd.f32 %v3038, %v3326
      %v3328 = vpop.f32.mrb[0].mxu0
      %3329 = vmatprep.mubr.bf16.mxu0 %v1541
      %3330 = vmatmul.mubr.bf16.gmra.mrb[0].mxu0 %v1540
      %v3331 = vpop.f32.mrb[0].mxu0
      %v3332 = vadd.f32 %v3043, %v3331
      %v3333 = vpop.f32.mrb[0].mxu0
      %v3334 = vpop.f32.mrb[0].mxu0
      %v3335 = vadd.f32 %v3046, %v3334
      %v3336 = vpop.f32.mrb[0].mxu0
      %3337 = vmatprep.mubr.bf16.mxu0 %v1549
      %3338 = vmatmul.mubr.bf16.gmra.mrb[0].mxu0 %v1548
      %v3339 = vpop.f32.mrb[0].mxu0
      %v3340 = vadd.f32 %v3051, %v3339
      %v3341 = vpop.f32.mrb[0].mxu0
      %v3342 = vpop.f32.mrb[0].mxu0
      %v3343 = vadd.f32 %v3054, %v3342
      %v3344 = vpop.f32.mrb[0].mxu0
      %3345 = vmatprep.mubr.bf16.mxu0 %v1557
      %3346 = vmatmul.mubr.bf16.gmra.mrb[0].mxu0 %v1556
      %v3347 = vpop.f32.mrb[0].mxu0
      %v3348 = vadd.f32 %v3059, %v3347
      %v3349 = vpop.f32.mrb[0].mxu0
      %v3350 = vpop.f32.mrb[0].mxu0
      %v3351 = vadd.f32 %v3062, %v3350
      %v3352 = vpop.f32.mrb[0].mxu0
      %3353 = vmatprep.mubr.bf16.mxu0 %v1565
      %3354 = vmatmul.mubr.bf16.gmra.mrb[0].mxu0 %v1564
      %v3355 = vpop.f32.mrb[0].mxu0
      %v3356 = vadd.f32 %v3067, %v3355
      %v3357 = vpop.f32.mrb[0].mxu0
      %v3358 = vpop.f32.mrb[0].mxu0
      %v3359 = vadd.f32 %v3070, %v3358
      %v3360 = vpop.f32.mrb[0].mxu0
      %3361 = vmatprep.mubr.bf16.mxu0 %v1573
      %3362 = vmatmul.mubr.bf16.gmra.mrb[0].mxu0 %v1572
      %v3363 = vpop.f32.mrb[0].mxu0
      %v3364 = vadd.f32 %v3075, %v3363
      %v3365 = vpop.f32.mrb[0].mxu0
      %v3366 = vpop.f32.mrb[0].mxu0
      %v3367 = vadd.f32 %v3078, %v3366
      %v3368 = vpop.f32.mrb[0].mxu0
      %3369 = vmatprep.mubr.bf16.mxu0 %v1581
      %3370 = vmatmul.mubr.bf16.gmra.mrb[0].mxu0 %v1580
      %v3371 = vpop.f32.mrb[0].mxu0
      %v3372 = vadd.f32 %v3083, %v3371
      %v3373 = vpop.f32.mrb[0].mxu0
      %v3374 = vpop.f32.mrb[0].mxu0
      %v3375 = vadd.f32 %v3086, %v3374
      %v3376 = vpop.f32.mrb[0].mxu0
      %3377 = vmatprep.mubr.bf16.mxu0 %v1589
      %3378 = vmatmul.mubr.bf16.gmra.mrb[0].mxu0 %v1588
      %v3379 = vpop.f32.mrb[0].mxu0
      %v3380 = vadd.f32 %v3091, %v3379
      %v3381 = vpop.f32.mrb[0].mxu0
      %v3382 = vpop.f32.mrb[0].mxu0
      %v3383 = vadd.f32 %v3094, %v3382
      %v3384 = vpop.f32.mrb[0].mxu0
      %3385 = vmatprep.mubr.bf16.mxu0 %v1597
      %3386 = vmatmul.mubr.bf16.gmra.mrb[0].mxu0 %v1596
      %v3387 = vpop.f32.mrb[0].mxu0
      %v3388 = vadd.f32 %v3099, %v3387
      %v3389 = vpop.f32.mrb[0].mxu0
      %v3390 = vpop.f32.mrb[0].mxu0
      %v3391 = vadd.f32 %v3102, %v3390
      %v3392 = vpop.f32.mrb[0].mxu0
      %3393 = vmatprep.mubr.bf16.mxu0 %v1605
      %3394 = vmatmul.mubr.bf16.gmra.mrb[0].mxu0 %v1604
      %v3395 = vpop.f32.mrb[0].mxu0
      %v3396 = vadd.f32 %v3107, %v3395
      %v3397 = vpop.f32.mrb[0].mxu0
      %v3398 = vpop.f32.mrb[0].mxu0
      %v3399 = vadd.f32 %v3110, %v3398
      %v3400 = vpop.f32.mrb[0].mxu0
      %3401 = vmatprep.mubr.bf16.mxu0 %v1613
      %3402 = vmatmul.mubr.bf16.gmra.mrb[0].mxu0 %v1612
      %v3403 = vpop.f32.mrb[0].mxu0
      %v3404 = vadd.f32 %v3115, %v3403
      %v3405 = vpop.f32.mrb[0].mxu0
      %v3406 = vpop.f32.mrb[0].mxu0
      %v3407 = vadd.f32 %v3118, %v3406
      %v3408 = vpop.f32.mrb[0].mxu0
      %3409 = vmatprep.mubr.bf16.mxu0 %v1621
      %3410 = vmatmul.mubr.bf16.gmra.mrb[0].mxu0 %v1620
      %v3411 = vpop.f32.mrb[0].mxu0
      %v3412 = vadd.f32 %v3123, %v3411
      %v3413 = vpop.f32.mrb[0].mxu0
      %v3414 = vpop.f32.mrb[0].mxu0
      %v3415 = vadd.f32 %v3126, %v3414
      %v3416 = vpop.f32.mrb[0].mxu0
      %3417 = vmatprep.mubr.bf16.mxu0 %v1629
      %3418 = vmatmul.mubr.bf16.gmra.mrb[0].mxu0 %v1628
      %v3419 = vpop.f32.mrb[0].mxu0
      %v3420 = vadd.f32 %v3131, %v3419
      %v3421 = vpop.f32.mrb[0].mxu0
      %v3422 = vpop.f32.mrb[0].mxu0
      %v3423 = vadd.f32 %v3134, %v3422
      %v3424 = vpop.f32.mrb[0].mxu0
      %3425 = vmatprep.mubr.bf16.mxu0 %v1637
      %3426 = vmatmul.mubr.bf16.gmra.mrb[0].mxu0 %v1636
      %v3427 = vpop.f32.mrb[0].mxu0
      %v3428 = vadd.f32 %v3139, %v3427
      %v3429 = vpop.f32.mrb[0].mxu0
      %v3430 = vpop.f32.mrb[0].mxu0
      %v3431 = vadd.f32 %v3142, %v3430
      %v3432 = vpop.f32.mrb[0].mxu0
      %3433 = vmatprep.mubr.bf16.mxu0 %v1645
      %3434 = vmatmul.mubr.bf16.gmra.mrb[0].mxu0 %v1644
      %v3435 = vpop.f32.mrb[0].mxu0
      %v3436 = vadd.f32 %v3147, %v3435
      %v3437 = vpop.f32.mrb[0].mxu0
      %v3438 = vpop.f32.mrb[0].mxu0
      %v3439 = vadd.f32 %v3150, %v3438
      %v3440 = vpop.f32.mrb[0].mxu0
      %3441 = vmatprep.mubr.bf16.mxu0 %v1653
      %3442 = vmatmul.mubr.bf16.gmra.mrb[0].mxu0 %v1652
      %v3443 = vpop.f32.mrb[0].mxu0
      %v3444 = vadd.f32 %v3155, %v3443
      %v3445 = vpop.f32.mrb[0].mxu0
      %v3446 = vpop.f32.mrb[0].mxu0
      %v3447 = vadd.f32 %v3158, %v3446
      %v3448 = vpop.f32.mrb[0].mxu0
      %3449 = vmatprep.mubr.bf16.mxu0 %v1661
      %3450 = vmatmul.mubr.bf16.gmra.mrb[0].mxu0 %v1660
      %v3451 = vpop.f32.mrb[0].mxu0
      %v3452 = vadd.f32 %v3163, %v3451
      %v3453 = vpop.f32.mrb[0].mxu0
      %v3454 = vpop.f32.mrb[0].mxu0
      %v3455 = vadd.f32 %v3166, %v3454
      %v3456 = vpop.f32.mrb[0].mxu0
      %3457 = vmatprep.mubr.bf16.mxu0 %v1669
      %3458 = vmatmul.mubr.bf16.gmra.mrb[0].mxu0 %v1668
      %v3459 = vpop.f32.mrb[0].mxu0
      %v3460 = vadd.f32 %v3171, %v3459
      %v3461 = vpop.f32.mrb[0].mxu0
      %v3462 = vpop.f32.mrb[0].mxu0
      %v3463 = vadd.f32 %v3174, %v3462
      %v3464 = vpop.f32.mrb[0].mxu0
      %3465 = vmatprep.mubr.bf16.mxu0 %v1677
      %3466 = vmatmul.mubr.bf16.gmra.mrb[0].mxu0 %v1676
      %v3467 = vpop.f32.mrb[0].mxu0
      %v3468 = vadd.f32 %v3179, %v3467
      %v3469 = vpop.f32.mrb[0].mxu0
      %v3470 = vpop.f32.mrb[0].mxu0
      %v3471 = vadd.f32 %v3182, %v3470
      %v3472 = vpop.f32.mrb[0].mxu0
      %3473 = vmatprep.mubr.bf16.mxu0 %v1685
      %3474 = vmatmul.mubr.bf16.gmra.mrb[0].mxu0 %v1684
      %v3475 = vpop.f32.mrb[0].mxu0
      %v3476 = vadd.f32 %v3187, %v3475
      %v3477 = vpop.f32.mrb[0].mxu0
      %v3478 = vpop.f32.mrb[0].mxu0
      %v3479 = vadd.f32 %v3190, %v3478
      %v3480 = vpop.f32.mrb[0].mxu0
      %3481 = vmatprep.mubr.bf16.mxu0 %v1693
      %3482 = vmatmul.mubr.bf16.gmra.mrb[0].mxu0 %v1692
      %v3483 = vpop.f32.mrb[0].mxu0
      %v3484 = vadd.f32 %v3195, %v3483
      %v3485 = vpop.f32.mrb[0].mxu0
      %v3486 = vpop.f32.mrb[0].mxu0
      %v3487 = vadd.f32 %v3198, %v3486
      %v3488 = vpop.f32.mrb[0].mxu0
      %3489 = vmatprep.mubr.bf16.mxu0 %v1701
      %3490 = vmatmul.mubr.bf16.gmra.mrb[0].mxu0 %v1700
      %v3491 = vpop.f32.mrb[0].mxu0
      %v3492 = vadd.f32 %v3203, %v3491
      %v3493 = vpop.f32.mrb[0].mxu0
      %v3494 = vpop.f32.mrb[0].mxu0
      %v3495 = vadd.f32 %v3206, %v3494
      %v3496 = vpop.f32.mrb[0].mxu0
      %3497 = vmatprep.mubr.bf16.mxu0 %v1709
      %3498 = vmatmul.mubr.bf16.gmra.mrb[0].mxu0 %v1708
      %v3499 = vpop.f32.mrb[0].mxu0
      %v3500 = vadd.f32 %v3211, %v3499
      %v3501 = vpop.f32.mrb[0].mxu0
      %v3502 = vpop.f32.mrb[0].mxu0
      %v3503 = vadd.f32 %v3214, %v3502
      %v3504 = vpop.f32.mrb[0].mxu0
      %3505 = vmatprep.mubr.bf16.mxu0 %v1717
      %3506 = vmatmul.mubr.bf16.gmra.mrb[0].mxu0 %v1716
      %v3507 = vpop.f32.mrb[0].mxu0
      %v3508 = vadd.f32 %v3219, %v3507
      %v3509 = vpop.f32.mrb[0].mxu0
      %v3510 = vpop.f32.mrb[0].mxu0
      %v3511 = vadd.f32 %v3222, %v3510
      %v3512 = vpop.f32.mrb[0].mxu0
      %3513 = vmatprep.mubr.bf16.mxu0 %v1725
      %3514 = vmatmul.mubr.bf16.gmra.mrb[0].mxu0 %v1724
      %v3515 = vpop.f32.mrb[0].mxu0
      %v3516 = vadd.f32 %v3227, %v3515
      %v3517 = vpop.f32.mrb[0].mxu0
      %v3518 = vpop.f32.mrb[0].mxu0
      %v3519 = vadd.f32 %v3230, %v3518
      %v3520 = vpop.f32.mrb[0].mxu0
      %3521 = vmatprep.mubr.bf16.mxu0 %v1733
      %3522 = vmatmul.mubr.bf16.gmra.mrb[0].mxu0 %v1732
      %v3523 = vpop.f32.mrb[0].mxu0
      %v3524 = vadd.f32 %v3235, %v3523
      %v3525 = vpop.f32.mrb[0].mxu0
      %v3526 = vpop.f32.mrb[0].mxu0
      %v3527 = vadd.f32 %v3238, %v3526
      %v3528 = vpop.f32.mrb[0].mxu0
      %3529 = vmatprep.mubr.bf16.mxu0 %v1741
      %3530 = vmatmul.mubr.bf16.gmra.mrb[0].mxu0 %v1740
      %v3531 = vpop.f32.mrb[0].mxu0
      %v3532 = vadd.f32 %v3243, %v3531
      %v3533 = vpop.f32.mrb[0].mxu0
      %v3534 = vpop.f32.mrb[0].mxu0
      %v3535 = vadd.f32 %v3246, %v3534
      %v3536 = vpop.f32.mrb[0].mxu0
      %3537 = vmatprep.mubr.bf16.mxu0 %v1749
      %3538 = vmatmul.mubr.bf16.gmra.mrb[0].mxu0 %v1748
      %v3539 = vpop.f32.mrb[0].mxu0
      %v3540 = vadd.f32 %v3251, %v3539
      %v3541 = vpop.f32.mrb[0].mxu0
      %v3542 = vpop.f32.mrb[0].mxu0
      %v3543 = vadd.f32 %v3254, %v3542
      %v3544 = vpop.f32.mrb[0].mxu0
      %3545 = vmatprep.mubr.bf16.mxu0 %v1757
      %3546 = vmatmul.mubr.bf16.gmra.mrb[0].mxu0 %v1756
      %v3547 = vpop.f32.mrb[0].mxu0
      %v3548 = vadd.f32 %v3259, %v3547
      %v3549 = vpop.f32.mrb[0].mxu0
      %v3550 = vpop.f32.mrb[0].mxu0
      %v3551 = vadd.f32 %v3262, %v3550
      %v3552 = vpop.f32.mrb[0].mxu0
      %3553 = vdwg.mxu0
      %v3554 = vadd.f32 %v414, %v3300
      %v3555 = vadd.f32 %v415, %v3303
      %v3556 = vadd.f32 %v416, %v3308
      %v3557 = vadd.f32 %v417, %v3311
      %v3558 = vadd.f32 %v418, %v3316
      %v3559 = vadd.f32 %v419, %v3319
      %v3560 = vadd.f32 %v420, %v3324
      %v3561 = vadd.f32 %v421, %v3327
      %v3562 = vadd.f32 %v422, %v3332
      %v3563 = vadd.f32 %v423, %v3335
      %v3564 = vadd.f32 %v424, %v3340
      %v3565 = vadd.f32 %v425, %v3343
      %v3566 = vadd.f32 %v426, %v3348
      %v3567 = vadd.f32 %v427, %v3351
      %v3568 = vadd.f32 %v428, %v3356
      %v3569 = vadd.f32 %v429, %v3359
      %v3570 = vadd.f32 %v430, %v3364
      %v3571 = vadd.f32 %v431, %v3367
      %v3572 = vadd.f32 %v432, %v3372
      %v3573 = vadd.f32 %v433, %v3375
      %v3574 = vadd.f32 %v434, %v3380
      %v3575 = vadd.f32 %v435, %v3383
      %v3576 = vadd.f32 %v436, %v3388
      %v3577 = vadd.f32 %v437, %v3391
      %v3578 = vadd.f32 %v438, %v3396
      %v3579 = vadd.f32 %v439, %v3399
      %v3580 = vadd.f32 %v440, %v3404
      %v3581 = vadd.f32 %v441, %v3407
      %v3582 = vadd.f32 %v442, %v3412
      %v3583 = vadd.f32 %v443, %v3415
      %v3584 = vadd.f32 %v444, %v3420
      %v3585 = vadd.f32 %v445, %v3423
      %v3586 = vadd.f32 %v446, %v3428
      %v3587 = vadd.f32 %v447, %v3431
      %v3588 = vadd.f32 %v448, %v3436
      %v3589 = vadd.f32 %v449, %v3439
      %v3590 = vadd.f32 %v450, %v3444
      %v3591 = vadd.f32 %v451, %v3447
      %v3592 = vadd.f32 %v452, %v3452
      %v3593 = vadd.f32 %v453, %v3455
      %v3594 = vadd.f32 %v454, %v3460
      %v3595 = vadd.f32 %v455, %v3463
      %v3596 = vadd.f32 %v456, %v3468
      %v3597 = vadd.f32 %v457, %v3471
      %v3598 = vadd.f32 %v458, %v3476
      %v3599 = vadd.f32 %v459, %v3479
      %v3600 = vadd.f32 %v460, %v3484
      %v3601 = vadd.f32 %v461, %v3487
      %v3602 = vadd.f32 %v462, %v3492
      %v3603 = vadd.f32 %v463, %v3495
      %v3604 = vadd.f32 %v464, %v3500
      %v3605 = vadd.f32 %v465, %v3503
      %v3606 = vadd.f32 %v466, %v3508
      %v3607 = vadd.f32 %v467, %v3511
      %v3608 = vadd.f32 %v468, %v3516
      %v3609 = vadd.f32 %v469, %v3519
      %v3610 = vadd.f32 %v470, %v3524
      %v3611 = vadd.f32 %v471, %v3527
      %v3612 = vadd.f32 %v472, %v3532
      %v3613 = vadd.f32 %v473, %v3535
      %v3614 = vadd.f32 %v474, %v3540
      %v3615 = vadd.f32 %v475, %v3543
      %v3616 = vadd.f32 %v476, %v3548
      %v3617 = vadd.f32 %v477, %v3551
      %3618 = vst [vmem:[%s203] sm:$0xff] %v3554
      %3619 = vst [vmem:[%s203 + $0x8] sm:$0xff] %v3555
      %3620 = vst [vmem:[%s203 + $0x10] sm:$0xff] %v3556
      %3621 = vst [vmem:[%s203 + $0x18] sm:$0xff] %v3557
      %3622 = vst [vmem:[%s203 + $0x20] sm:$0xff] %v3558
      %3623 = vst [vmem:[%s203 + $0x28] sm:$0xff] %v3559
      %3624 = vst [vmem:[%s203 + $0x30] sm:$0xff] %v3560
      %3625 = vst [vmem:[%s203 + $0x38] sm:$0xff] %v3561
      %3626 = vst [vmem:[%s203 + $0x40] sm:$0xff] %v3562
      %3627 = vst [vmem:[%s203 + $0x48] sm:$0xff] %v3563
      %3628 = vst [vmem:[%s203 + $0x50] sm:$0xff] %v3564
      %3629 = vst [vmem:[%s203 + $0x58] sm:$0xff] %v3565
      %3630 = vst [vmem:[%s203 + $0x60] sm:$0xff] %v3566
      %3631 = vst [vmem:[%s203 + $0x68] sm:$0xff] %v3567
      %3632 = vst [vmem:[%s203 + $0x70] sm:$0xff] %v3568
      %3633 = vst [vmem:[%s203 + $0x78] sm:$0xff] %v3569
      %3634 = vst [vmem:[%s203 + $0x80] sm:$0xff] %v3570
      %3635 = vst [vmem:[%s203 + $0x88] sm:$0xff] %v3571
      %3636 = vst [vmem:[%s203 + $0x90] sm:$0xff] %v3572
      %3637 = vst [vmem:[%s203 + $0x98] sm:$0xff] %v3573
      %3638 = vst [vmem:[%s203 + $0xa0] sm:$0xff] %v3574
      %3639 = vst [vmem:[%s203 + $0xa8] sm:$0xff] %v3575
      %3640 = vst [vmem:[%s203 + $0xb0] sm:$0xff] %v3576
      %3641 = vst [vmem:[%s203 + $0xb8] sm:$0xff] %v3577
      %3642 = vst [vmem:[%s203 + $0xc0] sm:$0xff] %v3578
      %3643 = vst [vmem:[%s203 + $0xc8] sm:$0xff] %v3579
      %3644 = vst [vmem:[%s203 + $0xd0] sm:$0xff] %v3580
      %3645 = vst [vmem:[%s203 + $0xd8] sm:$0xff] %v3581
      %3646 = vst [vmem:[%s203 + $0xe0] sm:$0xff] %v3582
      %3647 = vst [vmem:[%s203 + $0xe8] sm:$0xff] %v3583
      %3648 = vst [vmem:[%s203 + $0xf0] sm:$0xff] %v3584
      %3649 = vst [vmem:[%s203 + $0xf8] sm:$0xff] %v3585
      %3650 = vst [vmem:[%s203 + $0x100] sm:$0xff] %v3586
      %3651 = vst [vmem:[%s203 + $0x108] sm:$0xff] %v3587
      %3652 = vst [vmem:[%s203 + $0x110] sm:$0xff] %v3588
      %3653 = vst [vmem:[%s203 + $0x118] sm:$0xff] %v3589
      %3654 = vst [vmem:[%s203 + $0x120] sm:$0xff] %v3590
      %3655 = vst [vmem:[%s203 + $0x128] sm:$0xff] %v3591
      %3656 = vst [vmem:[%s203 + $0x130] sm:$0xff] %v3592
      %3657 = vst [vmem:[%s203 + $0x138] sm:$0xff] %v3593
      %3658 = vst [vmem:[%s203 + $0x140] sm:$0xff] %v3594
      %3659 = vst [vmem:[%s203 + $0x148] sm:$0xff] %v3595
      %3660 = vst [vmem:[%s203 + $0x150] sm:$0xff] %v3596
      %3661 = vst [vmem:[%s203 + $0x158] sm:$0xff] %v3597
      %3662 = vst [vmem:[%s203 + $0x160] sm:$0xff] %v3598
      %3663 = vst [vmem:[%s203 + $0x168] sm:$0xff] %v3599
      %3664 = vst [vmem:[%s203 + $0x170] sm:$0xff] %v3600
      %3665 = vst [vmem:[%s203 + $0x178] sm:$0xff] %v3601
      %3666 = vst [vmem:[%s203 + $0x180] sm:$0xff] %v3602
      %3667 = vst [vmem:[%s203 + $0x188] sm:$0xff] %v3603
      %3668 = vst [vmem:[%s203 + $0x190] sm:$0xff] %v3604
      %3669 = vst [vmem:[%s203 + $0x198] sm:$0xff] %v3605
      %3670 = vst [vmem:[%s203 + $0x1a0] sm:$0xff] %v3606
      %3671 = vst [vmem:[%s203 + $0x1a8] sm:$0xff] %v3607
      %3672 = vst [vmem:[%s203 + $0x1b0] sm:$0xff] %v3608
      %3673 = vst [vmem:[%s203 + $0x1b8] sm:$0xff] %v3609
      %3674 = vst [vmem:[%s203 + $0x1c0] sm:$0xff] %v3610
      %3675 = vst [vmem:[%s203 + $0x1c8] sm:$0xff] %v3611
      %3676 = vst [vmem:[%s203 + $0x1d0] sm:$0xff] %v3612
      %3677 = vst [vmem:[%s203 + $0x1d8] sm:$0xff] %v3613
      %3678 = vst [vmem:[%s203 + $0x1e0] sm:$0xff] %v3614
      %3679 = vst [vmem:[%s203 + $0x1e8] sm:$0xff] %v3615
      %3680 = vst [vmem:[%s203 + $0x1f0] sm:$0xff] %v3616
      %3681 = vst [vmem:[%s203 + $0x1f8] sm:$0xff] %v3617
      %s3682 = smul.u32 64, %s18
      %p3683 = scmp.lt.s32.totalorder %s3682, 127
      %s3684 = scalar_select %p3683, %s3682, 127
      %s3685 = smul.addr %s3684, 8
      %s3686 = scalar_lea.vmem %s3, %s3685
      // Predicated region
      $region37: #{graph_convolution.3} parent=31 // pred_check
        %p3687 = pneg %p114
      $region38: #{graph_convolution.3} parent=31 // pred_check_branch
        %3689 = sbr.rel (%p3687) target = $region40
      $region39: #{graph_convolution.3} parent=31 // pred_region
        %s3690 = smul.u32 64, %s18
      $region40: #{graph_convolution.3} parent=31 // pred_fallthru
        _
    $region32: #{graph_convolution.3} parent=5 // pred_fallthru
      _
    %p3691 = scmp.le.s32.totalorder 2, %s9
    // Predicated region
    $region41: #{graph_convolution.3} parent=5 // pred_check
      %p3692 = pneg %p3691
    $region42: #{graph_convolution.3} parent=5 // pred_check_branch
      %3694 = sbr.rel (%p3692) target = $region44
    $region43: #{graph_convolution.3} parent=5 // pred_region
      %s3695 = ssub.s32 %s9, 2
      // Predicated region
      $region45: #{graph_convolution.3} parent=43 // pred_check
        %p3696 = pneg %p120
      $region46: #{graph_convolution.3} parent=43 // pred_check_branch
        %3698 = sbr.rel (%p3696) target = $region48
      $region47: #{graph_convolution.3} parent=43 // pred_region
        %s3699 = smul.u32 64, %s20
        %p3700 = scmp.lt.s32.totalorder %s3699, 127
        %s3701 = scalar_select %p3700, %s3699, 127
        %s3702 = smul.addr %s3701, 8
        %s3703 = scalar_lea.vmem %s3, %s3702
      $region48: #{graph_convolution.3} parent=43 // pred_fallthru
        _
    $region44: #{graph_convolution.3} parent=5 // pred_fallthru
      _
  $region6: #{graph_convolution.3} parent=0 // loop_footer
    %s13 = sadd.s32 1, %s9
  $region7: #{graph_convolution.3} parent=0 // loop_footer_branch
    %8 = sbr.rel target = $region3
  $region8: #{graph_convolution.3} parent=0 // loop_exit
    _

</llo_original>
